<compile_context>
chip_gen: v7x
topology: tpu7x:2x2x1
jax: 0.10.0
libtpu: 0.0.40
codegen_flags: <defaults>
</compile_context>

<pallas_src>
import functools

import jax
import jax.numpy as jnp
from jax.experimental import pallas as pl
from jax.experimental.pallas import tpu as pltpu

SELU_SCALE = 1.0507009873554804934193349852946
SELU_ALPHA = 1.6732632423543772848170429916717
LEAKY_SLOPE = 0.2      # DGL GATConv default negative_slope
NEG_INF = -1e30


# --------------------------------------- fused GATConv layer (+ SELU) kernel ---
def _gatconv_kernel(x_ref, w_ref, alt_ref, ar_ref, b_ref, mask_ref, o_ref, *,
                    n_dst, num_heads, out_feats):
    """One prefix group: fc projection, all-head edge softmax, aggregate, bias, SELU."""
    x_s = x_ref[...].astype(jnp.bfloat16)                      # (N_src, Fin)
    x_d = x_s[:n_dst]                                          # dst nodes are a prefix of src

    # projected source features, lane-dense (N_src, H*D), f32 accumulation on MXU
    fs = jnp.dot(x_s, w_ref[...], preferred_element_type=jnp.float32)

    # attention logits via folded weights: el[h, u] = <fc(x_s[u])_h, attn_l[h]>
    el = jax.lax.dot_general(alt_ref[...], x_s, (((1,), (1,)), ((), ())),
                             preferred_element_type=jnp.float32)           # (H, N_src)
    er = jnp.dot(x_d, ar_ref[...], preferred_element_type=jnp.float32)     # (N_dst, H)

    mask = mask_ref[...].astype(jnp.float32) > 0.0             # (N_dst, N_src) bool
    fs_b = fs.astype(jnp.bfloat16)

    outs = []
    for h in range(num_heads):                                 # static unroll over heads
        e = er[:, h:h + 1] + el[h:h + 1, :]                    # (N_dst, N_src)
        e = jnp.where(e > 0, e, LEAKY_SLOPE * e)               # LeakyReLU
        e = jnp.where(mask, e, NEG_INF)                        # only real edges
        m = jnp.max(e, axis=-1, keepdims=True)
        p = jnp.exp(e - m)                                     # masked entries underflow to 0
        s = jnp.sum(p, axis=-1, keepdims=True)
        attn = (p * pl.reciprocal(s, approx=True)).astype(jnp.bfloat16)
        outs.append(jnp.dot(attn, fs_b[:, h * out_feats:(h + 1) * out_feats],
                            preferred_element_type=jnp.float32))           # (N_dst, D)

    out = jnp.concatenate(outs, axis=-1) + b_ref[...]          # (N_dst, H*D) lane-dense
    # SELU activation (applied right after every GATConv in the model)
    o_ref[...] = SELU_SCALE * jnp.where(out > 0, out, SELU_ALPHA * (jnp.exp(out) - 1.0))


def gat_conv_layer(h, mask, W, attn_l, attn_r, bias):
    """Fused DGL GATConv(block, (h, h[:n_dst])) followed by SELU.

    h:    (G, N_src, Fin) f32   -- G = prod of nested head (prefix) dims
    mask: (N_dst, N_src) int8   -- dense adjacency of the MFG block
    W: (Fin, H*D); attn_l, attn_r, bias: (H, D)
    Returns (G, N_dst, H*D) f32.
    """
    G, N_src, Fin = h.shape
    N_dst = mask.shape[0]
    H, D = attn_l.shape
    HD = H * D

    W3 = W.reshape(Fin, H, D)
    # Fold the attention vectors into the fc weight: el = x @ A_l, er = x @ A_r (exact).
    AlT = jnp.einsum('khd,hd->hk', W3, attn_l).astype(jnp.bfloat16)   # (H, Fin)
    Ar = jnp.einsum('khd,hd->kh', W3, attn_r).astype(jnp.bfloat16)    # (Fin, H)
    Wb = W.astype(jnp.bfloat16)
    bflat = bias.reshape(1, HD)

    kernel = functools.partial(_gatconv_kernel, n_dst=N_dst, num_heads=H, out_feats=D)
    return pl.pallas_call(
        kernel,
        out_shape=jax.ShapeDtypeStruct((G, N_dst, HD), jnp.float32),
        grid=(G,),
        in_specs=[
            pl.BlockSpec((None, N_src, Fin), lambda g: (g, 0, 0)),
            pl.BlockSpec((Fin, HD), lambda g: (0, 0)),
            pl.BlockSpec((H, Fin), lambda g: (0, 0)),
            pl.BlockSpec((Fin, H), lambda g: (0, 0)),
            pl.BlockSpec((1, HD), lambda g: (0, 0)),
            pl.BlockSpec((N_dst, N_src), lambda g: (0, 0)),
        ],
        out_specs=pl.BlockSpec((None, N_dst, HD), lambda g: (g, 0, 0)),
        compiler_params=pltpu.CompilerParams(dimension_semantics=("parallel",)),
    )(h, Wb, AlT, Ar, bflat, mask)


# ---------------------------------- fused head-mean + Linear + Softmax kernel ---
def _classify_kernel(h_ref, m_ref, b_ref, o_ref):
    # Sum over the prefix-group axis; the head-mean scale 1/(G*H) is folded into m_ref.
    hsum = jnp.sum(h_ref[...], axis=0).astype(jnp.bfloat16)               # (N_dst, H*D)
    logits = jnp.dot(hsum, m_ref[...], preferred_element_type=jnp.float32) + b_ref[...]
    mx = jnp.max(logits, axis=-1, keepdims=True)
    p = jnp.exp(logits - mx)
    o_ref[...] = p / jnp.sum(p, axis=-1, keepdims=True)                   # Softmax(dim=1)


def gat_classify(h_last, Wc, bc):
    """h_last: (G, N_dst, H*D).  Computes Softmax(mean_over_head_dims(h_last) @ Wc + bc)."""
    G, N_dst, HD = h_last.shape
    Dh, C = Wc.shape
    H = HD // Dh
    # Fold the mean over all head dims into the classifier weight (exact).
    M = (jnp.tile(Wc, (H, 1)) / float(G * H)).astype(jnp.bfloat16)        # (H*D, C)
    return pl.pallas_call(
        _classify_kernel,
        out_shape=jax.ShapeDtypeStruct((N_dst, C), jnp.float32),
        grid=(1,),
        in_specs=[pl.BlockSpec((G, N_dst, HD), lambda i: (0, 0, 0)),
                  pl.BlockSpec((HD, C), lambda i: (0, 0)),
                  pl.BlockSpec((1, C), lambda i: (0, 0))],
        out_specs=pl.BlockSpec((N_dst, C), lambda i: (0, 0)),
    )(h_last, M, bc)


# ---------------------------------------------------------------- forward pass ---
def gat_forward(params, block_masks, x):
    """Forward of GAT(in_feats, n_hidden, n_classes, n_layers=len(block_masks))."""
    n_layers = len(block_masks)
    H, D = params["attn_l"][0].shape
    h = x[None]                                                # (G=1, N_src0, in_feats)
    for i in range(n_layers):
        h = gat_conv_layer(h, block_masks[i], params["W"][i], params["attn_l"][i],
                           params["attn_r"][i], params["bias"][i])        # (G, N_dst, H*D)
        if i + 1 < n_layers:
            # The next layer treats each new head as another prefix dim: (G*H, N_dst, D).
            G, N_dst, HD = h.shape
            h = h.reshape(G, N_dst, H, D).transpose(0, 2, 1, 3).reshape(G * H, N_dst, D)
    return gat_classify(h, params["Wc"], params["bc"])


# ----------------------------------------------------------------------------
if __name__ == "__main__":
    # model config: GAT(in_feats=16, n_hidden=32, n_classes=4, n_layers=2, num_head=8)
    in_feats, n_hidden, n_classes, n_layers, num_head = 16, 32, 4, 2, 8
    N_src0, N_dst0, N_dst1 = 16, 12, 8     # block sizes (dst nodes are a prefix of src)

    key = jax.random.PRNGKey(0)
    keys = jax.random.split(key, 13)

    def init(k, shape, scale=0.1):
        return (scale * jax.random.normal(k, shape)).astype(jnp.float32)

    params = {
        "W": [init(keys[0], (in_feats, num_head * n_hidden)),
              init(keys[1], (n_hidden, num_head * n_hidden))],
        "attn_l": [init(keys[2], (num_head, n_hidden)),
                   init(keys[3], (num_head, n_hidden))],
        "attn_r": [init(keys[4], (num_head, n_hidden)),
                   init(keys[5], (num_head, n_hidden))],
        "bias": [init(keys[6], (num_head, n_hidden), 0.05),
                 init(keys[7], (num_head, n_hidden), 0.05)],
        "Wc": init(keys[8], (n_hidden, n_classes)),
        "bc": init(keys[9], (1, n_classes)),
    }

    x = init(keys[10], (N_src0, in_feats), scale=1.0)

    # dense int8 adjacency masks for the two MFG blocks (self-loops => no zero in-degree)
    mask0 = jnp.logical_or(jax.random.uniform(keys[11], (N_dst0, N_src0)) < 0.4,
                           jnp.eye(N_dst0, N_src0, dtype=bool)).astype(jnp.int8)
    mask1 = jnp.logical_or(jax.random.uniform(keys[12], (N_dst1, N_dst0)) < 0.4,
                           jnp.eye(N_dst1, N_dst0, dtype=bool)).astype(jnp.int8)

    fwd = jax.jit(gat_forward)
    out = fwd(params, [mask0, mask1], x)
    out = jax.block_until_ready(out)
    assert out.shape == (N_dst1, n_classes)
    assert bool(jnp.all(jnp.isfinite(out)))
    assert bool(jnp.allclose(out.sum(axis=1), 1.0, atol=1e-5))   # softmax rows
    print("KERNEL_OK")
</pallas_src>

<mosaic_0001>
module attributes {stable_mosaic.version = 11 : i64} {
  func.func @_gatconv_kernel(%arg0: i32, %arg1: memref<1x16x16xf32, #tpu.memory_space<vmem>>, %arg2: memref<16x256xbf16, #tpu.memory_space<vmem>>, %arg3: memref<8x16xbf16, #tpu.memory_space<vmem>>, %arg4: memref<16x8xbf16, #tpu.memory_space<vmem>>, %arg5: memref<1x256xf32, #tpu.memory_space<vmem>>, %arg6: memref<12x16xi8, #tpu.memory_space<vmem>>, %arg7: memref<1x12x256xf32, #tpu.memory_space<vmem>>) attributes {dimension_semantics = [#tpu.dimension_semantics<parallel>], iteration_bounds = array<i64: 1>, scalar_prefetch = 0 : i64, scratch_operands = 0 : i64, tpu.core_type = #tpu.core_type<tc>, window_params = [{transform_indices = @transform_0, window_bounds = array<i64: 1, 16, 16>}, {pipeline_mode = #tpu.pipeline_mode<synchronous>, transform_indices = @transform_1, window_bounds = array<i64: 16, 256>}, {pipeline_mode = #tpu.pipeline_mode<synchronous>, transform_indices = @transform_2, window_bounds = array<i64: 8, 16>}, {pipeline_mode = #tpu.pipeline_mode<synchronous>, transform_indices = @transform_3, window_bounds = array<i64: 16, 8>}, {pipeline_mode = #tpu.pipeline_mode<synchronous>, transform_indices = @transform_4, window_bounds = array<i64: 1, 256>}, {pipeline_mode = #tpu.pipeline_mode<synchronous>, transform_indices = @transform_5, window_bounds = array<i64: 12, 16>}, {transform_indices = @transform_6, window_bounds = array<i64: 1, 12, 256>}]} {
    %c0 = arith.constant 0 : index
    %c0_0 = arith.constant 0 : index
    %c0_1 = arith.constant 0 : index
    %0 = vector.load %arg1[%c0, %c0_0, %c0_1] : memref<1x16x16xf32, #tpu.memory_space<vmem>>, vector<1x16x16xf32>
    %1 = vector.shape_cast %0 : vector<1x16x16xf32> to vector<16x16xf32>
    %2 = arith.truncf %1 : vector<16x16xf32> to vector<16x16xbf16>
    %3 = vector.extract_strided_slice %2 {offsets = [0, 0], sizes = [12, 16], strides = [1, 1]} : vector<16x16xbf16> to vector<12x16xbf16>
    %c0_2 = arith.constant 0 : index
    %c0_3 = arith.constant 0 : index
    %4 = vector.load %arg2[%c0_2, %c0_3] : memref<16x256xbf16, #tpu.memory_space<vmem>>, vector<16x256xbf16>
    %cst = arith.constant dense<0.000000e+00> : vector<16x256xf32>
    %5 = tpu.matmul %2, %4, %cst {dimension_numbers = #tpu.dot_dimension_numbers<[1], [0], [0], [1], [0, 0, 1, 1], [], []>} : vector<16x16xbf16>, vector<16x256xbf16>, vector<16x256xf32> -> vector<16x256xf32>
    %c0_4 = arith.constant 0 : index
    %c0_5 = arith.constant 0 : index
    %6 = vector.load %arg3[%c0_4, %c0_5] : memref<8x16xbf16, #tpu.memory_space<vmem>>, vector<8x16xbf16>
    %cst_6 = arith.constant dense<0.000000e+00> : vector<8x16xf32>
    %7 = tpu.matmul %6, %2, %cst_6 {dimension_numbers = #tpu.dot_dimension_numbers<[1], [1], [0], [0], [0, 0, 1, 0], [], []>} : vector<8x16xbf16>, vector<16x16xbf16>, vector<8x16xf32> -> vector<8x16xf32>
    %c0_7 = arith.constant 0 : index
    %c0_8 = arith.constant 0 : index
    %8 = vector.load %arg4[%c0_7, %c0_8] : memref<16x8xbf16, #tpu.memory_space<vmem>>, vector<16x8xbf16>
    %cst_9 = arith.constant dense<0.000000e+00> : vector<12x8xf32>
    %9 = tpu.matmul %3, %8, %cst_9 {dimension_numbers = #tpu.dot_dimension_numbers<[1], [0], [0], [1], [0, 0, 1, 1], [], []>} : vector<12x16xbf16>, vector<16x8xbf16>, vector<12x8xf32> -> vector<12x8xf32>
    %c0_10 = arith.constant 0 : index
    %c0_11 = arith.constant 0 : index
    %10 = vector.load %arg6[%c0_10, %c0_11] : memref<12x16xi8, #tpu.memory_space<vmem>>, vector<12x16xi8>
    %11 = arith.sitofp %10 : vector<12x16xi8> to vector<12x16xf32>
    %cst_12 = arith.constant 0.000000e+00 : f32
    %12 = vector.broadcast %cst_12 : f32 to vector<12x16xf32>
    %13 = arith.cmpf ogt, %11, %12 : vector<12x16xf32>
    %14 = arith.truncf %5 : vector<16x256xf32> to vector<16x256xbf16>
    %15 = vector.extract_strided_slice %9 {offsets = [0, 0], sizes = [12, 1], strides = [1, 1]} : vector<12x8xf32> to vector<12x1xf32>
    %16 = vector.extract_strided_slice %7 {offsets = [0, 0], sizes = [1, 16], strides = [1, 1]} : vector<8x16xf32> to vector<1x16xf32>
    %17 = vector.broadcast %15 : vector<12x1xf32> to vector<12x16xf32>
    %18 = vector.broadcast %16 : vector<1x16xf32> to vector<12x16xf32>
    %19 = arith.addf %17, %18 : vector<12x16xf32>
    %cst_13 = arith.constant 0.000000e+00 : f32
    %20 = vector.broadcast %cst_13 : f32 to vector<12x16xf32>
    %21 = arith.cmpf ogt, %19, %20 : vector<12x16xf32>
    %cst_14 = arith.constant 2.000000e-01 : f32
    %22 = vector.broadcast %cst_14 : f32 to vector<12x16xf32>
    %23 = arith.mulf %22, %19 : vector<12x16xf32>
    %24 = arith.select %21, %19, %23 : vector<12x16xi1>, vector<12x16xf32>
    %cst_15 = arith.constant -1.000000e+30 : f32
    %25 = vector.broadcast %cst_15 : f32 to vector<12x16xf32>
    %26 = arith.select %13, %24, %25 : vector<12x16xi1>, vector<12x16xf32>
    %cst_16 = arith.constant dense<0xFF800000> : vector<12xf32>
    %27 = vector.multi_reduction <maximumf>, %26, %cst_16 [1] : vector<12x16xf32> to vector<12xf32>
    %28 = vector.shape_cast %27 : vector<12xf32> to vector<12x1xf32>
    %29 = vector.broadcast %28 : vector<12x1xf32> to vector<12x16xf32>
    %30 = arith.subf %26, %29 : vector<12x16xf32>
    %31 = math.exp %30 : vector<12x16xf32>
    %cst_17 = arith.constant dense<0.000000e+00> : vector<12xf32>
    %32 = vector.multi_reduction <add>, %31, %cst_17 [1] : vector<12x16xf32> to vector<12xf32>
    %33 = vector.shape_cast %32 : vector<12xf32> to vector<12x1xf32>
    %34 = tpu.reciprocal %33 {approx = true} : vector<12x1xf32> -> vector<12x1xf32>
    %35 = vector.broadcast %34 : vector<12x1xf32> to vector<12x16xf32>
    %36 = arith.mulf %31, %35 : vector<12x16xf32>
    %37 = arith.truncf %36 : vector<12x16xf32> to vector<12x16xbf16>
    %38 = vector.extract_strided_slice %14 {offsets = [0, 0], sizes = [16, 32], strides = [1, 1]} : vector<16x256xbf16> to vector<16x32xbf16>
    %cst_18 = arith.constant dense<0.000000e+00> : vector<12x32xf32>
    %39 = tpu.matmul %37, %38, %cst_18 {dimension_numbers = #tpu.dot_dimension_numbers<[1], [0], [0], [1], [0, 0, 1, 1], [], []>} : vector<12x16xbf16>, vector<16x32xbf16>, vector<12x32xf32> -> vector<12x32xf32>
    %40 = vector.extract_strided_slice %9 {offsets = [0, 1], sizes = [12, 1], strides = [1, 1]} : vector<12x8xf32> to vector<12x1xf32>
    %41 = vector.extract_strided_slice %7 {offsets = [1, 0], sizes = [1, 16], strides = [1, 1]} : vector<8x16xf32> to vector<1x16xf32>
    %42 = vector.broadcast %40 : vector<12x1xf32> to vector<12x16xf32>
    %43 = vector.broadcast %41 : vector<1x16xf32> to vector<12x16xf32>
    %44 = arith.addf %42, %43 : vector<12x16xf32>
    %cst_19 = arith.constant 0.000000e+00 : f32
    %45 = vector.broadcast %cst_19 : f32 to vector<12x16xf32>
    %46 = arith.cmpf ogt, %44, %45 : vector<12x16xf32>
    %cst_20 = arith.constant 2.000000e-01 : f32
    %47 = vector.broadcast %cst_20 : f32 to vector<12x16xf32>
    %48 = arith.mulf %47, %44 : vector<12x16xf32>
    %49 = arith.select %46, %44, %48 : vector<12x16xi1>, vector<12x16xf32>
    %cst_21 = arith.constant -1.000000e+30 : f32
    %50 = vector.broadcast %cst_21 : f32 to vector<12x16xf32>
    %51 = arith.select %13, %49, %50 : vector<12x16xi1>, vector<12x16xf32>
    %cst_22 = arith.constant dense<0xFF800000> : vector<12xf32>
    %52 = vector.multi_reduction <maximumf>, %51, %cst_22 [1] : vector<12x16xf32> to vector<12xf32>
    %53 = vector.shape_cast %52 : vector<12xf32> to vector<12x1xf32>
    %54 = vector.broadcast %53 : vector<12x1xf32> to vector<12x16xf32>
    %55 = arith.subf %51, %54 : vector<12x16xf32>
    %56 = math.exp %55 : vector<12x16xf32>
    %cst_23 = arith.constant dense<0.000000e+00> : vector<12xf32>
    %57 = vector.multi_reduction <add>, %56, %cst_23 [1] : vector<12x16xf32> to vector<12xf32>
    %58 = vector.shape_cast %57 : vector<12xf32> to vector<12x1xf32>
    %59 = tpu.reciprocal %58 {approx = true} : vector<12x1xf32> -> vector<12x1xf32>
    %60 = vector.broadcast %59 : vector<12x1xf32> to vector<12x16xf32>
    %61 = arith.mulf %56, %60 : vector<12x16xf32>
    %62 = arith.truncf %61 : vector<12x16xf32> to vector<12x16xbf16>
    %63 = vector.extract_strided_slice %14 {offsets = [0, 32], sizes = [16, 32], strides = [1, 1]} : vector<16x256xbf16> to vector<16x32xbf16>
    %cst_24 = arith.constant dense<0.000000e+00> : vector<12x32xf32>
    %64 = tpu.matmul %62, %63, %cst_24 {dimension_numbers = #tpu.dot_dimension_numbers<[1], [0], [0], [1], [0, 0, 1, 1], [], []>} : vector<12x16xbf16>, vector<16x32xbf16>, vector<12x32xf32> -> vector<12x32xf32>
    %65 = vector.extract_strided_slice %9 {offsets = [0, 2], sizes = [12, 1], strides = [1, 1]} : vector<12x8xf32> to vector<12x1xf32>
    %66 = vector.extract_strided_slice %7 {offsets = [2, 0], sizes = [1, 16], strides = [1, 1]} : vector<8x16xf32> to vector<1x16xf32>
    %67 = vector.broadcast %65 : vector<12x1xf32> to vector<12x16xf32>
    %68 = vector.broadcast %66 : vector<1x16xf32> to vector<12x16xf32>
    %69 = arith.addf %67, %68 : vector<12x16xf32>
    %cst_25 = arith.constant 0.000000e+00 : f32
    %70 = vector.broadcast %cst_25 : f32 to vector<12x16xf32>
    %71 = arith.cmpf ogt, %69, %70 : vector<12x16xf32>
    %cst_26 = arith.constant 2.000000e-01 : f32
    %72 = vector.broadcast %cst_26 : f32 to vector<12x16xf32>
    %73 = arith.mulf %72, %69 : vector<12x16xf32>
    %74 = arith.select %71, %69, %73 : vector<12x16xi1>, vector<12x16xf32>
    %cst_27 = arith.constant -1.000000e+30 : f32
    %75 = vector.broadcast %cst_27 : f32 to vector<12x16xf32>
    %76 = arith.select %13, %74, %75 : vector<12x16xi1>, vector<12x16xf32>
    %cst_28 = arith.constant dense<0xFF800000> : vector<12xf32>
    %77 = vector.multi_reduction <maximumf>, %76, %cst_28 [1] : vector<12x16xf32> to vector<12xf32>
    %78 = vector.shape_cast %77 : vector<12xf32> to vector<12x1xf32>
    %79 = vector.broadcast %78 : vector<12x1xf32> to vector<12x16xf32>
    %80 = arith.subf %76, %79 : vector<12x16xf32>
    %81 = math.exp %80 : vector<12x16xf32>
    %cst_29 = arith.constant dense<0.000000e+00> : vector<12xf32>
    %82 = vector.multi_reduction <add>, %81, %cst_29 [1] : vector<12x16xf32> to vector<12xf32>
    %83 = vector.shape_cast %82 : vector<12xf32> to vector<12x1xf32>
    %84 = tpu.reciprocal %83 {approx = true} : vector<12x1xf32> -> vector<12x1xf32>
    %85 = vector.broadcast %84 : vector<12x1xf32> to vector<12x16xf32>
    %86 = arith.mulf %81, %85 : vector<12x16xf32>
    %87 = arith.truncf %86 : vector<12x16xf32> to vector<12x16xbf16>
    %88 = vector.extract_strided_slice %14 {offsets = [0, 64], sizes = [16, 32], strides = [1, 1]} : vector<16x256xbf16> to vector<16x32xbf16>
    %cst_30 = arith.constant dense<0.000000e+00> : vector<12x32xf32>
    %89 = tpu.matmul %87, %88, %cst_30 {dimension_numbers = #tpu.dot_dimension_numbers<[1], [0], [0], [1], [0, 0, 1, 1], [], []>} : vector<12x16xbf16>, vector<16x32xbf16>, vector<12x32xf32> -> vector<12x32xf32>
    %90 = vector.extract_strided_slice %9 {offsets = [0, 3], sizes = [12, 1], strides = [1, 1]} : vector<12x8xf32> to vector<12x1xf32>
    %91 = vector.extract_strided_slice %7 {offsets = [3, 0], sizes = [1, 16], strides = [1, 1]} : vector<8x16xf32> to vector<1x16xf32>
    %92 = vector.broadcast %90 : vector<12x1xf32> to vector<12x16xf32>
    %93 = vector.broadcast %91 : vector<1x16xf32> to vector<12x16xf32>
    %94 = arith.addf %92, %93 : vector<12x16xf32>
    %cst_31 = arith.constant 0.000000e+00 : f32
    %95 = vector.broadcast %cst_31 : f32 to vector<12x16xf32>
    %96 = arith.cmpf ogt, %94, %95 : vector<12x16xf32>
    %cst_32 = arith.constant 2.000000e-01 : f32
    %97 = vector.broadcast %cst_32 : f32 to vector<12x16xf32>
    %98 = arith.mulf %97, %94 : vector<12x16xf32>
    %99 = arith.select %96, %94, %98 : vector<12x16xi1>, vector<12x16xf32>
    %cst_33 = arith.constant -1.000000e+30 : f32
    %100 = vector.broadcast %cst_33 : f32 to vector<12x16xf32>
    %101 = arith.select %13, %99, %100 : vector<12x16xi1>, vector<12x16xf32>
    %cst_34 = arith.constant dense<0xFF800000> : vector<12xf32>
    %102 = vector.multi_reduction <maximumf>, %101, %cst_34 [1] : vector<12x16xf32> to vector<12xf32>
    %103 = vector.shape_cast %102 : vector<12xf32> to vector<12x1xf32>
    %104 = vector.broadcast %103 : vector<12x1xf32> to vector<12x16xf32>
    %105 = arith.subf %101, %104 : vector<12x16xf32>
    %106 = math.exp %105 : vector<12x16xf32>
    %cst_35 = arith.constant dense<0.000000e+00> : vector<12xf32>
    %107 = vector.multi_reduction <add>, %106, %cst_35 [1] : vector<12x16xf32> to vector<12xf32>
    %108 = vector.shape_cast %107 : vector<12xf32> to vector<12x1xf32>
    %109 = tpu.reciprocal %108 {approx = true} : vector<12x1xf32> -> vector<12x1xf32>
    %110 = vector.broadcast %109 : vector<12x1xf32> to vector<12x16xf32>
    %111 = arith.mulf %106, %110 : vector<12x16xf32>
    %112 = arith.truncf %111 : vector<12x16xf32> to vector<12x16xbf16>
    %113 = vector.extract_strided_slice %14 {offsets = [0, 96], sizes = [16, 32], strides = [1, 1]} : vector<16x256xbf16> to vector<16x32xbf16>
    %cst_36 = arith.constant dense<0.000000e+00> : vector<12x32xf32>
    %114 = tpu.matmul %112, %113, %cst_36 {dimension_numbers = #tpu.dot_dimension_numbers<[1], [0], [0], [1], [0, 0, 1, 1], [], []>} : vector<12x16xbf16>, vector<16x32xbf16>, vector<12x32xf32> -> vector<12x32xf32>
    %115 = vector.extract_strided_slice %9 {offsets = [0, 4], sizes = [12, 1], strides = [1, 1]} : vector<12x8xf32> to vector<12x1xf32>
    %116 = vector.extract_strided_slice %7 {offsets = [4, 0], sizes = [1, 16], strides = [1, 1]} : vector<8x16xf32> to vector<1x16xf32>
    %117 = vector.broadcast %115 : vector<12x1xf32> to vector<12x16xf32>
    %118 = vector.broadcast %116 : vector<1x16xf32> to vector<12x16xf32>
    %119 = arith.addf %117, %118 : vector<12x16xf32>
    %cst_37 = arith.constant 0.000000e+00 : f32
    %120 = vector.broadcast %cst_37 : f32 to vector<12x16xf32>
    %121 = arith.cmpf ogt, %119, %120 : vector<12x16xf32>
    %cst_38 = arith.constant 2.000000e-01 : f32
    %122 = vector.broadcast %cst_38 : f32 to vector<12x16xf32>
    %123 = arith.mulf %122, %119 : vector<12x16xf32>
    %124 = arith.select %121, %119, %123 : vector<12x16xi1>, vector<12x16xf32>
    %cst_39 = arith.constant -1.000000e+30 : f32
    %125 = vector.broadcast %cst_39 : f32 to vector<12x16xf32>
    %126 = arith.select %13, %124, %125 : vector<12x16xi1>, vector<12x16xf32>
    %cst_40 = arith.constant dense<0xFF800000> : vector<12xf32>
    %127 = vector.multi_reduction <maximumf>, %126, %cst_40 [1] : vector<12x16xf32> to vector<12xf32>
    %128 = vector.shape_cast %127 : vector<12xf32> to vector<12x1xf32>
    %129 = vector.broadcast %128 : vector<12x1xf32> to vector<12x16xf32>
    %130 = arith.subf %126, %129 : vector<12x16xf32>
    %131 = math.exp %130 : vector<12x16xf32>
    %cst_41 = arith.constant dense<0.000000e+00> : vector<12xf32>
    %132 = vector.multi_reduction <add>, %131, %cst_41 [1] : vector<12x16xf32> to vector<12xf32>
    %133 = vector.shape_cast %132 : vector<12xf32> to vector<12x1xf32>
    %134 = tpu.reciprocal %133 {approx = true} : vector<12x1xf32> -> vector<12x1xf32>
    %135 = vector.broadcast %134 : vector<12x1xf32> to vector<12x16xf32>
    %136 = arith.mulf %131, %135 : vector<12x16xf32>
    %137 = arith.truncf %136 : vector<12x16xf32> to vector<12x16xbf16>
    %138 = vector.extract_strided_slice %14 {offsets = [0, 128], sizes = [16, 32], strides = [1, 1]} : vector<16x256xbf16> to vector<16x32xbf16>
    %cst_42 = arith.constant dense<0.000000e+00> : vector<12x32xf32>
    %139 = tpu.matmul %137, %138, %cst_42 {dimension_numbers = #tpu.dot_dimension_numbers<[1], [0], [0], [1], [0, 0, 1, 1], [], []>} : vector<12x16xbf16>, vector<16x32xbf16>, vector<12x32xf32> -> vector<12x32xf32>
    %140 = vector.extract_strided_slice %9 {offsets = [0, 5], sizes = [12, 1], strides = [1, 1]} : vector<12x8xf32> to vector<12x1xf32>
    %141 = vector.extract_strided_slice %7 {offsets = [5, 0], sizes = [1, 16], strides = [1, 1]} : vector<8x16xf32> to vector<1x16xf32>
    %142 = vector.broadcast %140 : vector<12x1xf32> to vector<12x16xf32>
    %143 = vector.broadcast %141 : vector<1x16xf32> to vector<12x16xf32>
    %144 = arith.addf %142, %143 : vector<12x16xf32>
    %cst_43 = arith.constant 0.000000e+00 : f32
    %145 = vector.broadcast %cst_43 : f32 to vector<12x16xf32>
    %146 = arith.cmpf ogt, %144, %145 : vector<12x16xf32>
    %cst_44 = arith.constant 2.000000e-01 : f32
    %147 = vector.broadcast %cst_44 : f32 to vector<12x16xf32>
    %148 = arith.mulf %147, %144 : vector<12x16xf32>
    %149 = arith.select %146, %144, %148 : vector<12x16xi1>, vector<12x16xf32>
    %cst_45 = arith.constant -1.000000e+30 : f32
    %150 = vector.broadcast %cst_45 : f32 to vector<12x16xf32>
    %151 = arith.select %13, %149, %150 : vector<12x16xi1>, vector<12x16xf32>
    %cst_46 = arith.constant dense<0xFF800000> : vector<12xf32>
    %152 = vector.multi_reduction <maximumf>, %151, %cst_46 [1] : vector<12x16xf32> to vector<12xf32>
    %153 = vector.shape_cast %152 : vector<12xf32> to vector<12x1xf32>
    %154 = vector.broadcast %153 : vector<12x1xf32> to vector<12x16xf32>
    %155 = arith.subf %151, %154 : vector<12x16xf32>
    %156 = math.exp %155 : vector<12x16xf32>
    %cst_47 = arith.constant dense<0.000000e+00> : vector<12xf32>
    %157 = vector.multi_reduction <add>, %156, %cst_47 [1] : vector<12x16xf32> to vector<12xf32>
    %158 = vector.shape_cast %157 : vector<12xf32> to vector<12x1xf32>
    %159 = tpu.reciprocal %158 {approx = true} : vector<12x1xf32> -> vector<12x1xf32>
    %160 = vector.broadcast %159 : vector<12x1xf32> to vector<12x16xf32>
    %161 = arith.mulf %156, %160 : vector<12x16xf32>
    %162 = arith.truncf %161 : vector<12x16xf32> to vector<12x16xbf16>
    %163 = vector.extract_strided_slice %14 {offsets = [0, 160], sizes = [16, 32], strides = [1, 1]} : vector<16x256xbf16> to vector<16x32xbf16>
    %cst_48 = arith.constant dense<0.000000e+00> : vector<12x32xf32>
    %164 = tpu.matmul %162, %163, %cst_48 {dimension_numbers = #tpu.dot_dimension_numbers<[1], [0], [0], [1], [0, 0, 1, 1], [], []>} : vector<12x16xbf16>, vector<16x32xbf16>, vector<12x32xf32> -> vector<12x32xf32>
    %165 = vector.extract_strided_slice %9 {offsets = [0, 6], sizes = [12, 1], strides = [1, 1]} : vector<12x8xf32> to vector<12x1xf32>
    %166 = vector.extract_strided_slice %7 {offsets = [6, 0], sizes = [1, 16], strides = [1, 1]} : vector<8x16xf32> to vector<1x16xf32>
    %167 = vector.broadcast %165 : vector<12x1xf32> to vector<12x16xf32>
    %168 = vector.broadcast %166 : vector<1x16xf32> to vector<12x16xf32>
    %169 = arith.addf %167, %168 : vector<12x16xf32>
    %cst_49 = arith.constant 0.000000e+00 : f32
    %170 = vector.broadcast %cst_49 : f32 to vector<12x16xf32>
    %171 = arith.cmpf ogt, %169, %170 : vector<12x16xf32>
    %cst_50 = arith.constant 2.000000e-01 : f32
    %172 = vector.broadcast %cst_50 : f32 to vector<12x16xf32>
    %173 = arith.mulf %172, %169 : vector<12x16xf32>
    %174 = arith.select %171, %169, %173 : vector<12x16xi1>, vector<12x16xf32>
    %cst_51 = arith.constant -1.000000e+30 : f32
    %175 = vector.broadcast %cst_51 : f32 to vector<12x16xf32>
    %176 = arith.select %13, %174, %175 : vector<12x16xi1>, vector<12x16xf32>
    %cst_52 = arith.constant dense<0xFF800000> : vector<12xf32>
    %177 = vector.multi_reduction <maximumf>, %176, %cst_52 [1] : vector<12x16xf32> to vector<12xf32>
    %178 = vector.shape_cast %177 : vector<12xf32> to vector<12x1xf32>
    %179 = vector.broadcast %178 : vector<12x1xf32> to vector<12x16xf32>
    %180 = arith.subf %176, %179 : vector<12x16xf32>
    %181 = math.exp %180 : vector<12x16xf32>
    %cst_53 = arith.constant dense<0.000000e+00> : vector<12xf32>
    %182 = vector.multi_reduction <add>, %181, %cst_53 [1] : vector<12x16xf32> to vector<12xf32>
    %183 = vector.shape_cast %182 : vector<12xf32> to vector<12x1xf32>
    %184 = tpu.reciprocal %183 {approx = true} : vector<12x1xf32> -> vector<12x1xf32>
    %185 = vector.broadcast %184 : vector<12x1xf32> to vector<12x16xf32>
    %186 = arith.mulf %181, %185 : vector<12x16xf32>
    %187 = arith.truncf %186 : vector<12x16xf32> to vector<12x16xbf16>
    %188 = vector.extract_strided_slice %14 {offsets = [0, 192], sizes = [16, 32], strides = [1, 1]} : vector<16x256xbf16> to vector<16x32xbf16>
    %cst_54 = arith.constant dense<0.000000e+00> : vector<12x32xf32>
    %189 = tpu.matmul %187, %188, %cst_54 {dimension_numbers = #tpu.dot_dimension_numbers<[1], [0], [0], [1], [0, 0, 1, 1], [], []>} : vector<12x16xbf16>, vector<16x32xbf16>, vector<12x32xf32> -> vector<12x32xf32>
    %190 = vector.extract_strided_slice %9 {offsets = [0, 7], sizes = [12, 1], strides = [1, 1]} : vector<12x8xf32> to vector<12x1xf32>
    %191 = vector.extract_strided_slice %7 {offsets = [7, 0], sizes = [1, 16], strides = [1, 1]} : vector<8x16xf32> to vector<1x16xf32>
    %192 = vector.broadcast %190 : vector<12x1xf32> to vector<12x16xf32>
    %193 = vector.broadcast %191 : vector<1x16xf32> to vector<12x16xf32>
    %194 = arith.addf %192, %193 : vector<12x16xf32>
    %cst_55 = arith.constant 0.000000e+00 : f32
    %195 = vector.broadcast %cst_55 : f32 to vector<12x16xf32>
    %196 = arith.cmpf ogt, %194, %195 : vector<12x16xf32>
    %cst_56 = arith.constant 2.000000e-01 : f32
    %197 = vector.broadcast %cst_56 : f32 to vector<12x16xf32>
    %198 = arith.mulf %197, %194 : vector<12x16xf32>
    %199 = arith.select %196, %194, %198 : vector<12x16xi1>, vector<12x16xf32>
    %cst_57 = arith.constant -1.000000e+30 : f32
    %200 = vector.broadcast %cst_57 : f32 to vector<12x16xf32>
    %201 = arith.select %13, %199, %200 : vector<12x16xi1>, vector<12x16xf32>
    %cst_58 = arith.constant dense<0xFF800000> : vector<12xf32>
    %202 = vector.multi_reduction <maximumf>, %201, %cst_58 [1] : vector<12x16xf32> to vector<12xf32>
    %203 = vector.shape_cast %202 : vector<12xf32> to vector<12x1xf32>
    %204 = vector.broadcast %203 : vector<12x1xf32> to vector<12x16xf32>
    %205 = arith.subf %201, %204 : vector<12x16xf32>
    %206 = math.exp %205 : vector<12x16xf32>
    %cst_59 = arith.constant dense<0.000000e+00> : vector<12xf32>
    %207 = vector.multi_reduction <add>, %206, %cst_59 [1] : vector<12x16xf32> to vector<12xf32>
    %208 = vector.shape_cast %207 : vector<12xf32> to vector<12x1xf32>
    %209 = tpu.reciprocal %208 {approx = true} : vector<12x1xf32> -> vector<12x1xf32>
    %210 = vector.broadcast %209 : vector<12x1xf32> to vector<12x16xf32>
    %211 = arith.mulf %206, %210 : vector<12x16xf32>
    %212 = arith.truncf %211 : vector<12x16xf32> to vector<12x16xbf16>
    %213 = vector.extract_strided_slice %14 {offsets = [0, 224], sizes = [16, 32], strides = [1, 1]} : vector<16x256xbf16> to vector<16x32xbf16>
    %cst_60 = arith.constant dense<0.000000e+00> : vector<12x32xf32>
    %214 = tpu.matmul %212, %213, %cst_60 {dimension_numbers = #tpu.dot_dimension_numbers<[1], [0], [0], [1], [0, 0, 1, 1], [], []>} : vector<12x16xbf16>, vector<16x32xbf16>, vector<12x32xf32> -> vector<12x32xf32>
    %215 = tpu.concatenate %39, %64, %89, %114, %139, %164, %189, %214 in 1 : vector<12x32xf32>, vector<12x32xf32>, vector<12x32xf32>, vector<12x32xf32>, vector<12x32xf32>, vector<12x32xf32>, vector<12x32xf32>, vector<12x32xf32> -> vector<12x256xf32>
    %c0_61 = arith.constant 0 : index
    %c0_62 = arith.constant 0 : index
    %216 = vector.load %arg5[%c0_61, %c0_62] : memref<1x256xf32, #tpu.memory_space<vmem>>, vector<1x256xf32>
    %217 = vector.broadcast %216 : vector<1x256xf32> to vector<12x256xf32>
    %218 = arith.addf %215, %217 : vector<12x256xf32>
    %cst_63 = arith.constant 0.000000e+00 : f32
    %219 = vector.broadcast %cst_63 : f32 to vector<12x256xf32>
    %220 = arith.cmpf ogt, %218, %219 : vector<12x256xf32>
    %221 = math.exp %218 : vector<12x256xf32>
    %cst_64 = arith.constant 1.000000e+00 : f32
    %222 = vector.broadcast %cst_64 : f32 to vector<12x256xf32>
    %223 = arith.subf %221, %222 : vector<12x256xf32>
    %cst_65 = arith.constant 1.67326319 : f32
    %224 = vector.broadcast %cst_65 : f32 to vector<12x256xf32>
    %225 = arith.mulf %224, %223 : vector<12x256xf32>
    %226 = arith.select %220, %218, %225 : vector<12x256xi1>, vector<12x256xf32>
    %cst_66 = arith.constant 1.05070102 : f32
    %227 = vector.broadcast %cst_66 : f32 to vector<12x256xf32>
    %228 = arith.mulf %227, %226 : vector<12x256xf32>
    %c0_67 = arith.constant 0 : index
    %c0_68 = arith.constant 0 : index
    %c0_69 = arith.constant 0 : index
    %229 = vector.load %arg7[%c0_67, %c0_68, %c0_69] : memref<1x12x256xf32, #tpu.memory_space<vmem>>, vector<1x12x256xf32>
    %230 = vector.shape_cast %229 : vector<1x12x256xf32> to vector<12x256xf32>
    %231 = vector.shape_cast %228 : vector<12x256xf32> to vector<1x12x256xf32>
    tpu.vector_store %arg7[%c0_67, %c0_68, %c0_69], %231 {strides = array<i32>} : memref<1x12x256xf32, #tpu.memory_space<vmem>>, vector<1x12x256xf32>,
    return
  }
  func.func @transform_0(%arg0: i32) -> (i32, i32, i32) {
    %c0_i32 = arith.constant 0 : i32
    %c0_i32_0 = arith.constant 0 : i32
    %c0_i32_1 = arith.constant 0 : i32
    return %arg0, %c0_i32, %c0_i32_0 : i32, i32, i32
  }
  func.func @transform_1(%arg0: i32) -> (i32, i32) {
    %c0_i32 = arith.constant 0 : i32
    %c0_i32_0 = arith.constant 0 : i32
    %c0_i32_1 = arith.constant 0 : i32
    return %c0_i32, %c0_i32_0 : i32, i32
  }
  func.func @transform_2(%arg0: i32) -> (i32, i32) {
    %c0_i32 = arith.constant 0 : i32
    %c0_i32_0 = arith.constant 0 : i32
    %c0_i32_1 = arith.constant 0 : i32
    return %c0_i32, %c0_i32_0 : i32, i32
  }
  func.func @transform_3(%arg0: i32) -> (i32, i32) {
    %c0_i32 = arith.constant 0 : i32
    %c0_i32_0 = arith.constant 0 : i32
    %c0_i32_1 = arith.constant 0 : i32
    return %c0_i32, %c0_i32_0 : i32, i32
  }
  func.func @transform_4(%arg0: i32) -> (i32, i32) {
    %c0_i32 = arith.constant 0 : i32
    %c0_i32_0 = arith.constant 0 : i32
    %c0_i32_1 = arith.constant 0 : i32
    return %c0_i32, %c0_i32_0 : i32, i32
  }
  func.func @transform_5(%arg0: i32) -> (i32, i32) {
    %c0_i32 = arith.constant 0 : i32
    %c0_i32_0 = arith.constant 0 : i32
    %c0_i32_1 = arith.constant 0 : i32
    return %c0_i32, %c0_i32_0 : i32, i32
  }
  func.func @transform_6(%arg0: i32) -> (i32, i32, i32) {
    %c0_i32 = arith.constant 0 : i32
    %c0_i32_0 = arith.constant 0 : i32
    %c0_i32_1 = arith.constant 0 : i32
    return %arg0, %c0_i32, %c0_i32_0 : i32, i32, i32
  }
}

module attributes {stable_mosaic.version = 11 : i64} {
  func.func @_gatconv_kernel(%arg0: i32, %arg1: memref<1x12x32xf32, #tpu.memory_space<vmem>>, %arg2: memref<32x256xbf16, #tpu.memory_space<vmem>>, %arg3: memref<8x32xbf16, #tpu.memory_space<vmem>>, %arg4: memref<32x8xbf16, #tpu.memory_space<vmem>>, %arg5: memref<1x256xf32, #tpu.memory_space<vmem>>, %arg6: memref<8x12xi8, #tpu.memory_space<vmem>>, %arg7: memref<1x8x256xf32, #tpu.memory_space<vmem>>) attributes {dimension_semantics = [#tpu.dimension_semantics<parallel>], iteration_bounds = array<i64: 8>, scalar_prefetch = 0 : i64, scratch_operands = 0 : i64, tpu.core_type = #tpu.core_type<tc>, window_params = [{transform_indices = @transform_0, window_bounds = array<i64: 1, 12, 32>}, {pipeline_mode = #tpu.pipeline_mode<synchronous>, transform_indices = @transform_1, window_bounds = array<i64: 32, 256>}, {pipeline_mode = #tpu.pipeline_mode<synchronous>, transform_indices = @transform_2, window_bounds = array<i64: 8, 32>}, {pipeline_mode = #tpu.pipeline_mode<synchronous>, transform_indices = @transform_3, window_bounds = array<i64: 32, 8>}, {pipeline_mode = #tpu.pipeline_mode<synchronous>, transform_indices = @transform_4, window_bounds = array<i64: 1, 256>}, {pipeline_mode = #tpu.pipeline_mode<synchronous>, transform_indices = @transform_5, window_bounds = array<i64: 8, 12>}, {transform_indices = @transform_6, window_bounds = array<i64: 1, 8, 256>}]} {
    %c0 = arith.constant 0 : index
    %c0_0 = arith.constant 0 : index
    %c0_1 = arith.constant 0 : index
    %0 = vector.load %arg1[%c0, %c0_0, %c0_1] : memref<1x12x32xf32, #tpu.memory_space<vmem>>, vector<1x12x32xf32>
    %1 = vector.shape_cast %0 : vector<1x12x32xf32> to vector<12x32xf32>
    %2 = arith.truncf %1 : vector<12x32xf32> to vector<12x32xbf16>
    %3 = vector.extract_strided_slice %2 {offsets = [0, 0], sizes = [8, 32], strides = [1, 1]} : vector<12x32xbf16> to vector<8x32xbf16>
    %c0_2 = arith.constant 0 : index
    %c0_3 = arith.constant 0 : index
    %4 = vector.load %arg2[%c0_2, %c0_3] : memref<32x256xbf16, #tpu.memory_space<vmem>>, vector<32x256xbf16>
    %cst = arith.constant dense<0.000000e+00> : vector<12x256xf32>
    %5 = tpu.matmul %2, %4, %cst {dimension_numbers = #tpu.dot_dimension_numbers<[1], [0], [0], [1], [0, 0, 1, 1], [], []>} : vector<12x32xbf16>, vector<32x256xbf16>, vector<12x256xf32> -> vector<12x256xf32>
    %c0_4 = arith.constant 0 : index
    %c0_5 = arith.constant 0 : index
    %6 = vector.load %arg3[%c0_4, %c0_5] : memref<8x32xbf16, #tpu.memory_space<vmem>>, vector<8x32xbf16>
    %cst_6 = arith.constant dense<0.000000e+00> : vector<8x12xf32>
    %7 = tpu.matmul %6, %2, %cst_6 {dimension_numbers = #tpu.dot_dimension_numbers<[1], [1], [0], [0], [0, 0, 1, 0], [], []>} : vector<8x32xbf16>, vector<12x32xbf16>, vector<8x12xf32> -> vector<8x12xf32>
    %c0_7 = arith.constant 0 : index
    %c0_8 = arith.constant 0 : index
    %8 = vector.load %arg4[%c0_7, %c0_8] : memref<32x8xbf16, #tpu.memory_space<vmem>>, vector<32x8xbf16>
    %cst_9 = arith.constant dense<0.000000e+00> : vector<8x8xf32>
    %9 = tpu.matmul %3, %8, %cst_9 {dimension_numbers = #tpu.dot_dimension_numbers<[1], [0], [0], [1], [0, 0, 1, 1], [], []>} : vector<8x32xbf16>, vector<32x8xbf16>, vector<8x8xf32> -> vector<8x8xf32>
    %c0_10 = arith.constant 0 : index
    %c0_11 = arith.constant 0 : index
    %10 = vector.load %arg6[%c0_10, %c0_11] : memref<8x12xi8, #tpu.memory_space<vmem>>, vector<8x12xi8>
    %11 = arith.sitofp %10 : vector<8x12xi8> to vector<8x12xf32>
    %cst_12 = arith.constant 0.000000e+00 : f32
    %12 = vector.broadcast %cst_12 : f32 to vector<8x12xf32>
    %13 = arith.cmpf ogt, %11, %12 : vector<8x12xf32>
    %14 = arith.truncf %5 : vector<12x256xf32> to vector<12x256xbf16>
    %15 = vector.extract_strided_slice %9 {offsets = [0, 0], sizes = [8, 1], strides = [1, 1]} : vector<8x8xf32> to vector<8x1xf32>
    %16 = vector.extract_strided_slice %7 {offsets = [0, 0], sizes = [1, 12], strides = [1, 1]} : vector<8x12xf32> to vector<1x12xf32>
    %17 = vector.broadcast %15 : vector<8x1xf32> to vector<8x12xf32>
    %18 = vector.broadcast %16 : vector<1x12xf32> to vector<8x12xf32>
    %19 = arith.addf %17, %18 : vector<8x12xf32>
    %cst_13 = arith.constant 0.000000e+00 : f32
    %20 = vector.broadcast %cst_13 : f32 to vector<8x12xf32>
    %21 = arith.cmpf ogt, %19, %20 : vector<8x12xf32>
    %cst_14 = arith.constant 2.000000e-01 : f32
    %22 = vector.broadcast %cst_14 : f32 to vector<8x12xf32>
    %23 = arith.mulf %22, %19 : vector<8x12xf32>
    %24 = arith.select %21, %19, %23 : vector<8x12xi1>, vector<8x12xf32>
    %cst_15 = arith.constant -1.000000e+30 : f32
    %25 = vector.broadcast %cst_15 : f32 to vector<8x12xf32>
    %26 = arith.select %13, %24, %25 : vector<8x12xi1>, vector<8x12xf32>
    %cst_16 = arith.constant dense<0xFF800000> : vector<8xf32>
    %27 = vector.multi_reduction <maximumf>, %26, %cst_16 [1] : vector<8x12xf32> to vector<8xf32>
    %28 = vector.shape_cast %27 : vector<8xf32> to vector<8x1xf32>
    %29 = vector.broadcast %28 : vector<8x1xf32> to vector<8x12xf32>
    %30 = arith.subf %26, %29 : vector<8x12xf32>
    %31 = math.exp %30 : vector<8x12xf32>
    %cst_17 = arith.constant dense<0.000000e+00> : vector<8xf32>
    %32 = vector.multi_reduction <add>, %31, %cst_17 [1] : vector<8x12xf32> to vector<8xf32>
    %33 = vector.shape_cast %32 : vector<8xf32> to vector<8x1xf32>
    %34 = tpu.reciprocal %33 {approx = true} : vector<8x1xf32> -> vector<8x1xf32>
    %35 = vector.broadcast %34 : vector<8x1xf32> to vector<8x12xf32>
    %36 = arith.mulf %31, %35 : vector<8x12xf32>
    %37 = arith.truncf %36 : vector<8x12xf32> to vector<8x12xbf16>
    %38 = vector.extract_strided_slice %14 {offsets = [0, 0], sizes = [12, 32], strides = [1, 1]} : vector<12x256xbf16> to vector<12x32xbf16>
    %cst_18 = arith.constant dense<0.000000e+00> : vector<8x32xf32>
    %39 = tpu.matmul %37, %38, %cst_18 {dimension_numbers = #tpu.dot_dimension_numbers<[1], [0], [0], [1], [0, 0, 1, 1], [], []>} : vector<8x12xbf16>, vector<12x32xbf16>, vector<8x32xf32> -> vector<8x32xf32>
    %40 = vector.extract_strided_slice %9 {offsets = [0, 1], sizes = [8, 1], strides = [1, 1]} : vector<8x8xf32> to vector<8x1xf32>
    %41 = vector.extract_strided_slice %7 {offsets = [1, 0], sizes = [1, 12], strides = [1, 1]} : vector<8x12xf32> to vector<1x12xf32>
    %42 = vector.broadcast %40 : vector<8x1xf32> to vector<8x12xf32>
    %43 = vector.broadcast %41 : vector<1x12xf32> to vector<8x12xf32>
    %44 = arith.addf %42, %43 : vector<8x12xf32>
    %cst_19 = arith.constant 0.000000e+00 : f32
    %45 = vector.broadcast %cst_19 : f32 to vector<8x12xf32>
    %46 = arith.cmpf ogt, %44, %45 : vector<8x12xf32>
    %cst_20 = arith.constant 2.000000e-01 : f32
    %47 = vector.broadcast %cst_20 : f32 to vector<8x12xf32>
    %48 = arith.mulf %47, %44 : vector<8x12xf32>
    %49 = arith.select %46, %44, %48 : vector<8x12xi1>, vector<8x12xf32>
    %cst_21 = arith.constant -1.000000e+30 : f32
    %50 = vector.broadcast %cst_21 : f32 to vector<8x12xf32>
    %51 = arith.select %13, %49, %50 : vector<8x12xi1>, vector<8x12xf32>
    %cst_22 = arith.constant dense<0xFF800000> : vector<8xf32>
    %52 = vector.multi_reduction <maximumf>, %51, %cst_22 [1] : vector<8x12xf32> to vector<8xf32>
    %53 = vector.shape_cast %52 : vector<8xf32> to vector<8x1xf32>
    %54 = vector.broadcast %53 : vector<8x1xf32> to vector<8x12xf32>
    %55 = arith.subf %51, %54 : vector<8x12xf32>
    %56 = math.exp %55 : vector<8x12xf32>
    %cst_23 = arith.constant dense<0.000000e+00> : vector<8xf32>
    %57 = vector.multi_reduction <add>, %56, %cst_23 [1] : vector<8x12xf32> to vector<8xf32>
    %58 = vector.shape_cast %57 : vector<8xf32> to vector<8x1xf32>
    %59 = tpu.reciprocal %58 {approx = true} : vector<8x1xf32> -> vector<8x1xf32>
    %60 = vector.broadcast %59 : vector<8x1xf32> to vector<8x12xf32>
    %61 = arith.mulf %56, %60 : vector<8x12xf32>
    %62 = arith.truncf %61 : vector<8x12xf32> to vector<8x12xbf16>
    %63 = vector.extract_strided_slice %14 {offsets = [0, 32], sizes = [12, 32], strides = [1, 1]} : vector<12x256xbf16> to vector<12x32xbf16>
    %cst_24 = arith.constant dense<0.000000e+00> : vector<8x32xf32>
    %64 = tpu.matmul %62, %63, %cst_24 {dimension_numbers = #tpu.dot_dimension_numbers<[1], [0], [0], [1], [0, 0, 1, 1], [], []>} : vector<8x12xbf16>, vector<12x32xbf16>, vector<8x32xf32> -> vector<8x32xf32>
    %65 = vector.extract_strided_slice %9 {offsets = [0, 2], sizes = [8, 1], strides = [1, 1]} : vector<8x8xf32> to vector<8x1xf32>
    %66 = vector.extract_strided_slice %7 {offsets = [2, 0], sizes = [1, 12], strides = [1, 1]} : vector<8x12xf32> to vector<1x12xf32>
    %67 = vector.broadcast %65 : vector<8x1xf32> to vector<8x12xf32>
    %68 = vector.broadcast %66 : vector<1x12xf32> to vector<8x12xf32>
    %69 = arith.addf %67, %68 : vector<8x12xf32>
    %cst_25 = arith.constant 0.000000e+00 : f32
    %70 = vector.broadcast %cst_25 : f32 to vector<8x12xf32>
    %71 = arith.cmpf ogt, %69, %70 : vector<8x12xf32>
    %cst_26 = arith.constant 2.000000e-01 : f32
    %72 = vector.broadcast %cst_26 : f32 to vector<8x12xf32>
    %73 = arith.mulf %72, %69 : vector<8x12xf32>
    %74 = arith.select %71, %69, %73 : vector<8x12xi1>, vector<8x12xf32>
    %cst_27 = arith.constant -1.000000e+30 : f32
    %75 = vector.broadcast %cst_27 : f32 to vector<8x12xf32>
    %76 = arith.select %13, %74, %75 : vector<8x12xi1>, vector<8x12xf32>
    %cst_28 = arith.constant dense<0xFF800000> : vector<8xf32>
    %77 = vector.multi_reduction <maximumf>, %76, %cst_28 [1] : vector<8x12xf32> to vector<8xf32>
    %78 = vector.shape_cast %77 : vector<8xf32> to vector<8x1xf32>
    %79 = vector.broadcast %78 : vector<8x1xf32> to vector<8x12xf32>
    %80 = arith.subf %76, %79 : vector<8x12xf32>
    %81 = math.exp %80 : vector<8x12xf32>
    %cst_29 = arith.constant dense<0.000000e+00> : vector<8xf32>
    %82 = vector.multi_reduction <add>, %81, %cst_29 [1] : vector<8x12xf32> to vector<8xf32>
    %83 = vector.shape_cast %82 : vector<8xf32> to vector<8x1xf32>
    %84 = tpu.reciprocal %83 {approx = true} : vector<8x1xf32> -> vector<8x1xf32>
    %85 = vector.broadcast %84 : vector<8x1xf32> to vector<8x12xf32>
    %86 = arith.mulf %81, %85 : vector<8x12xf32>
    %87 = arith.truncf %86 : vector<8x12xf32> to vector<8x12xbf16>
    %88 = vector.extract_strided_slice %14 {offsets = [0, 64], sizes = [12, 32], strides = [1, 1]} : vector<12x256xbf16> to vector<12x32xbf16>
    %cst_30 = arith.constant dense<0.000000e+00> : vector<8x32xf32>
    %89 = tpu.matmul %87, %88, %cst_30 {dimension_numbers = #tpu.dot_dimension_numbers<[1], [0], [0], [1], [0, 0, 1, 1], [], []>} : vector<8x12xbf16>, vector<12x32xbf16>, vector<8x32xf32> -> vector<8x32xf32>
    %90 = vector.extract_strided_slice %9 {offsets = [0, 3], sizes = [8, 1], strides = [1, 1]} : vector<8x8xf32> to vector<8x1xf32>
    %91 = vector.extract_strided_slice %7 {offsets = [3, 0], sizes = [1, 12], strides = [1, 1]} : vector<8x12xf32> to vector<1x12xf32>
    %92 = vector.broadcast %90 : vector<8x1xf32> to vector<8x12xf32>
    %93 = vector.broadcast %91 : vector<1x12xf32> to vector<8x12xf32>
    %94 = arith.addf %92, %93 : vector<8x12xf32>
    %cst_31 = arith.constant 0.000000e+00 : f32
    %95 = vector.broadcast %cst_31 : f32 to vector<8x12xf32>
    %96 = arith.cmpf ogt, %94, %95 : vector<8x12xf32>
    %cst_32 = arith.constant 2.000000e-01 : f32
    %97 = vector.broadcast %cst_32 : f32 to vector<8x12xf32>
    %98 = arith.mulf %97, %94 : vector<8x12xf32>
    %99 = arith.select %96, %94, %98 : vector<8x12xi1>, vector<8x12xf32>
    %cst_33 = arith.constant -1.000000e+30 : f32
    %100 = vector.broadcast %cst_33 : f32 to vector<8x12xf32>
    %101 = arith.select %13, %99, %100 : vector<8x12xi1>, vector<8x12xf32>
    %cst_34 = arith.constant dense<0xFF800000> : vector<8xf32>
    %102 = vector.multi_reduction <maximumf>, %101, %cst_34 [1] : vector<8x12xf32> to vector<8xf32>
    %103 = vector.shape_cast %102 : vector<8xf32> to vector<8x1xf32>
    %104 = vector.broadcast %103 : vector<8x1xf32> to vector<8x12xf32>
    %105 = arith.subf %101, %104 : vector<8x12xf32>
    %106 = math.exp %105 : vector<8x12xf32>
    %cst_35 = arith.constant dense<0.000000e+00> : vector<8xf32>
    %107 = vector.multi_reduction <add>, %106, %cst_35 [1] : vector<8x12xf32> to vector<8xf32>
    %108 = vector.shape_cast %107 : vector<8xf32> to vector<8x1xf32>
    %109 = tpu.reciprocal %108 {approx = true} : vector<8x1xf32> -> vector<8x1xf32>
    %110 = vector.broadcast %109 : vector<8x1xf32> to vector<8x12xf32>
    %111 = arith.mulf %106, %110 : vector<8x12xf32>
    %112 = arith.truncf %111 : vector<8x12xf32> to vector<8x12xbf16>
    %113 = vector.extract_strided_slice %14 {offsets = [0, 96], sizes = [12, 32], strides = [1, 1]} : vector<12x256xbf16> to vector<12x32xbf16>
    %cst_36 = arith.constant dense<0.000000e+00> : vector<8x32xf32>
    %114 = tpu.matmul %112, %113, %cst_36 {dimension_numbers = #tpu.dot_dimension_numbers<[1], [0], [0], [1], [0, 0, 1, 1], [], []>} : vector<8x12xbf16>, vector<12x32xbf16>, vector<8x32xf32> -> vector<8x32xf32>
    %115 = vector.extract_strided_slice %9 {offsets = [0, 4], sizes = [8, 1], strides = [1, 1]} : vector<8x8xf32> to vector<8x1xf32>
    %116 = vector.extract_strided_slice %7 {offsets = [4, 0], sizes = [1, 12], strides = [1, 1]} : vector<8x12xf32> to vector<1x12xf32>
    %117 = vector.broadcast %115 : vector<8x1xf32> to vector<8x12xf32>
    %118 = vector.broadcast %116 : vector<1x12xf32> to vector<8x12xf32>
    %119 = arith.addf %117, %118 : vector<8x12xf32>
    %cst_37 = arith.constant 0.000000e+00 : f32
    %120 = vector.broadcast %cst_37 : f32 to vector<8x12xf32>
    %121 = arith.cmpf ogt, %119, %120 : vector<8x12xf32>
    %cst_38 = arith.constant 2.000000e-01 : f32
    %122 = vector.broadcast %cst_38 : f32 to vector<8x12xf32>
    %123 = arith.mulf %122, %119 : vector<8x12xf32>
    %124 = arith.select %121, %119, %123 : vector<8x12xi1>, vector<8x12xf32>
    %cst_39 = arith.constant -1.000000e+30 : f32
    %125 = vector.broadcast %cst_39 : f32 to vector<8x12xf32>
    %126 = arith.select %13, %124, %125 : vector<8x12xi1>, vector<8x12xf32>
    %cst_40 = arith.constant dense<0xFF800000> : vector<8xf32>
    %127 = vector.multi_reduction <maximumf>, %126, %cst_40 [1] : vector<8x12xf32> to vector<8xf32>
    %128 = vector.shape_cast %127 : vector<8xf32> to vector<8x1xf32>
    %129 = vector.broadcast %128 : vector<8x1xf32> to vector<8x12xf32>
    %130 = arith.subf %126, %129 : vector<8x12xf32>
    %131 = math.exp %130 : vector<8x12xf32>
    %cst_41 = arith.constant dense<0.000000e+00> : vector<8xf32>
    %132 = vector.multi_reduction <add>, %131, %cst_41 [1] : vector<8x12xf32> to vector<8xf32>
    %133 = vector.shape_cast %132 : vector<8xf32> to vector<8x1xf32>
    %134 = tpu.reciprocal %133 {approx = true} : vector<8x1xf32> -> vector<8x1xf32>
    %135 = vector.broadcast %134 : vector<8x1xf32> to vector<8x12xf32>
    %136 = arith.mulf %131, %135 : vector<8x12xf32>
    %137 = arith.truncf %136 : vector<8x12xf32> to vector<8x12xbf16>
    %138 = vector.extract_strided_slice %14 {offsets = [0, 128], sizes = [12, 32], strides = [1, 1]} : vector<12x256xbf16> to vector<12x32xbf16>
    %cst_42 = arith.constant dense<0.000000e+00> : vector<8x32xf32>
    %139 = tpu.matmul %137, %138, %cst_42 {dimension_numbers = #tpu.dot_dimension_numbers<[1], [0], [0], [1], [0, 0, 1, 1], [], []>} : vector<8x12xbf16>, vector<12x32xbf16>, vector<8x32xf32> -> vector<8x32xf32>
    %140 = vector.extract_strided_slice %9 {offsets = [0, 5], sizes = [8, 1], strides = [1, 1]} : vector<8x8xf32> to vector<8x1xf32>
    %141 = vector.extract_strided_slice %7 {offsets = [5, 0], sizes = [1, 12], strides = [1, 1]} : vector<8x12xf32> to vector<1x12xf32>
    %142 = vector.broadcast %140 : vector<8x1xf32> to vector<8x12xf32>
    %143 = vector.broadcast %141 : vector<1x12xf32> to vector<8x12xf32>
    %144 = arith.addf %142, %143 : vector<8x12xf32>
    %cst_43 = arith.constant 0.000000e+00 : f32
    %145 = vector.broadcast %cst_43 : f32 to vector<8x12xf32>
    %146 = arith.cmpf ogt, %144, %145 : vector<8x12xf32>
    %cst_44 = arith.constant 2.000000e-01 : f32
    %147 = vector.broadcast %cst_44 : f32 to vector<8x12xf32>
    %148 = arith.mulf %147, %144 : vector<8x12xf32>
    %149 = arith.select %146, %144, %148 : vector<8x12xi1>, vector<8x12xf32>
    %cst_45 = arith.constant -1.000000e+30 : f32
    %150 = vector.broadcast %cst_45 : f32 to vector<8x12xf32>
    %151 = arith.select %13, %149, %150 : vector<8x12xi1>, vector<8x12xf32>
    %cst_46 = arith.constant dense<0xFF800000> : vector<8xf32>
    %152 = vector.multi_reduction <maximumf>, %151, %cst_46 [1] : vector<8x12xf32> to vector<8xf32>
    %153 = vector.shape_cast %152 : vector<8xf32> to vector<8x1xf32>
    %154 = vector.broadcast %153 : vector<8x1xf32> to vector<8x12xf32>
    %155 = arith.subf %151, %154 : vector<8x12xf32>
    %156 = math.exp %155 : vector<8x12xf32>
    %cst_47 = arith.constant dense<0.000000e+00> : vector<8xf32>
    %157 = vector.multi_reduction <add>, %156, %cst_47 [1] : vector<8x12xf32> to vector<8xf32>
    %158 = vector.shape_cast %157 : vector<8xf32> to vector<8x1xf32>
    %159 = tpu.reciprocal %158 {approx = true} : vector<8x1xf32> -> vector<8x1xf32>
    %160 = vector.broadcast %159 : vector<8x1xf32> to vector<8x12xf32>
    %161 = arith.mulf %156, %160 : vector<8x12xf32>
    %162 = arith.truncf %161 : vector<8x12xf32> to vector<8x12xbf16>
    %163 = vector.extract_strided_slice %14 {offsets = [0, 160], sizes = [12, 32], strides = [1, 1]} : vector<12x256xbf16> to vector<12x32xbf16>
    %cst_48 = arith.constant dense<0.000000e+00> : vector<8x32xf32>
    %164 = tpu.matmul %162, %163, %cst_48 {dimension_numbers = #tpu.dot_dimension_numbers<[1], [0], [0], [1], [0, 0, 1, 1], [], []>} : vector<8x12xbf16>, vector<12x32xbf16>, vector<8x32xf32> -> vector<8x32xf32>
    %165 = vector.extract_strided_slice %9 {offsets = [0, 6], sizes = [8, 1], strides = [1, 1]} : vector<8x8xf32> to vector<8x1xf32>
    %166 = vector.extract_strided_slice %7 {offsets = [6, 0], sizes = [1, 12], strides = [1, 1]} : vector<8x12xf32> to vector<1x12xf32>
    %167 = vector.broadcast %165 : vector<8x1xf32> to vector<8x12xf32>
    %168 = vector.broadcast %166 : vector<1x12xf32> to vector<8x12xf32>
    %169 = arith.addf %167, %168 : vector<8x12xf32>
    %cst_49 = arith.constant 0.000000e+00 : f32
    %170 = vector.broadcast %cst_49 : f32 to vector<8x12xf32>
    %171 = arith.cmpf ogt, %169, %170 : vector<8x12xf32>
    %cst_50 = arith.constant 2.000000e-01 : f32
    %172 = vector.broadcast %cst_50 : f32 to vector<8x12xf32>
    %173 = arith.mulf %172, %169 : vector<8x12xf32>
    %174 = arith.select %171, %169, %173 : vector<8x12xi1>, vector<8x12xf32>
    %cst_51 = arith.constant -1.000000e+30 : f32
    %175 = vector.broadcast %cst_51 : f32 to vector<8x12xf32>
    %176 = arith.select %13, %174, %175 : vector<8x12xi1>, vector<8x12xf32>
    %cst_52 = arith.constant dense<0xFF800000> : vector<8xf32>
    %177 = vector.multi_reduction <maximumf>, %176, %cst_52 [1] : vector<8x12xf32> to vector<8xf32>
    %178 = vector.shape_cast %177 : vector<8xf32> to vector<8x1xf32>
    %179 = vector.broadcast %178 : vector<8x1xf32> to vector<8x12xf32>
    %180 = arith.subf %176, %179 : vector<8x12xf32>
    %181 = math.exp %180 : vector<8x12xf32>
    %cst_53 = arith.constant dense<0.000000e+00> : vector<8xf32>
    %182 = vector.multi_reduction <add>, %181, %cst_53 [1] : vector<8x12xf32> to vector<8xf32>
    %183 = vector.shape_cast %182 : vector<8xf32> to vector<8x1xf32>
    %184 = tpu.reciprocal %183 {approx = true} : vector<8x1xf32> -> vector<8x1xf32>
    %185 = vector.broadcast %184 : vector<8x1xf32> to vector<8x12xf32>
    %186 = arith.mulf %181, %185 : vector<8x12xf32>
    %187 = arith.truncf %186 : vector<8x12xf32> to vector<8x12xbf16>
    %188 = vector.extract_strided_slice %14 {offsets = [0, 192], sizes = [12, 32], strides = [1, 1]} : vector<12x256xbf16> to vector<12x32xbf16>
    %cst_54 = arith.constant dense<0.000000e+00> : vector<8x32xf32>
    %189 = tpu.matmul %187, %188, %cst_54 {dimension_numbers = #tpu.dot_dimension_numbers<[1], [0], [0], [1], [0, 0, 1, 1], [], []>} : vector<8x12xbf16>, vector<12x32xbf16>, vector<8x32xf32> -> vector<8x32xf32>
    %190 = vector.extract_strided_slice %9 {offsets = [0, 7], sizes = [8, 1], strides = [1, 1]} : vector<8x8xf32> to vector<8x1xf32>
    %191 = vector.extract_strided_slice %7 {offsets = [7, 0], sizes = [1, 12], strides = [1, 1]} : vector<8x12xf32> to vector<1x12xf32>
    %192 = vector.broadcast %190 : vector<8x1xf32> to vector<8x12xf32>
    %193 = vector.broadcast %191 : vector<1x12xf32> to vector<8x12xf32>
    %194 = arith.addf %192, %193 : vector<8x12xf32>
    %cst_55 = arith.constant 0.000000e+00 : f32
    %195 = vector.broadcast %cst_55 : f32 to vector<8x12xf32>
    %196 = arith.cmpf ogt, %194, %195 : vector<8x12xf32>
    %cst_56 = arith.constant 2.000000e-01 : f32
    %197 = vector.broadcast %cst_56 : f32 to vector<8x12xf32>
    %198 = arith.mulf %197, %194 : vector<8x12xf32>
    %199 = arith.select %196, %194, %198 : vector<8x12xi1>, vector<8x12xf32>
    %cst_57 = arith.constant -1.000000e+30 : f32
    %200 = vector.broadcast %cst_57 : f32 to vector<8x12xf32>
    %201 = arith.select %13, %199, %200 : vector<8x12xi1>, vector<8x12xf32>
    %cst_58 = arith.constant dense<0xFF800000> : vector<8xf32>
    %202 = vector.multi_reduction <maximumf>, %201, %cst_58 [1] : vector<8x12xf32> to vector<8xf32>
    %203 = vector.shape_cast %202 : vector<8xf32> to vector<8x1xf32>
    %204 = vector.broadcast %203 : vector<8x1xf32> to vector<8x12xf32>
    %205 = arith.subf %201, %204 : vector<8x12xf32>
    %206 = math.exp %205 : vector<8x12xf32>
    %cst_59 = arith.constant dense<0.000000e+00> : vector<8xf32>
    %207 = vector.multi_reduction <add>, %206, %cst_59 [1] : vector<8x12xf32> to vector<8xf32>
    %208 = vector.shape_cast %207 : vector<8xf32> to vector<8x1xf32>
    %209 = tpu.reciprocal %208 {approx = true} : vector<8x1xf32> -> vector<8x1xf32>
    %210 = vector.broadcast %209 : vector<8x1xf32> to vector<8x12xf32>
    %211 = arith.mulf %206, %210 : vector<8x12xf32>
    %212 = arith.truncf %211 : vector<8x12xf32> to vector<8x12xbf16>
    %213 = vector.extract_strided_slice %14 {offsets = [0, 224], sizes = [12, 32], strides = [1, 1]} : vector<12x256xbf16> to vector<12x32xbf16>
    %cst_60 = arith.constant dense<0.000000e+00> : vector<8x32xf32>
    %214 = tpu.matmul %212, %213, %cst_60 {dimension_numbers = #tpu.dot_dimension_numbers<[1], [0], [0], [1], [0, 0, 1, 1], [], []>} : vector<8x12xbf16>, vector<12x32xbf16>, vector<8x32xf32> -> vector<8x32xf32>
    %215 = tpu.concatenate %39, %64, %89, %114, %139, %164, %189, %214 in 1 : vector<8x32xf32>, vector<8x32xf32>, vector<8x32xf32>, vector<8x32xf32>, vector<8x32xf32>, vector<8x32xf32>, vector<8x32xf32>, vector<8x32xf32> -> vector<8x256xf32>
    %c0_61 = arith.constant 0 : index
    %c0_62 = arith.constant 0 : index
    %216 = vector.load %arg5[%c0_61, %c0_62] : memref<1x256xf32, #tpu.memory_space<vmem>>, vector<1x256xf32>
    %217 = vector.broadcast %216 : vector<1x256xf32> to vector<8x256xf32>
    %218 = arith.addf %215, %217 : vector<8x256xf32>
    %cst_63 = arith.constant 0.000000e+00 : f32
    %219 = vector.broadcast %cst_63 : f32 to vector<8x256xf32>
    %220 = arith.cmpf ogt, %218, %219 : vector<8x256xf32>
    %221 = math.exp %218 : vector<8x256xf32>
    %cst_64 = arith.constant 1.000000e+00 : f32
    %222 = vector.broadcast %cst_64 : f32 to vector<8x256xf32>
    %223 = arith.subf %221, %222 : vector<8x256xf32>
    %cst_65 = arith.constant 1.67326319 : f32
    %224 = vector.broadcast %cst_65 : f32 to vector<8x256xf32>
    %225 = arith.mulf %224, %223 : vector<8x256xf32>
    %226 = arith.select %220, %218, %225 : vector<8x256xi1>, vector<8x256xf32>
    %cst_66 = arith.constant 1.05070102 : f32
    %227 = vector.broadcast %cst_66 : f32 to vector<8x256xf32>
    %228 = arith.mulf %227, %226 : vector<8x256xf32>
    %c0_67 = arith.constant 0 : index
    %c0_68 = arith.constant 0 : index
    %c0_69 = arith.constant 0 : index
    %229 = vector.load %arg7[%c0_67, %c0_68, %c0_69] : memref<1x8x256xf32, #tpu.memory_space<vmem>>, vector<1x8x256xf32>
    %230 = vector.shape_cast %229 : vector<1x8x256xf32> to vector<8x256xf32>
    %231 = vector.shape_cast %228 : vector<8x256xf32> to vector<1x8x256xf32>
    tpu.vector_store %arg7[%c0_67, %c0_68, %c0_69], %231 {strides = array<i32>} : memref<1x8x256xf32, #tpu.memory_space<vmem>>, vector<1x8x256xf32>,
    return
  }
  func.func @transform_0(%arg0: i32) -> (i32, i32, i32) {
    %c0_i32 = arith.constant 0 : i32
    %c0_i32_0 = arith.constant 0 : i32
    %c0_i32_1 = arith.constant 0 : i32
    return %arg0, %c0_i32, %c0_i32_0 : i32, i32, i32
  }
  func.func @transform_1(%arg0: i32) -> (i32, i32) {
    %c0_i32 = arith.constant 0 : i32
    %c0_i32_0 = arith.constant 0 : i32
    %c0_i32_1 = arith.constant 0 : i32
    return %c0_i32, %c0_i32_0 : i32, i32
  }
  func.func @transform_2(%arg0: i32) -> (i32, i32) {
    %c0_i32 = arith.constant 0 : i32
    %c0_i32_0 = arith.constant 0 : i32
    %c0_i32_1 = arith.constant 0 : i32
    return %c0_i32, %c0_i32_0 : i32, i32
  }
  func.func @transform_3(%arg0: i32) -> (i32, i32) {
    %c0_i32 = arith.constant 0 : i32
    %c0_i32_0 = arith.constant 0 : i32
    %c0_i32_1 = arith.constant 0 : i32
    return %c0_i32, %c0_i32_0 : i32, i32
  }
  func.func @transform_4(%arg0: i32) -> (i32, i32) {
    %c0_i32 = arith.constant 0 : i32
    %c0_i32_0 = arith.constant 0 : i32
    %c0_i32_1 = arith.constant 0 : i32
    return %c0_i32, %c0_i32_0 : i32, i32
  }
  func.func @transform_5(%arg0: i32) -> (i32, i32) {
    %c0_i32 = arith.constant 0 : i32
    %c0_i32_0 = arith.constant 0 : i32
    %c0_i32_1 = arith.constant 0 : i32
    return %c0_i32, %c0_i32_0 : i32, i32
  }
  func.func @transform_6(%arg0: i32) -> (i32, i32, i32) {
    %c0_i32 = arith.constant 0 : i32
    %c0_i32_0 = arith.constant 0 : i32
    %c0_i32_1 = arith.constant 0 : i32
    return %arg0, %c0_i32, %c0_i32_0 : i32, i32, i32
  }
}

module attributes {stable_mosaic.version = 11 : i64} {
  func.func @_classify_kernel(%arg0: i32, %arg1: memref<8x8x256xf32, #tpu.memory_space<vmem>>, %arg2: memref<256x4xbf16, #tpu.memory_space<vmem>>, %arg3: memref<1x4xf32, #tpu.memory_space<vmem>>, %arg4: memref<8x4xf32, #tpu.memory_space<vmem>>) attributes {dimension_semantics = [#tpu.dimension_semantics<arbitrary>], iteration_bounds = array<i64: 1>, scalar_prefetch = 0 : i64, scratch_operands = 0 : i64, tpu.core_type = #tpu.core_type<tc>, window_params = [{pipeline_mode = #tpu.pipeline_mode<synchronous>, transform_indices = @transform_0, window_bounds = array<i64: 8, 8, 256>}, {pipeline_mode = #tpu.pipeline_mode<synchronous>, transform_indices = @transform_1, window_bounds = array<i64: 256, 4>}, {pipeline_mode = #tpu.pipeline_mode<synchronous>, transform_indices = @transform_2, window_bounds = array<i64: 1, 4>}, {pipeline_mode = #tpu.pipeline_mode<synchronous>, transform_indices = @transform_3, window_bounds = array<i64: 8, 4>}]} {
    %c0 = arith.constant 0 : index
    %c0_0 = arith.constant 0 : index
    %c0_1 = arith.constant 0 : index
    %0 = vector.load %arg1[%c0, %c0_0, %c0_1] : memref<8x8x256xf32, #tpu.memory_space<vmem>>, vector<8x8x256xf32>
    %cst = arith.constant dense<0.000000e+00> : vector<8x256xf32>
    %1 = vector.multi_reduction <add>, %0, %cst [0] : vector<8x8x256xf32> to vector<8x256xf32>
    %2 = arith.truncf %1 : vector<8x256xf32> to vector<8x256xbf16>
    %c0_2 = arith.constant 0 : index
    %c0_3 = arith.constant 0 : index
    %3 = vector.load %arg2[%c0_2, %c0_3] : memref<256x4xbf16, #tpu.memory_space<vmem>>, vector<256x4xbf16>
    %cst_4 = arith.constant dense<0.000000e+00> : vector<8x4xf32>
    %4 = tpu.matmul %2, %3, %cst_4 {dimension_numbers = #tpu.dot_dimension_numbers<[1], [0], [0], [1], [0, 0, 1, 1], [], []>} : vector<8x256xbf16>, vector<256x4xbf16>, vector<8x4xf32> -> vector<8x4xf32>
    %c0_5 = arith.constant 0 : index
    %c0_6 = arith.constant 0 : index
    %5 = vector.load %arg3[%c0_5, %c0_6] : memref<1x4xf32, #tpu.memory_space<vmem>>, vector<1x4xf32>
    %6 = vector.broadcast %5 : vector<1x4xf32> to vector<8x4xf32>
    %7 = arith.addf %4, %6 : vector<8x4xf32>
    %cst_7 = arith.constant dense<0xFF800000> : vector<8xf32>
    %8 = vector.multi_reduction <maximumf>, %7, %cst_7 [1] : vector<8x4xf32> to vector<8xf32>
    %9 = vector.shape_cast %8 : vector<8xf32> to vector<8x1xf32>
    %10 = vector.broadcast %9 : vector<8x1xf32> to vector<8x4xf32>
    %11 = arith.subf %7, %10 : vector<8x4xf32>
    %12 = math.exp %11 : vector<8x4xf32>
    %cst_8 = arith.constant dense<0.000000e+00> : vector<8xf32>
    %13 = vector.multi_reduction <add>, %12, %cst_8 [1] : vector<8x4xf32> to vector<8xf32>
    %14 = vector.shape_cast %13 : vector<8xf32> to vector<8x1xf32>
    %15 = vector.broadcast %14 : vector<8x1xf32> to vector<8x4xf32>
    %16 = arith.divf %12, %15 : vector<8x4xf32>
    %c0_9 = arith.constant 0 : index
    %c0_10 = arith.constant 0 : index
    %17 = vector.load %arg4[%c0_9, %c0_10] : memref<8x4xf32, #tpu.memory_space<vmem>>, vector<8x4xf32>
    tpu.vector_store %arg4[%c0_9, %c0_10], %16 {strides = array<i32>} : memref<8x4xf32, #tpu.memory_space<vmem>>, vector<8x4xf32>,
    return
  }
  func.func @transform_0(%arg0: i32) -> (i32, i32, i32) {
    %c0_i32 = arith.constant 0 : i32
    %c0_i32_0 = arith.constant 0 : i32
    %c0_i32_1 = arith.constant 0 : i32
    %c0_i32_2 = arith.constant 0 : i32
    return %c0_i32, %c0_i32_0, %c0_i32_1 : i32, i32, i32
  }
  func.func @transform_1(%arg0: i32) -> (i32, i32) {
    %c0_i32 = arith.constant 0 : i32
    %c0_i32_0 = arith.constant 0 : i32
    %c0_i32_1 = arith.constant 0 : i32
    return %c0_i32, %c0_i32_0 : i32, i32
  }
  func.func @transform_2(%arg0: i32) -> (i32, i32) {
    %c0_i32 = arith.constant 0 : i32
    %c0_i32_0 = arith.constant 0 : i32
    %c0_i32_1 = arith.constant 0 : i32
    return %c0_i32, %c0_i32_0 : i32, i32
  }
  func.func @transform_3(%arg0: i32) -> (i32, i32) {
    %c0_i32 = arith.constant 0 : i32
    %c0_i32_0 = arith.constant 0 : i32
    %c0_i32_1 = arith.constant 0 : i32
    return %c0_i32, %c0_i32_0 : i32, i32
  }
}

</mosaic_0001>

<llo_original>
// kernel: gat_forward.5
$region0: #{gat_forward.5}
  #allocation0 [shape = 'u32[]', space=smem, size = 0x4, offset = 0x4, fixed_abs, tag = 'smem constant byte address 0x4 - core index']
  #allocation1 [shape = 'u32[144,128]{1,0:T(1,128)}', space=vmem, size = 0x12000, scoped, tag = 'internal scratch']
  %s0 = inlined_call_operand.vmem [shape: f32[8,8,256], index: 0, kind: input, shape index: {}]
  %s1 = inlined_call_operand.vmem [shape: bf16[256,4], index: 1, kind: input, shape index: {}]
  %s2 = inlined_call_operand.vmem [shape: f32[1,4], index: 2, kind: input, shape index: {}]
  %s3 = inlined_call_operand.vmem [shape: f32[8,4], index: 3, kind: output, shape index: {}]
  %s4 = sld [smem:[#allocation0]]
  $region22: #{gat_forward.5} parent=0
    _
  %s6 = ssub.s32 1, %s4
  %s7 = scalar_select 0, %s6, %s4
  // Predicated region
  $region2: #{gat_forward.5} parent=0 // pred_check
    _
  $region3: #{gat_forward.5} parent=0 // pred_check_branch
    %9 = sbr.rel (0) target = $region5
  $region4: #{gat_forward.5} parent=0 // pred_region
    _
  $region5: #{gat_forward.5} parent=0 // pred_fallthru
    _
  // Predicated region
  $region6: #{gat_forward.5} parent=0 // pred_check
    _
  $region7: #{gat_forward.5} parent=0 // pred_check_branch
    %11 = sbr.rel (0) target = $region9
  $region8: #{gat_forward.5} parent=0 // pred_region
    _
  $region9: #{gat_forward.5} parent=0 // pred_fallthru
    _
  // Predicated region
  $region10: #{gat_forward.5} parent=0 // pred_check
    _
  $region11: #{gat_forward.5} parent=0 // pred_check_branch
    %13 = sbr.rel (0) target = $region13
  $region12: #{gat_forward.5} parent=0 // pred_region
    _
  $region13: #{gat_forward.5} parent=0 // pred_fallthru
    _
  %v15 = vld [vmem:[%s0] sm:$0xff]
  %v16 = vld [vmem:[%s0 + $0x8] sm:$0xff]
  %v17 = vld [vmem:[%s0 + $0x10] sm:$0xff]
  %v18 = vld [vmem:[%s0 + $0x18] sm:$0xff]
  %v19 = vld [vmem:[%s0 + $0x20] sm:$0xff]
  %v20 = vld [vmem:[%s0 + $0x28] sm:$0xff]
  %v21 = vld [vmem:[%s0 + $0x30] sm:$0xff]
  %v22 = vld [vmem:[%s0 + $0x38] sm:$0xff]
  %v23 = vld [vmem:[%s0 + $0x40] sm:$0xff]
  %v24 = vld [vmem:[%s0 + $0x48] sm:$0xff]
  %v25 = vld [vmem:[%s0 + $0x50] sm:$0xff]
  %v26 = vld [vmem:[%s0 + $0x58] sm:$0xff]
  %v27 = vld [vmem:[%s0 + $0x60] sm:$0xff]
  %v28 = vld [vmem:[%s0 + $0x68] sm:$0xff]
  %v29 = vld [vmem:[%s0 + $0x70] sm:$0xff]
  %v30 = vld [vmem:[%s0 + $0x78] sm:$0xff]
  %v31 = vadd.f32 %v15, %v17
  %v32 = vadd.f32 %v31, %v19
  %v33 = vadd.f32 %v32, %v21
  %v34 = vadd.f32 %v33, %v23
  %v35 = vadd.f32 %v34, %v25
  %v36 = vadd.f32 %v35, %v27
  %v37 = vadd.f32 %v36, %v29
  %v38 = vadd.f32 %v16, %v18
  %v39 = vadd.f32 %v38, %v20
  %v40 = vadd.f32 %v39, %v22
  %v41 = vadd.f32 %v40, %v24
  %v42 = vadd.f32 %v41, %v26
  %v43 = vadd.f32 %v42, %v28
  %v44 = vadd.f32 %v43, %v30
  %v45 = vpack.c.bf16 %v37, %v37
  %v46 = vpack.c.bf16 %v44, %v44
  %v47 = vld [vmem:[%s1] sm:$0xf]
  %v48 = vld [vmem:[%s1 + $0x4] sm:$0xf]
  %v49 = vld [vmem:[%s1 + $0x8] sm:$0xf]
  %v50 = vld [vmem:[%s1 + $0xc] sm:$0xf]
  %v51 = vld [vmem:[%s1 + $0x10] sm:$0xf]
  %v52 = vld [vmem:[%s1 + $0x14] sm:$0xf]
  %v53 = vld [vmem:[%s1 + $0x18] sm:$0xf]
  %v54 = vld [vmem:[%s1 + $0x1c] sm:$0xf]
  %v55 = vld [vmem:[%s1 + $0x20] sm:$0xf]
  %v56 = vld [vmem:[%s1 + $0x24] sm:$0xf]
  %v57 = vld [vmem:[%s1 + $0x28] sm:$0xf]
  %v58 = vld [vmem:[%s1 + $0x2c] sm:$0xf]
  %v59 = vld [vmem:[%s1 + $0x30] sm:$0xf]
  %v60 = vld [vmem:[%s1 + $0x34] sm:$0xf]
  %v61 = vld [vmem:[%s1 + $0x38] sm:$0xf]
  %v62 = vld [vmem:[%s1 + $0x3c] sm:$0xf]
  %v63 = vld [vmem:[%s1 + $0x40] sm:$0xf]
  %v64 = vld [vmem:[%s1 + $0x44] sm:$0xf]
  %v65 = vld [vmem:[%s1 + $0x48] sm:$0xf]
  %v66 = vld [vmem:[%s1 + $0x4c] sm:$0xf]
  %v67 = vld [vmem:[%s1 + $0x50] sm:$0xf]
  %v68 = vld [vmem:[%s1 + $0x54] sm:$0xf]
  %v69 = vld [vmem:[%s1 + $0x58] sm:$0xf]
  %v70 = vld [vmem:[%s1 + $0x5c] sm:$0xf]
  %v71 = vld [vmem:[%s1 + $0x60] sm:$0xf]
  %v72 = vld [vmem:[%s1 + $0x64] sm:$0xf]
  %v73 = vld [vmem:[%s1 + $0x68] sm:$0xf]
  %v74 = vld [vmem:[%s1 + $0x6c] sm:$0xf]
  %v75 = vld [vmem:[%s1 + $0x70] sm:$0xf]
  %v76 = vld [vmem:[%s1 + $0x74] sm:$0xf]
  %v77 = vld [vmem:[%s1 + $0x78] sm:$0xf]
  %v78 = vld [vmem:[%s1 + $0x7c] sm:$0xf]
  %v79 = vld [vmem:[%s2] sm:$0x1]
  %v81 = vlaneseq
  %v82 = vshrl.u32 %v81, 7
  %v83 = vsub.s32 0, %v82
  %v84 = vrot.slane %v79, %v83
  %v118 = vunpack.c.l.b16 %v47
  %v119 = vunpack.c.l.b16 %v48
  %v120 = vunpack.c.l.b16 %v49
  %v121 = vunpack.c.l.b16 %v50
  %v122 = vunpack.c.l.b16 %v51
  %v123 = vunpack.c.l.b16 %v52
  %v124 = vunpack.c.l.b16 %v53
  %v125 = vunpack.c.l.b16 %v54
  %v126 = vunpack.c.l.b16 %v55
  %v127 = vunpack.c.l.b16 %v56
  %v128 = vunpack.c.l.b16 %v57
  %v129 = vunpack.c.l.b16 %v58
  %v130 = vunpack.c.l.b16 %v59
  %v131 = vunpack.c.l.b16 %v60
  %v132 = vunpack.c.l.b16 %v61
  %v133 = vunpack.c.l.b16 %v62
  %v134 = vunpack.c.l.b16 %v63
  %v135 = vunpack.c.l.b16 %v64
  %v136 = vunpack.c.l.b16 %v65
  %v137 = vunpack.c.l.b16 %v66
  %v138 = vunpack.c.l.b16 %v67
  %v139 = vunpack.c.l.b16 %v68
  %v140 = vunpack.c.l.b16 %v69
  %v141 = vunpack.c.l.b16 %v70
  %v142 = vunpack.c.l.b16 %v71
  %v143 = vunpack.c.l.b16 %v72
  %v144 = vunpack.c.l.b16 %v73
  %v145 = vunpack.c.l.b16 %v74
  %v146 = vunpack.c.l.b16 %v75
  %v147 = vunpack.c.l.b16 %v76
  %v148 = vunpack.c.l.b16 %v77
  %v149 = vunpack.c.l.b16 %v78
  %v150 = vpack.c.b16 %v119, %v118
  %v151 = vpack.c.b16 %v121, %v120
  %v152 = vpack.c.b16 %v123, %v122
  %v153 = vpack.c.b16 %v125, %v124
  %v154 = vpack.c.b16 %v127, %v126
  %v155 = vpack.c.b16 %v129, %v128
  %v156 = vpack.c.b16 %v131, %v130
  %v157 = vpack.c.b16 %v133, %v132
  %v158 = vpack.c.b16 %v135, %v134
  %v159 = vpack.c.b16 %v137, %v136
  %v160 = vpack.c.b16 %v139, %v138
  %v161 = vpack.c.b16 %v141, %v140
  %v162 = vpack.c.b16 %v143, %v142
  %v163 = vpack.c.b16 %v145, %v144
  %v164 = vpack.c.b16 %v147, %v146
  %v165 = vpack.c.b16 %v149, %v148
  %182 = vmatprep.subr.bf16.mxu0 0
  %183 = vmatpush1.bf16.msra.mxu0 %v150
  %184 = vmatprep.subr.bf16.mxu0 0
  %185 = vmatpush1.bf16.msra.mxu0 %v151
  %186 = vmatprep.subr.bf16.mxu0 0
  %187 = vmatpush1.bf16.msra.mxu0 %v152
  %188 = vmatprep.subr.bf16.mxu0 0
  %189 = vmatpush1.bf16.msra.mxu0 %v153
  %190 = vmatprep.subr.bf16.mxu0 0
  %191 = vmatpush1.bf16.msra.mxu0 %v154
  %192 = vmatprep.subr.bf16.mxu0 0
  %193 = vmatpush1.bf16.msra.mxu0 %v155
  %194 = vmatprep.subr.bf16.mxu0 0
  %195 = vmatpush1.bf16.msra.mxu0 %v156
  %196 = vmatprep.subr.bf16.mxu0 0
  %197 = vmatpush1.bf16.msra.mxu0 %v157
  %198 = vmatprep.subr.bf16.mxu0 0
  %199 = vmatpush1.bf16.msra.mxu0 %v158
  %200 = vmatprep.subr.bf16.mxu0 0
  %201 = vmatpush1.bf16.msra.mxu0 %v159
  %202 = vmatprep.subr.bf16.mxu0 0
  %203 = vmatpush1.bf16.msra.mxu0 %v160
  %204 = vmatprep.subr.bf16.mxu0 0
  %205 = vmatpush1.bf16.msra.mxu0 %v161
  %206 = vmatprep.subr.bf16.mxu0 0
  %207 = vmatpush1.bf16.msra.mxu0 %v162
  %208 = vmatprep.subr.bf16.mxu0 0
  %209 = vmatpush1.bf16.msra.mxu0 %v163
  %210 = vmatprep.subr.bf16.mxu0 0
  %211 = vmatpush1.bf16.msra.mxu0 %v164
  %212 = vmatprep.subr.bf16.mxu0 0
  %213 = vmatpush1.bf16.msra.mxu0 %v165
  %214 = vmatprep.mubr.bf16.mxu0 %v46
  %215 = vmatmul.mubr.bf16.gmra.mrb[0].mxu0 %v45
  %v216 = vpop.f32.mrb[0].mxu0
  %v217 = vadd.f32 %v84, %v216
  %v218 = vpop.f32.mrb[0].mxu0
  %v219 = vpop.f32.mrb[0].mxu0
  %v220 = vpop.f32.mrb[0].mxu0
  %221 = vdwg.mxu0
  %vm222 = vcmask 31744
  %v223 = vsel %vm222, %v217, -inf
  %224 = vmax.xlane.f32.xlu0 %v223
  %v225 = vpop.xlane.xlu0 %224
  %v226 = vsub.f32 %v217, %v225
  %v227 = vmul.f32 %v226, 1.442695
  %v228 = vpow.pop %v227
  %v229 = vsel %vm222, %v228, 0.0
  %230 = vadd.xlane.f32.xlu0 %v229
  %v231 = vpop.xlane.xlu0 %230
  %v232 = vrcp.pop %v231
  %v233 = vmul.f32 %v228, %v232
  %234 = vst.msk [vmem:[%s3] sm:$0xff] %vm222, %v233
  // Predicated region
  $region14: #{gat_forward.5} parent=0 // pred_check
    _
  $region15: #{gat_forward.5} parent=0 // pred_check_branch
    %236 = sbr.rel (0) target = $region17
  $region16: #{gat_forward.5} parent=0 // pred_region
    _
  $region17: #{gat_forward.5} parent=0 // pred_fallthru
    _
  // Predicated region
  $region18: #{gat_forward.5} parent=0 // pred_check
    _
  $region19: #{gat_forward.5} parent=0 // pred_check_branch
    %238 = sbr.rel (0) target = $region21
  $region20: #{gat_forward.5} parent=0 // pred_region
    _
  $region21: #{gat_forward.5} parent=0 // pred_fallthru
    _

// kernel: gat_forward.4
$region0: #{gat_forward.4}
  #allocation0 [shape = 'u32[]', space=smem, size = 0x4, offset = 0x4, fixed_abs, tag = 'smem constant byte address 0x4 - core index']
  #allocation1 [shape = 'u32[144,128]{1,0:T(1,128)}', space=vmem, size = 0x12000, scoped, tag = 'internal scratch']
  %s0 = inlined_call_operand.vmem [shape: f32[8,12,32], index: 0, kind: input, shape index: {}]
  %s1 = inlined_call_operand.vmem [shape: bf16[32,256], index: 1, kind: input, shape index: {}]
  %s2 = inlined_call_operand.vmem [shape: bf16[8,32], index: 2, kind: input, shape index: {}]
  %s3 = inlined_call_operand.vmem [shape: bf16[32,8], index: 3, kind: input, shape index: {}]
  %s4 = inlined_call_operand.vmem [shape: f32[1,256], index: 4, kind: input, shape index: {}]
  %s5 = inlined_call_operand.vmem [shape: s8[8,12], index: 5, kind: input, shape index: {}]
  %s6 = inlined_call_operand.vmem [shape: f32[8,8,256], index: 6, kind: output, shape index: {}]
  %s7 = sld [smem:[#allocation0]]
  $region57: #{gat_forward.4} parent=0
    _
  %s9 = ssub.s32 1, %s7
  %s10 = scalar_select 0, %s9, %s7
  loop: start=0, step=1, limit=10
  $region2: #{gat_forward.4} parent=0 // loop_pre_header
    _
  $region3: #{gat_forward.4} parent=0 // loop_header
    %s12 = sphi 0, %s16
    %p13 = scmp.ge.s32.totalorder %s12, 10
    %s22 = sphi 0, %s24
    %s25 = sphi 0, %s22
    %s26 = sphi 0, %s25
    %s42 = sphi 0, %s26
    %s46 = sphi 0, %s46
    %s48 = sphi 0, %s46
    %s49 = sphi 0, %s48
    %s63 = sphi 0, %s49
    %s67 = sphi 0, %s67
    %s69 = sphi 0, %s67
    %s70 = sphi 0, %s69
    %s84 = sphi 0, %s70
    %s88 = sphi 0, %s88
    %s90 = sphi 0, %s88
    %s91 = sphi 0, %s90
    %s105 = sphi 0, %s91
    %s109 = sphi 0, %s109
    %s111 = sphi 0, %s109
    %s112 = sphi 0, %s111
    %s126 = sphi 0, %s112
    %s130 = sphi 0, %s130
    %s132 = sphi 0, %s130
    %s133 = sphi 0, %s132
    %s147 = sphi 0, %s133
    %s153 = sphi 0, %s155
    %s156 = sphi 0, %s153
    %s157 = sphi 0, %s156
    %s173 = sphi 0, %s157
  $region4: #{gat_forward.4} parent=0 // loop_header_branch
    %15 = sbr.rel (%p13) target = $region8
  $region5: #{gat_forward.4} parent=0 // loop_body
    %s17 = ssub.s32 %s12, 1
    %s18 = ssub.s32 %s12, 2
    %s19 = sadd.s32 %s12, 1
    %s20 = ssub.s32 %s12, %s19
    %p21 = scmp.eq.s32.totalorder %s20, 0
    %s23 = sadd.s32 %s22, 1
    %s24 = scalar_select %p21, %s22, %s23
    %p27 = pneg %p21
    %p28 = scmp.eq.s32.totalorder %s12, 7
    %p29 = por %p27, %p28
    %p30 = scmp.ne.s32.totalorder %s22, %s25
    %p31 = scmp.eq.s32.totalorder %s12, 0
    %p32 = por %p30, %p31
    %p33 = scmp.ne.s32.totalorder %s22, %s25
    %p34 = scmp.eq.s32.totalorder %s17, 7
    %p35 = por %p33, %p34
    %p36 = scmp.ne.s32.totalorder %s25, %s26
    %p37 = scmp.eq.s32.totalorder %s17, 0
    %p38 = por %p36, %p37
    %p39 = scmp.ne.s32.totalorder %s25, %s26
    %p40 = scmp.eq.s32.totalorder %s18, 7
    %p41 = por %p39, %p40
    %p43 = scmp.ne.s32.totalorder %s26, %s42
    %p44 = scmp.eq.s32.totalorder %s18, 0
    %p45 = por %p43, %p44
    %s47 = sadd.s32 %s46, 1
    %p50 = scmp.eq.s32.totalorder %s12, 7
    %p51 = scmp.ne.s32.totalorder %s46, %s48
    %p52 = scmp.eq.s32.totalorder %s12, 0
    %p53 = por %p51, %p52
    %p54 = scmp.ne.s32.totalorder %s46, %s48
    %p55 = scmp.eq.s32.totalorder %s17, 7
    %p56 = por %p54, %p55
    %p57 = scmp.ne.s32.totalorder %s48, %s49
    %p58 = scmp.eq.s32.totalorder %s17, 0
    %p59 = por %p57, %p58
    %p60 = scmp.ne.s32.totalorder %s48, %s49
    %p61 = scmp.eq.s32.totalorder %s18, 7
    %p62 = por %p60, %p61
    %p64 = scmp.ne.s32.totalorder %s49, %s63
    %p65 = scmp.eq.s32.totalorder %s18, 0
    %p66 = por %p64, %p65
    %s68 = sadd.s32 %s67, 1
    %p71 = scmp.eq.s32.totalorder %s12, 7
    %p72 = scmp.ne.s32.totalorder %s67, %s69
    %p73 = scmp.eq.s32.totalorder %s12, 0
    %p74 = por %p72, %p73
    %p75 = scmp.ne.s32.totalorder %s67, %s69
    %p76 = scmp.eq.s32.totalorder %s17, 7
    %p77 = por %p75, %p76
    %p78 = scmp.ne.s32.totalorder %s69, %s70
    %p79 = scmp.eq.s32.totalorder %s17, 0
    %p80 = por %p78, %p79
    %p81 = scmp.ne.s32.totalorder %s69, %s70
    %p82 = scmp.eq.s32.totalorder %s18, 7
    %p83 = por %p81, %p82
    %p85 = scmp.ne.s32.totalorder %s70, %s84
    %p86 = scmp.eq.s32.totalorder %s18, 0
    %p87 = por %p85, %p86
    %s89 = sadd.s32 %s88, 1
    %p92 = scmp.eq.s32.totalorder %s12, 7
    %p93 = scmp.ne.s32.totalorder %s88, %s90
    %p94 = scmp.eq.s32.totalorder %s12, 0
    %p95 = por %p93, %p94
    %p96 = scmp.ne.s32.totalorder %s88, %s90
    %p97 = scmp.eq.s32.totalorder %s17, 7
    %p98 = por %p96, %p97
    %p99 = scmp.ne.s32.totalorder %s90, %s91
    %p100 = scmp.eq.s32.totalorder %s17, 0
    %p101 = por %p99, %p100
    %p102 = scmp.ne.s32.totalorder %s90, %s91
    %p103 = scmp.eq.s32.totalorder %s18, 7
    %p104 = por %p102, %p103
    %p106 = scmp.ne.s32.totalorder %s91, %s105
    %p107 = scmp.eq.s32.totalorder %s18, 0
    %p108 = por %p106, %p107
    %s110 = sadd.s32 %s109, 1
    %p113 = scmp.eq.s32.totalorder %s12, 7
    %p114 = scmp.ne.s32.totalorder %s109, %s111
    %p115 = scmp.eq.s32.totalorder %s12, 0
    %p116 = por %p114, %p115
    %p117 = scmp.ne.s32.totalorder %s109, %s111
    %p118 = scmp.eq.s32.totalorder %s17, 7
    %p119 = por %p117, %p118
    %p120 = scmp.ne.s32.totalorder %s111, %s112
    %p121 = scmp.eq.s32.totalorder %s17, 0
    %p122 = por %p120, %p121
    %p123 = scmp.ne.s32.totalorder %s111, %s112
    %p124 = scmp.eq.s32.totalorder %s18, 7
    %p125 = por %p123, %p124
    %p127 = scmp.ne.s32.totalorder %s112, %s126
    %p128 = scmp.eq.s32.totalorder %s18, 0
    %p129 = por %p127, %p128
    %s131 = sadd.s32 %s130, 1
    %p134 = scmp.eq.s32.totalorder %s12, 7
    %p135 = scmp.ne.s32.totalorder %s130, %s132
    %p136 = scmp.eq.s32.totalorder %s12, 0
    %p137 = por %p135, %p136
    %p138 = scmp.ne.s32.totalorder %s130, %s132
    %p139 = scmp.eq.s32.totalorder %s17, 7
    %p140 = por %p138, %p139
    %p141 = scmp.ne.s32.totalorder %s132, %s133
    %p142 = scmp.eq.s32.totalorder %s17, 0
    %p143 = por %p141, %p142
    %p144 = scmp.ne.s32.totalorder %s132, %s133
    %p145 = scmp.eq.s32.totalorder %s18, 7
    %p146 = por %p144, %p145
    %p148 = scmp.ne.s32.totalorder %s133, %s147
    %p149 = scmp.eq.s32.totalorder %s18, 0
    %p150 = por %p148, %p149
    %s151 = ssub.s32 %s12, %s19
    %p152 = scmp.eq.s32.totalorder %s151, 0
    %s154 = sadd.s32 %s153, 1
    %s155 = scalar_select %p152, %s153, %s154
    %p158 = pneg %p152
    %p159 = scmp.eq.s32.totalorder %s12, 7
    %p160 = por %p158, %p159
    %p161 = scmp.ne.s32.totalorder %s153, %s156
    %p162 = scmp.eq.s32.totalorder %s12, 0
    %p163 = por %p161, %p162
    %p164 = scmp.ne.s32.totalorder %s153, %s156
    %p165 = scmp.eq.s32.totalorder %s17, 7
    %p166 = por %p164, %p165
    %p167 = scmp.ne.s32.totalorder %s156, %s157
    %p168 = scmp.eq.s32.totalorder %s17, 0
    %p169 = por %p167, %p168
    %p170 = scmp.ne.s32.totalorder %s156, %s157
    %p171 = scmp.eq.s32.totalorder %s18, 7
    %p172 = por %p170, %p171
    %p174 = scmp.ne.s32.totalorder %s157, %s173
    %p175 = scmp.eq.s32.totalorder %s18, 0
    %p176 = por %p174, %p175
    %p177 = scmp.le.s32.totalorder 1, %s12
    %p178 = scmp.lt.s32.totalorder %s12, 9
    %p179 = pnand %p177, %p178
    %p180 = pneg %p179
    // Predicated region
    $region9: #{gat_forward.4} parent=5 // pred_check
      _
    $region10: #{gat_forward.4} parent=5 // pred_check_branch
      %182 = sbr.rel (%p179) target = $region12
    $region11: #{gat_forward.4} parent=5 // pred_region
      %s183 = ssub.s32 %s12, 1
      // Predicated region
      $region13: #{gat_forward.4} parent=11 // pred_check
        %p184 = pneg %p59
      $region14: #{gat_forward.4} parent=11 // pred_check_branch
        %186 = sbr.rel (%p184) target = $region16
      $region15: #{gat_forward.4} parent=11 // pred_region
        _
      $region16: #{gat_forward.4} parent=11 // pred_fallthru
        _
      // Predicated region
      $region17: #{gat_forward.4} parent=11 // pred_check
        %p187 = pneg %p80
      $region18: #{gat_forward.4} parent=11 // pred_check_branch
        %189 = sbr.rel (%p187) target = $region20
      $region19: #{gat_forward.4} parent=11 // pred_region
        _
      $region20: #{gat_forward.4} parent=11 // pred_fallthru
        _
      // Predicated region
      $region21: #{gat_forward.4} parent=11 // pred_check
        %p190 = pneg %p101
      $region22: #{gat_forward.4} parent=11 // pred_check_branch
        %192 = sbr.rel (%p190) target = $region24
      $region23: #{gat_forward.4} parent=11 // pred_region
        _
      $region24: #{gat_forward.4} parent=11 // pred_fallthru
        _
      // Predicated region
      $region25: #{gat_forward.4} parent=11 // pred_check
        %p193 = pneg %p122
      $region26: #{gat_forward.4} parent=11 // pred_check_branch
        %195 = sbr.rel (%p193) target = $region28
      $region27: #{gat_forward.4} parent=11 // pred_region
        _
      $region28: #{gat_forward.4} parent=11 // pred_fallthru
        _
      // Predicated region
      $region29: #{gat_forward.4} parent=11 // pred_check
        %p196 = pneg %p143
      $region30: #{gat_forward.4} parent=11 // pred_check_branch
        %198 = sbr.rel (%p196) target = $region32
      $region31: #{gat_forward.4} parent=11 // pred_region
        _
      $region32: #{gat_forward.4} parent=11 // pred_fallthru
        _
    $region12: #{gat_forward.4} parent=5 // pred_fallthru
      _
    %p199 = scmp.lt.s32.totalorder %s12, 8
    // Predicated region
    $region33: #{gat_forward.4} parent=5 // pred_check
      %p200 = pneg %p199
    $region34: #{gat_forward.4} parent=5 // pred_check_branch
      %202 = sbr.rel (%p200) target = $region36
    $region35: #{gat_forward.4} parent=5 // pred_region
      // Predicated region
      $region37: #{gat_forward.4} parent=35 // pred_check
        %p203 = pneg %p32
      $region38: #{gat_forward.4} parent=35 // pred_check_branch
        %205 = sbr.rel (%p203) target = $region40
      $region39: #{gat_forward.4} parent=35 // pred_region
        %p206 = scmp.lt.s32.totalorder %s12, 7
        %s207 = scalar_select %p206, %s12, 7
        %s208 = smul.addr %s207, 2
        %s209 = smul.addr %s208, 8
        %s210 = scalar_lea.vmem %s0, %s209
      $region40: #{gat_forward.4} parent=35 // pred_fallthru
        _
    $region36: #{gat_forward.4} parent=5 // pred_fallthru
      _
    %p211 = scmp.le.s32.totalorder 1, %s12
    %p212 = scmp.lt.s32.totalorder %s12, 9
    %p213 = pnand %p211, %p212
    %p214 = pneg %p213
    // Predicated region
    $region41: #{gat_forward.4} parent=5 // pred_check
      _
    $region42: #{gat_forward.4} parent=5 // pred_check_branch
      %216 = sbr.rel (%p213) target = $region44
    $region43: #{gat_forward.4} parent=5 // pred_region
      %s217 = ssub.s32 %s12, 1
      %p218 = scmp.lt.s32.totalorder %s17, 7
      %s219 = scalar_select %p218, %s17, 7
      %s220 = smul.addr %s219, 2
      %s221 = smul.addr %s220, 8
      %s222 = scalar_lea.vmem %s0, %s221
      %p223 = pneg %p38
      %p224 = pneg %p35
      %p225 = pneg %p59
      %p226 = pneg %p56
      %p227 = pneg %p80
      %p228 = pneg %p77
      %p229 = pneg %p101
      %p230 = pneg %p98
      %p231 = pneg %p122
      %p232 = pneg %p119
      %p233 = pneg %p143
      %p234 = pneg %p140
      %p235 = pneg %p169
      %p236 = pneg %p166
      %p237 = scmp.lt.s32.totalorder %s17, 7
      %s238 = scalar_select %p237, %s17, 7
      %s239 = smul.addr %s238, 2
      %s240 = smul.addr %s239, 8
      %s241 = scalar_lea.vmem %s6, %s240
      %p242 = scmp.lt.s32.totalorder %s17, 7
      %s243 = scalar_select %p242, %s17, 7
      %s244 = smul.addr %s243, 2
      %s245 = smul.addr %s244, 8
      %s246 = scalar_lea.vmem %s0, %s245
      %p247 = scmp.lt.s32.totalorder %s17, 7
      %s248 = scalar_select %p247, %s17, 7
      %s249 = smul.addr %s248, 2
      %s250 = smul.addr %s249, 8
      %s251 = scalar_lea.vmem %s6, %s250
      %v253 = vld [vmem:[%s246] sm:$0xff]
      %v254 = vld [vmem:[%s246 + $0x8] sm:$0xf]
      %v255 = vpack.c.bf16 %v254, %v253
      %v256 = vld [vmem:[%s1] sm:$0xff]
      %v257 = vld [vmem:[%s1 + $0x8] sm:$0xff]
      %v258 = vld [vmem:[%s1 + $0x10] sm:$0xff]
      %v259 = vld [vmem:[%s1 + $0x18] sm:$0xff]
      %v264 = vunpack.c.l.b16 %v256
      %v265 = vunpack.c.h.b16 %v256
      %v266 = vunpack.c.l.b16 %v257
      %v267 = vunpack.c.h.b16 %v257
      %v268 = vunpack.c.l.b16 %v258
      %v269 = vunpack.c.h.b16 %v258
      %v270 = vunpack.c.l.b16 %v259
      %v271 = vunpack.c.h.b16 %v259
      %v272 = vpack.c.b16 %v266, %v264
      %v273 = vpack.c.b16 %v267, %v265
      %v274 = vpack.c.b16 %v270, %v268
      %v275 = vpack.c.b16 %v271, %v269
      %vm280 = vcmask 261120
      %v282 = vsel %vm280, %v255, 0
      %284 = vmatprep.subr.bf16.mxu0 %v273
      %285 = vmatpush1.bf16.msra.mxu0 %v272
      %286 = vmatprep.subr.bf16.mxu0 %v275
      %287 = vmatpush1.bf16.msra.mxu0 %v274
      %288 = vmatprep.subr.bf16.mxu0 0
      %289 = vmatpush1.bf16.msra.mxu0 0
      %290 = vmatprep.subr.bf16.mxu0 0
      %291 = vmatpush1.bf16.msra.mxu0 0
      %292 = vmatprep.subr.bf16.mxu0 0
      %293 = vmatpush1.bf16.msra.mxu0 0
      %294 = vmatprep.subr.bf16.mxu0 0
      %295 = vmatpush1.bf16.msra.mxu0 0
      %296 = vmatprep.subr.bf16.mxu0 0
      %297 = vmatpush1.bf16.msra.mxu0 0
      %298 = vmatprep.subr.bf16.mxu0 0
      %299 = vmatpush1.bf16.msra.mxu0 0
      %300 = vmatprep.subr.bf16.mxu0 0
      %301 = vmatpush1.bf16.msra.mxu0 0
      %302 = vmatprep.subr.bf16.mxu0 0
      %303 = vmatpush1.bf16.msra.mxu0 0
      %304 = vmatprep.subr.bf16.mxu0 0
      %305 = vmatpush1.bf16.msra.mxu0 0
      %306 = vmatprep.subr.bf16.mxu0 0
      %307 = vmatpush1.bf16.msra.mxu0 0
      %308 = vmatprep.subr.bf16.mxu0 0
      %309 = vmatpush1.bf16.msra.mxu0 0
      %310 = vmatprep.subr.bf16.mxu0 0
      %311 = vmatpush1.bf16.msra.mxu0 0
      %312 = vmatprep.subr.bf16.mxu0 0
      %313 = vmatpush1.bf16.msra.mxu0 0
      %314 = vmatprep.subr.bf16.mxu0 0
      %315 = vmatpush1.bf16.msra.mxu0 0
      %316 = vmatprep.mubr.bf16.mxu0 0
      %317 = vmatmul.mubr.bf16.gmra.mrb[0].mxu0 %v282
      %v318 = vpop.f32.mrb[0].mxu0
      %v319 = vadd.f32 0.0, %v318
      %v320 = vpop.f32.mrb[0].mxu0
      %v321 = vadd.f32 0.0, %v320
      %v322 = vpop.f32.mrb[0].mxu0
      %v323 = vadd.f32 0.0, %v322
      %v324 = vpop.f32.mrb[0].mxu0
      %v325 = vadd.f32 0.0, %v324
      %326 = vdwg.mxu0
      %v327 = vld [vmem:[%s2] sm:$0xf]
      %v329 = vsel %vm280, %v327, 0
      %331 = vmatprep.subr.bf16.mxu0 0
      %332 = vmatpush1.bf16.xpose.msra.mxu0 %v282
      %333 = vmatprep.subr.bf16.mxu0 0
      %334 = vmatpush1.bf16.xpose.msra.mxu0 0
      %335 = vmatprep.subr.bf16.mxu0 0
      %336 = vmatpush1.bf16.xpose.msra.mxu0 0
      %337 = vmatprep.subr.bf16.mxu0 0
      %338 = vmatpush1.bf16.xpose.msra.mxu0 0
      %339 = vmatprep.subr.bf16.mxu0 0
      %340 = vmatpush1.bf16.xpose.msra.mxu0 0
      %341 = vmatprep.subr.bf16.mxu0 0
      %342 = vmatpush1.bf16.xpose.msra.mxu0 0
      %343 = vmatprep.subr.bf16.mxu0 0
      %344 = vmatpush1.bf16.xpose.msra.mxu0 0
      %345 = vmatprep.subr.bf16.mxu0 0
      %346 = vmatpush1.bf16.xpose.msra.mxu0 0
      %347 = vmatprep.subr.bf16.mxu0 0
      %348 = vmatpush1.bf16.xpose.msra.mxu0 0
      %349 = vmatprep.subr.bf16.mxu0 0
      %350 = vmatpush1.bf16.xpose.msra.mxu0 0
      %351 = vmatprep.subr.bf16.mxu0 0
      %352 = vmatpush1.bf16.xpose.msra.mxu0 0
      %353 = vmatprep.subr.bf16.mxu0 0
      %354 = vmatpush1.bf16.xpose.msra.mxu0 0
      %355 = vmatprep.subr.bf16.mxu0 0
      %356 = vmatpush1.bf16.xpose.msra.mxu0 0
      %357 = vmatprep.subr.bf16.mxu0 0
      %358 = vmatpush1.bf16.xpose.msra.mxu0 0
      %359 = vmatprep.subr.bf16.mxu0 0
      %360 = vmatpush1.bf16.xpose.msra.mxu0 0
      %361 = vmatprep.subr.bf16.mxu0 0
      %362 = vmatpush1.bf16.xpose.msra.mxu0 0
      %363 = vmatprep.mubr.bf16.mxu0 0
      %364 = vmatmul.mubr.bf16.gmra.mrb[0].mxu0 %v329
      %v365 = vpop.f32.mrb[0].mxu0
      %v366 = vadd.f32 0.0, %v365
      %v367 = vpop.f32.mrb[0].mxu0
      %v368 = vpop.f32.mrb[0].mxu0
      %v369 = vpop.f32.mrb[0].mxu0
      %370 = vdwg.mxu0
      %v371 = vld [vmem:[%s3] sm:$0xf]
      %v372 = vld [vmem:[%s3 + $0x4] sm:$0xf]
      %v373 = vld [vmem:[%s3 + $0x8] sm:$0xf]
      %v374 = vld [vmem:[%s3 + $0xc] sm:$0xf]
      %v379 = vunpack.c.l.b16 %v371
      %v380 = vunpack.c.l.b16 %v372
      %v381 = vunpack.c.l.b16 %v373
      %v382 = vunpack.c.l.b16 %v374
      %v383 = vpack.c.b16 %v380, %v379
      %v384 = vpack.c.b16 %v382, %v381
      %387 = vmatprep.subr.bf16.mxu0 0
      %388 = vmatpush1.bf16.msra.mxu0 %v383
      %389 = vmatprep.subr.bf16.mxu0 0
      %390 = vmatpush1.bf16.msra.mxu0 %v384
      %391 = vmatprep.subr.bf16.mxu0 0
      %392 = vmatpush1.bf16.msra.mxu0 0
      %393 = vmatprep.subr.bf16.mxu0 0
      %394 = vmatpush1.bf16.msra.mxu0 0
      %395 = vmatprep.subr.bf16.mxu0 0
      %396 = vmatpush1.bf16.msra.mxu0 0
      %397 = vmatprep.subr.bf16.mxu0 0
      %398 = vmatpush1.bf16.msra.mxu0 0
      %399 = vmatprep.subr.bf16.mxu0 0
      %400 = vmatpush1.bf16.msra.mxu0 0
      %401 = vmatprep.subr.bf16.mxu0 0
      %402 = vmatpush1.bf16.msra.mxu0 0
      %403 = vmatprep.subr.bf16.mxu0 0
      %404 = vmatpush1.bf16.msra.mxu0 0
      %405 = vmatprep.subr.bf16.mxu0 0
      %406 = vmatpush1.bf16.msra.mxu0 0
      %407 = vmatprep.subr.bf16.mxu0 0
      %408 = vmatpush1.bf16.msra.mxu0 0
      %409 = vmatprep.subr.bf16.mxu0 0
      %410 = vmatpush1.bf16.msra.mxu0 0
      %411 = vmatprep.subr.bf16.mxu0 0
      %412 = vmatpush1.bf16.msra.mxu0 0
      %413 = vmatprep.subr.bf16.mxu0 0
      %414 = vmatpush1.bf16.msra.mxu0 0
      %415 = vmatprep.subr.bf16.mxu0 0
      %416 = vmatpush1.bf16.msra.mxu0 0
      %417 = vmatprep.subr.bf16.mxu0 0
      %418 = vmatpush1.bf16.msra.mxu0 0
      %419 = vmatprep.mubr.bf16.mxu0 0
      %420 = vmatmul.mubr.bf16.gmra.mrb[0].mxu0 %v282
      %v421 = vpop.f32.mrb[0].mxu0
      %v422 = vadd.f32 0.0, %v421
      %v423 = vpop.f32.mrb[0].mxu0
      %v424 = vpop.f32.mrb[0].mxu0
      %v425 = vpop.f32.mrb[0].mxu0
      %426 = vdwg.mxu0
      %v427 = vld [vmem:[%s5] sm:$0x3]
      %v428 = vunpack.c.0.s8 %v427
      %v429 = vcvt.s32.f32 %v428
      %vm430 = vcmp.gt.f32.partialorder %v429, 0.0
      %v431 = vpack.c.bf16 %v323, %v319
      %v432 = vpack.c.bf16 %v325, %v321
      %434 = vset.pattern.permute.xlu0 0
      %435 = vperm.xlu0 %434, %v422
      %v436 = vpop.permute.xlu0 %435
      %v438 = vlaneseq
      %v439 = vshrl.u32 %v438, 7
      %v440 = vsub.s32 0, %v439
      %v441 = vrot.slane %v366, %v440
      %v442 = vadd.f32 %v436, %v441
      %vm443 = vcmp.gt.f32.partialorder %v442, 0.0
      %v444 = vmul.f32 %v442, 0.2
      %v445 = vsel %vm443, %v442, %v444
      %v446 = vsel %vm430, %v445, -1e+30
      %vm447 = vcmask 97280
      %v448 = vsel %vm447, %v446, -inf
      %449 = vmax.xlane.f32.xlu0 %v448
      %v450 = vpop.xlane.xlu0 %449
      %v451 = vsub.f32 %v446, %v450
      %v452 = vmul.f32 %v451, 1.442695
      %v453 = vpow.pop %v452
      %v454 = vsel %vm447, %v453, 0.0
      %455 = vadd.xlane.f32.xlu0 %v454
      %v456 = vpop.xlane.xlu0 %455
      %v457 = vrcp.pop %v456
      %v458 = vmul.f32 %v453, %v457
      %v459 = vpack.c.bf16 %v458, %v458
      %v461 = vsel %vm447, %v459, 0
      %vm463 = vcmask 1045504
      %v465 = vsel %vm463, %v431, 0
      %467 = vmatprep.subr.bf16.mxu0 0
      %468 = vmatpush1.bf16.msra.mxu0 %v465
      %469 = vmatprep.subr.bf16.mxu0 0
      %470 = vmatpush1.bf16.msra.mxu0 0
      %471 = vmatprep.subr.bf16.mxu0 0
      %472 = vmatpush1.bf16.msra.mxu0 0
      %473 = vmatprep.subr.bf16.mxu0 0
      %474 = vmatpush1.bf16.msra.mxu0 0
      %475 = vmatprep.subr.bf16.mxu0 0
      %476 = vmatpush1.bf16.msra.mxu0 0
      %477 = vmatprep.subr.bf16.mxu0 0
      %478 = vmatpush1.bf16.msra.mxu0 0
      %479 = vmatprep.subr.bf16.mxu0 0
      %480 = vmatpush1.bf16.msra.mxu0 0
      %481 = vmatprep.subr.bf16.mxu0 0
      %482 = vmatpush1.bf16.msra.mxu0 0
      %483 = vmatprep.subr.bf16.mxu0 0
      %484 = vmatpush1.bf16.msra.mxu0 0
      %485 = vmatprep.subr.bf16.mxu0 0
      %486 = vmatpush1.bf16.msra.mxu0 0
      %487 = vmatprep.subr.bf16.mxu0 0
      %488 = vmatpush1.bf16.msra.mxu0 0
      %489 = vmatprep.subr.bf16.mxu0 0
      %490 = vmatpush1.bf16.msra.mxu0 0
      %491 = vmatprep.subr.bf16.mxu0 0
      %492 = vmatpush1.bf16.msra.mxu0 0
      %493 = vmatprep.subr.bf16.mxu0 0
      %494 = vmatpush1.bf16.msra.mxu0 0
      %495 = vmatprep.subr.bf16.mxu0 0
      %496 = vmatpush1.bf16.msra.mxu0 0
      %497 = vmatprep.subr.bf16.mxu0 0
      %498 = vmatpush1.bf16.msra.mxu0 0
      %499 = vmatprep.mubr.bf16.mxu0 0
      %500 = vmatmul.mubr.bf16.gmra.mrb[0].mxu0 %v461
      %v501 = vpop.f32.mrb[0].mxu0
      %v502 = vadd.f32 0.0, %v501
      %v503 = vpop.f32.mrb[0].mxu0
      %v504 = vpop.f32.mrb[0].mxu0
      %v505 = vpop.f32.mrb[0].mxu0
      %506 = vdwg.mxu0
      %507 = vset.pattern.permute.xlu0 1
      %508 = vperm.xlu0 %507, %v422
      %v509 = vpop.permute.xlu0 %508
      %v511 = vlaneseq
      %v512 = vshrl.u32 %v511, 7
      %v513 = vsub.s32 1, %v512
      %v514 = vrot.slane %v366, %v513
      %v515 = vadd.f32 %v509, %v514
      %vm516 = vcmp.gt.f32.partialorder %v515, 0.0
      %v517 = vmul.f32 %v515, 0.2
      %v518 = vsel %vm516, %v515, %v517
      %v519 = vsel %vm430, %v518, -1e+30
      %v520 = vsel %vm447, %v519, -inf
      %521 = vmax.xlane.f32.xlu0 %v520
      %v522 = vpop.xlane.xlu0 %521
      %v523 = vsub.f32 %v519, %v522
      %v524 = vmul.f32 %v523, 1.442695
      %v525 = vpow.pop %v524
      %v526 = vsel %vm447, %v525, 0.0
      %527 = vadd.xlane.f32.xlu0 %v526
      %v528 = vpop.xlane.xlu0 %527
      %v529 = vrcp.pop %v528
      %v530 = vmul.f32 %v525, %v529
      %v531 = vpack.c.bf16 %v530, %v530
      %533 = vrot.lane.b32.xlu0 %v431, 96
      %v534 = vpop.permute.xlu0 %533
      %v536 = vsel %vm447, %v531, 0
      %v539 = vsel %vm463, %v534, 0
      %541 = vmatprep.subr.bf16.mxu0 0
      %542 = vmatpush1.bf16.msra.mxu0 %v539
      %543 = vmatprep.subr.bf16.mxu0 0
      %544 = vmatpush1.bf16.msra.mxu0 0
      %545 = vmatprep.subr.bf16.mxu0 0
      %546 = vmatpush1.bf16.msra.mxu0 0
      %547 = vmatprep.subr.bf16.mxu0 0
      %548 = vmatpush1.bf16.msra.mxu0 0
      %549 = vmatprep.subr.bf16.mxu0 0
      %550 = vmatpush1.bf16.msra.mxu0 0
      %551 = vmatprep.subr.bf16.mxu0 0
      %552 = vmatpush1.bf16.msra.mxu0 0
      %553 = vmatprep.subr.bf16.mxu0 0
      %554 = vmatpush1.bf16.msra.mxu0 0
      %555 = vmatprep.subr.bf16.mxu0 0
      %556 = vmatpush1.bf16.msra.mxu0 0
      %557 = vmatprep.subr.bf16.mxu0 0
      %558 = vmatpush1.bf16.msra.mxu0 0
      %559 = vmatprep.subr.bf16.mxu0 0
      %560 = vmatpush1.bf16.msra.mxu0 0
      %561 = vmatprep.subr.bf16.mxu0 0
      %562 = vmatpush1.bf16.msra.mxu0 0
      %563 = vmatprep.subr.bf16.mxu0 0
      %564 = vmatpush1.bf16.msra.mxu0 0
      %565 = vmatprep.subr.bf16.mxu0 0
      %566 = vmatpush1.bf16.msra.mxu0 0
      %567 = vmatprep.subr.bf16.mxu0 0
      %568 = vmatpush1.bf16.msra.mxu0 0
      %569 = vmatprep.subr.bf16.mxu0 0
      %570 = vmatpush1.bf16.msra.mxu0 0
      %571 = vmatprep.subr.bf16.mxu0 0
      %572 = vmatpush1.bf16.msra.mxu0 0
      %573 = vmatprep.mubr.bf16.mxu0 0
      %574 = vmatmul.mubr.bf16.gmra.mrb[0].mxu0 %v536
      %v575 = vpop.f32.mrb[0].mxu0
      %v576 = vadd.f32 0.0, %v575
      %v577 = vpop.f32.mrb[0].mxu0
      %v578 = vpop.f32.mrb[0].mxu0
      %v579 = vpop.f32.mrb[0].mxu0
      %580 = vdwg.mxu0
      %581 = vset.pattern.permute.xlu0 2
      %582 = vperm.xlu0 %581, %v422
      %v583 = vpop.permute.xlu0 %582
      %v585 = vlaneseq
      %v586 = vshrl.u32 %v585, 7
      %v587 = vsub.s32 2, %v586
      %v588 = vrot.slane %v366, %v587
      %v589 = vadd.f32 %v583, %v588
      %vm590 = vcmp.gt.f32.partialorder %v589, 0.0
      %v591 = vmul.f32 %v589, 0.2
      %v592 = vsel %vm590, %v589, %v591
      %v593 = vsel %vm430, %v592, -1e+30
      %v594 = vsel %vm447, %v593, -inf
      %595 = vmax.xlane.f32.xlu0 %v594
      %v596 = vpop.xlane.xlu0 %595
      %v597 = vsub.f32 %v593, %v596
      %v598 = vmul.f32 %v597, 1.442695
      %v599 = vpow.pop %v598
      %v600 = vsel %vm447, %v599, 0.0
      %601 = vadd.xlane.f32.xlu0 %v600
      %v602 = vpop.xlane.xlu0 %601
      %v603 = vrcp.pop %v602
      %v604 = vmul.f32 %v599, %v603
      %v605 = vpack.c.bf16 %v604, %v604
      %606 = vrot.lane.b32.xlu0 %v431, 64
      %v607 = vpop.permute.xlu0 %606
      %v609 = vsel %vm447, %v605, 0
      %v612 = vsel %vm463, %v607, 0
      %614 = vmatprep.subr.bf16.mxu0 0
      %615 = vmatpush1.bf16.msra.mxu0 %v612
      %616 = vmatprep.subr.bf16.mxu0 0
      %617 = vmatpush1.bf16.msra.mxu0 0
      %618 = vmatprep.subr.bf16.mxu0 0
      %619 = vmatpush1.bf16.msra.mxu0 0
      %620 = vmatprep.subr.bf16.mxu0 0
      %621 = vmatpush1.bf16.msra.mxu0 0
      %622 = vmatprep.subr.bf16.mxu0 0
      %623 = vmatpush1.bf16.msra.mxu0 0
      %624 = vmatprep.subr.bf16.mxu0 0
      %625 = vmatpush1.bf16.msra.mxu0 0
      %626 = vmatprep.subr.bf16.mxu0 0
      %627 = vmatpush1.bf16.msra.mxu0 0
      %628 = vmatprep.subr.bf16.mxu0 0
      %629 = vmatpush1.bf16.msra.mxu0 0
      %630 = vmatprep.subr.bf16.mxu0 0
      %631 = vmatpush1.bf16.msra.mxu0 0
      %632 = vmatprep.subr.bf16.mxu0 0
      %633 = vmatpush1.bf16.msra.mxu0 0
      %634 = vmatprep.subr.bf16.mxu0 0
      %635 = vmatpush1.bf16.msra.mxu0 0
      %636 = vmatprep.subr.bf16.mxu0 0
      %637 = vmatpush1.bf16.msra.mxu0 0
      %638 = vmatprep.subr.bf16.mxu0 0
      %639 = vmatpush1.bf16.msra.mxu0 0
      %640 = vmatprep.subr.bf16.mxu0 0
      %641 = vmatpush1.bf16.msra.mxu0 0
      %642 = vmatprep.subr.bf16.mxu0 0
      %643 = vmatpush1.bf16.msra.mxu0 0
      %644 = vmatprep.subr.bf16.mxu0 0
      %645 = vmatpush1.bf16.msra.mxu0 0
      %646 = vmatprep.mubr.bf16.mxu0 0
      %647 = vmatmul.mubr.bf16.gmra.mrb[0].mxu0 %v609
      %v648 = vpop.f32.mrb[0].mxu0
      %v649 = vadd.f32 0.0, %v648
      %v650 = vpop.f32.mrb[0].mxu0
      %v651 = vpop.f32.mrb[0].mxu0
      %v652 = vpop.f32.mrb[0].mxu0
      %653 = vdwg.mxu0
      %654 = vset.pattern.permute.xlu0 3
      %655 = vperm.xlu0 %654, %v422
      %v656 = vpop.permute.xlu0 %655
      %v658 = vlaneseq
      %v659 = vshrl.u32 %v658, 7
      %v660 = vsub.s32 3, %v659
      %v661 = vrot.slane %v366, %v660
      %v662 = vadd.f32 %v656, %v661
      %vm663 = vcmp.gt.f32.partialorder %v662, 0.0
      %v664 = vmul.f32 %v662, 0.2
      %v665 = vsel %vm663, %v662, %v664
      %v666 = vsel %vm430, %v665, -1e+30
      %v667 = vsel %vm447, %v666, -inf
      %668 = vmax.xlane.f32.xlu0 %v667
      %v669 = vpop.xlane.xlu0 %668
      %v670 = vsub.f32 %v666, %v669
      %v671 = vmul.f32 %v670, 1.442695
      %v672 = vpow.pop %v671
      %v673 = vsel %vm447, %v672, 0.0
      %674 = vadd.xlane.f32.xlu0 %v673
      %v675 = vpop.xlane.xlu0 %674
      %v676 = vrcp.pop %v675
      %v677 = vmul.f32 %v672, %v676
      %v678 = vpack.c.bf16 %v677, %v677
      %679 = vrot.lane.b32.xlu0 %v431, 32
      %v680 = vpop.permute.xlu0 %679
      %v682 = vsel %vm447, %v678, 0
      %v685 = vsel %vm463, %v680, 0
      %687 = vmatprep.subr.bf16.mxu0 0
      %688 = vmatpush1.bf16.msra.mxu0 %v685
      %689 = vmatprep.subr.bf16.mxu0 0
      %690 = vmatpush1.bf16.msra.mxu0 0
      %691 = vmatprep.subr.bf16.mxu0 0
      %692 = vmatpush1.bf16.msra.mxu0 0
      %693 = vmatprep.subr.bf16.mxu0 0
      %694 = vmatpush1.bf16.msra.mxu0 0
      %695 = vmatprep.subr.bf16.mxu0 0
      %696 = vmatpush1.bf16.msra.mxu0 0
      %697 = vmatprep.subr.bf16.mxu0 0
      %698 = vmatpush1.bf16.msra.mxu0 0
      %699 = vmatprep.subr.bf16.mxu0 0
      %700 = vmatpush1.bf16.msra.mxu0 0
      %701 = vmatprep.subr.bf16.mxu0 0
      %702 = vmatpush1.bf16.msra.mxu0 0
      %703 = vmatprep.subr.bf16.mxu0 0
      %704 = vmatpush1.bf16.msra.mxu0 0
      %705 = vmatprep.subr.bf16.mxu0 0
      %706 = vmatpush1.bf16.msra.mxu0 0
      %707 = vmatprep.subr.bf16.mxu0 0
      %708 = vmatpush1.bf16.msra.mxu0 0
      %709 = vmatprep.subr.bf16.mxu0 0
      %710 = vmatpush1.bf16.msra.mxu0 0
      %711 = vmatprep.subr.bf16.mxu0 0
      %712 = vmatpush1.bf16.msra.mxu0 0
      %713 = vmatprep.subr.bf16.mxu0 0
      %714 = vmatpush1.bf16.msra.mxu0 0
      %715 = vmatprep.subr.bf16.mxu0 0
      %716 = vmatpush1.bf16.msra.mxu0 0
      %717 = vmatprep.subr.bf16.mxu0 0
      %718 = vmatpush1.bf16.msra.mxu0 0
      %719 = vmatprep.mubr.bf16.mxu0 0
      %720 = vmatmul.mubr.bf16.gmra.mrb[0].mxu0 %v682
      %v721 = vpop.f32.mrb[0].mxu0
      %v722 = vadd.f32 0.0, %v721
      %v723 = vpop.f32.mrb[0].mxu0
      %v724 = vpop.f32.mrb[0].mxu0
      %v725 = vpop.f32.mrb[0].mxu0
      %726 = vdwg.mxu0
      %727 = vset.pattern.permute.xlu0 4
      %728 = vperm.xlu0 %727, %v422
      %v729 = vpop.permute.xlu0 %728
      %v731 = vlaneseq
      %v732 = vshrl.u32 %v731, 7
      %v733 = vsub.s32 4, %v732
      %v734 = vrot.slane %v366, %v733
      %v735 = vadd.f32 %v729, %v734
      %vm736 = vcmp.gt.f32.partialorder %v735, 0.0
      %v737 = vmul.f32 %v735, 0.2
      %v738 = vsel %vm736, %v735, %v737
      %v739 = vsel %vm430, %v738, -1e+30
      %v740 = vsel %vm447, %v739, -inf
      %741 = vmax.xlane.f32.xlu0 %v740
      %v742 = vpop.xlane.xlu0 %741
      %v743 = vsub.f32 %v739, %v742
      %v744 = vmul.f32 %v743, 1.442695
      %v745 = vpow.pop %v744
      %v746 = vsel %vm447, %v745, 0.0
      %747 = vadd.xlane.f32.xlu0 %v746
      %v748 = vpop.xlane.xlu0 %747
      %v749 = vrcp.pop %v748
      %v750 = vmul.f32 %v745, %v749
      %v751 = vpack.c.bf16 %v750, %v750
      %v753 = vsel %vm447, %v751, 0
      %v756 = vsel %vm463, %v432, 0
      %758 = vmatprep.subr.bf16.mxu0 0
      %759 = vmatpush1.bf16.msra.mxu0 %v756
      %760 = vmatprep.subr.bf16.mxu0 0
      %761 = vmatpush1.bf16.msra.mxu0 0
      %762 = vmatprep.subr.bf16.mxu0 0
      %763 = vmatpush1.bf16.msra.mxu0 0
      %764 = vmatprep.subr.bf16.mxu0 0
      %765 = vmatpush1.bf16.msra.mxu0 0
      %766 = vmatprep.subr.bf16.mxu0 0
      %767 = vmatpush1.bf16.msra.mxu0 0
      %768 = vmatprep.subr.bf16.mxu0 0
      %769 = vmatpush1.bf16.msra.mxu0 0
      %770 = vmatprep.subr.bf16.mxu0 0
      %771 = vmatpush1.bf16.msra.mxu0 0
      %772 = vmatprep.subr.bf16.mxu0 0
      %773 = vmatpush1.bf16.msra.mxu0 0
      %774 = vmatprep.subr.bf16.mxu0 0
      %775 = vmatpush1.bf16.msra.mxu0 0
      %776 = vmatprep.subr.bf16.mxu0 0
      %777 = vmatpush1.bf16.msra.mxu0 0
      %778 = vmatprep.subr.bf16.mxu0 0
      %779 = vmatpush1.bf16.msra.mxu0 0
      %780 = vmatprep.subr.bf16.mxu0 0
      %781 = vmatpush1.bf16.msra.mxu0 0
      %782 = vmatprep.subr.bf16.mxu0 0
      %783 = vmatpush1.bf16.msra.mxu0 0
      %784 = vmatprep.subr.bf16.mxu0 0
      %785 = vmatpush1.bf16.msra.mxu0 0
      %786 = vmatprep.subr.bf16.mxu0 0
      %787 = vmatpush1.bf16.msra.mxu0 0
      %788 = vmatprep.subr.bf16.mxu0 0
      %789 = vmatpush1.bf16.msra.mxu0 0
      %790 = vmatprep.mubr.bf16.mxu0 0
      %791 = vmatmul.mubr.bf16.gmra.mrb[0].mxu0 %v753
      %v792 = vpop.f32.mrb[0].mxu0
      %v793 = vadd.f32 0.0, %v792
      %v794 = vpop.f32.mrb[0].mxu0
      %v795 = vpop.f32.mrb[0].mxu0
      %v796 = vpop.f32.mrb[0].mxu0
      %797 = vdwg.mxu0
      %798 = vset.pattern.permute.xlu0 5
      %799 = vperm.xlu0 %798, %v422
      %v800 = vpop.permute.xlu0 %799
      %v802 = vlaneseq
      %v803 = vshrl.u32 %v802, 7
      %v804 = vsub.s32 5, %v803
      %v805 = vrot.slane %v366, %v804
      %v806 = vadd.f32 %v800, %v805
      %vm807 = vcmp.gt.f32.partialorder %v806, 0.0
      %v808 = vmul.f32 %v806, 0.2
      %v809 = vsel %vm807, %v806, %v808
      %v810 = vsel %vm430, %v809, -1e+30
      %v811 = vsel %vm447, %v810, -inf
      %812 = vmax.xlane.f32.xlu0 %v811
      %v813 = vpop.xlane.xlu0 %812
      %v814 = vsub.f32 %v810, %v813
      %v815 = vmul.f32 %v814, 1.442695
      %v816 = vpow.pop %v815
      %v817 = vsel %vm447, %v816, 0.0
      %818 = vadd.xlane.f32.xlu0 %v817
      %v819 = vpop.xlane.xlu0 %818
      %v820 = vrcp.pop %v819
      %v821 = vmul.f32 %v816, %v820
      %v822 = vpack.c.bf16 %v821, %v821
      %824 = vrot.lane.b32.xlu0 %v432, 96
      %v825 = vpop.permute.xlu0 %824
      %v827 = vsel %vm447, %v822, 0
      %v830 = vsel %vm463, %v825, 0
      %832 = vmatprep.subr.bf16.mxu0 0
      %833 = vmatpush1.bf16.msra.mxu0 %v830
      %834 = vmatprep.subr.bf16.mxu0 0
      %835 = vmatpush1.bf16.msra.mxu0 0
      %836 = vmatprep.subr.bf16.mxu0 0
      %837 = vmatpush1.bf16.msra.mxu0 0
      %838 = vmatprep.subr.bf16.mxu0 0
      %839 = vmatpush1.bf16.msra.mxu0 0
      %840 = vmatprep.subr.bf16.mxu0 0
      %841 = vmatpush1.bf16.msra.mxu0 0
      %842 = vmatprep.subr.bf16.mxu0 0
      %843 = vmatpush1.bf16.msra.mxu0 0
      %844 = vmatprep.subr.bf16.mxu0 0
      %845 = vmatpush1.bf16.msra.mxu0 0
      %846 = vmatprep.subr.bf16.mxu0 0
      %847 = vmatpush1.bf16.msra.mxu0 0
      %848 = vmatprep.subr.bf16.mxu0 0
      %849 = vmatpush1.bf16.msra.mxu0 0
      %850 = vmatprep.subr.bf16.mxu0 0
      %851 = vmatpush1.bf16.msra.mxu0 0
      %852 = vmatprep.subr.bf16.mxu0 0
      %853 = vmatpush1.bf16.msra.mxu0 0
      %854 = vmatprep.subr.bf16.mxu0 0
      %855 = vmatpush1.bf16.msra.mxu0 0
      %856 = vmatprep.subr.bf16.mxu0 0
      %857 = vmatpush1.bf16.msra.mxu0 0
      %858 = vmatprep.subr.bf16.mxu0 0
      %859 = vmatpush1.bf16.msra.mxu0 0
      %860 = vmatprep.subr.bf16.mxu0 0
      %861 = vmatpush1.bf16.msra.mxu0 0
      %862 = vmatprep.subr.bf16.mxu0 0
      %863 = vmatpush1.bf16.msra.mxu0 0
      %864 = vmatprep.mubr.bf16.mxu0 0
      %865 = vmatmul.mubr.bf16.gmra.mrb[0].mxu0 %v827
      %v866 = vpop.f32.mrb[0].mxu0
      %v867 = vadd.f32 0.0, %v866
      %v868 = vpop.f32.mrb[0].mxu0
      %v869 = vpop.f32.mrb[0].mxu0
      %v870 = vpop.f32.mrb[0].mxu0
      %871 = vdwg.mxu0
      %872 = vset.pattern.permute.xlu0 6
      %873 = vperm.xlu0 %872, %v422
      %v874 = vpop.permute.xlu0 %873
      %v876 = vlaneseq
      %v877 = vshrl.u32 %v876, 7
      %v878 = vsub.s32 6, %v877
      %v879 = vrot.slane %v366, %v878
      %v880 = vadd.f32 %v874, %v879
      %vm881 = vcmp.gt.f32.partialorder %v880, 0.0
      %v882 = vmul.f32 %v880, 0.2
      %v883 = vsel %vm881, %v880, %v882
      %v884 = vsel %vm430, %v883, -1e+30
      %v885 = vsel %vm447, %v884, -inf
      %886 = vmax.xlane.f32.xlu0 %v885
      %v887 = vpop.xlane.xlu0 %886
      %v888 = vsub.f32 %v884, %v887
      %v889 = vmul.f32 %v888, 1.442695
      %v890 = vpow.pop %v889
      %v891 = vsel %vm447, %v890, 0.0
      %892 = vadd.xlane.f32.xlu0 %v891
      %v893 = vpop.xlane.xlu0 %892
      %v894 = vrcp.pop %v893
      %v895 = vmul.f32 %v890, %v894
      %v896 = vpack.c.bf16 %v895, %v895
      %897 = vrot.lane.b32.xlu0 %v432, 64
      %v898 = vpop.permute.xlu0 %897
      %v900 = vsel %vm447, %v896, 0
      %v903 = vsel %vm463, %v898, 0
      %905 = vmatprep.subr.bf16.mxu0 0
      %906 = vmatpush1.bf16.msra.mxu0 %v903
      %907 = vmatprep.subr.bf16.mxu0 0
      %908 = vmatpush1.bf16.msra.mxu0 0
      %909 = vmatprep.subr.bf16.mxu0 0
      %910 = vmatpush1.bf16.msra.mxu0 0
      %911 = vmatprep.subr.bf16.mxu0 0
      %912 = vmatpush1.bf16.msra.mxu0 0
      %913 = vmatprep.subr.bf16.mxu0 0
      %914 = vmatpush1.bf16.msra.mxu0 0
      %915 = vmatprep.subr.bf16.mxu0 0
      %916 = vmatpush1.bf16.msra.mxu0 0
      %917 = vmatprep.subr.bf16.mxu0 0
      %918 = vmatpush1.bf16.msra.mxu0 0
      %919 = vmatprep.subr.bf16.mxu0 0
      %920 = vmatpush1.bf16.msra.mxu0 0
      %921 = vmatprep.subr.bf16.mxu0 0
      %922 = vmatpush1.bf16.msra.mxu0 0
      %923 = vmatprep.subr.bf16.mxu0 0
      %924 = vmatpush1.bf16.msra.mxu0 0
      %925 = vmatprep.subr.bf16.mxu0 0
      %926 = vmatpush1.bf16.msra.mxu0 0
      %927 = vmatprep.subr.bf16.mxu0 0
      %928 = vmatpush1.bf16.msra.mxu0 0
      %929 = vmatprep.subr.bf16.mxu0 0
      %930 = vmatpush1.bf16.msra.mxu0 0
      %931 = vmatprep.subr.bf16.mxu0 0
      %932 = vmatpush1.bf16.msra.mxu0 0
      %933 = vmatprep.subr.bf16.mxu0 0
      %934 = vmatpush1.bf16.msra.mxu0 0
      %935 = vmatprep.subr.bf16.mxu0 0
      %936 = vmatpush1.bf16.msra.mxu0 0
      %937 = vmatprep.mubr.bf16.mxu0 0
      %938 = vmatmul.mubr.bf16.gmra.mrb[0].mxu0 %v900
      %v939 = vpop.f32.mrb[0].mxu0
      %v940 = vadd.f32 0.0, %v939
      %v941 = vpop.f32.mrb[0].mxu0
      %v942 = vpop.f32.mrb[0].mxu0
      %v943 = vpop.f32.mrb[0].mxu0
      %944 = vdwg.mxu0
      %945 = vset.pattern.permute.xlu0 7
      %946 = vperm.xlu0 %945, %v422
      %v947 = vpop.permute.xlu0 %946
      %v949 = vlaneseq
      %v950 = vshrl.u32 %v949, 7
      %v951 = vsub.s32 7, %v950
      %v952 = vrot.slane %v366, %v951
      %v953 = vadd.f32 %v947, %v952
      %vm954 = vcmp.gt.f32.partialorder %v953, 0.0
      %v955 = vmul.f32 %v953, 0.2
      %v956 = vsel %vm954, %v953, %v955
      %v957 = vsel %vm430, %v956, -1e+30
      %v958 = vsel %vm447, %v957, -inf
      %959 = vmax.xlane.f32.xlu0 %v958
      %v960 = vpop.xlane.xlu0 %959
      %v961 = vsub.f32 %v957, %v960
      %v962 = vmul.f32 %v961, 1.442695
      %v963 = vpow.pop %v962
      %v964 = vsel %vm447, %v963, 0.0
      %965 = vadd.xlane.f32.xlu0 %v964
      %v966 = vpop.xlane.xlu0 %965
      %v967 = vrcp.pop %v966
      %v968 = vmul.f32 %v963, %v967
      %v969 = vpack.c.bf16 %v968, %v968
      %970 = vrot.lane.b32.xlu0 %v432, 32
      %v971 = vpop.permute.xlu0 %970
      %v973 = vsel %vm447, %v969, 0
      %v976 = vsel %vm463, %v971, 0
      %978 = vmatprep.subr.bf16.mxu0 0
      %979 = vmatpush1.bf16.msra.mxu0 %v976
      %980 = vmatprep.subr.bf16.mxu0 0
      %981 = vmatpush1.bf16.msra.mxu0 0
      %982 = vmatprep.subr.bf16.mxu0 0
      %983 = vmatpush1.bf16.msra.mxu0 0
      %984 = vmatprep.subr.bf16.mxu0 0
      %985 = vmatpush1.bf16.msra.mxu0 0
      %986 = vmatprep.subr.bf16.mxu0 0
      %987 = vmatpush1.bf16.msra.mxu0 0
      %988 = vmatprep.subr.bf16.mxu0 0
      %989 = vmatpush1.bf16.msra.mxu0 0
      %990 = vmatprep.subr.bf16.mxu0 0
      %991 = vmatpush1.bf16.msra.mxu0 0
      %992 = vmatprep.subr.bf16.mxu0 0
      %993 = vmatpush1.bf16.msra.mxu0 0
      %994 = vmatprep.subr.bf16.mxu0 0
      %995 = vmatpush1.bf16.msra.mxu0 0
      %996 = vmatprep.subr.bf16.mxu0 0
      %997 = vmatpush1.bf16.msra.mxu0 0
      %998 = vmatprep.subr.bf16.mxu0 0
      %999 = vmatpush1.bf16.msra.mxu0 0
      %1000 = vmatprep.subr.bf16.mxu0 0
      %1001 = vmatpush1.bf16.msra.mxu0 0
      %1002 = vmatprep.subr.bf16.mxu0 0
      %1003 = vmatpush1.bf16.msra.mxu0 0
      %1004 = vmatprep.subr.bf16.mxu0 0
      %1005 = vmatpush1.bf16.msra.mxu0 0
      %1006 = vmatprep.subr.bf16.mxu0 0
      %1007 = vmatpush1.bf16.msra.mxu0 0
      %1008 = vmatprep.subr.bf16.mxu0 0
      %1009 = vmatpush1.bf16.msra.mxu0 0
      %1010 = vmatprep.mubr.bf16.mxu0 0
      %1011 = vmatmul.mubr.bf16.gmra.mrb[0].mxu0 %v973
      %v1012 = vpop.f32.mrb[0].mxu0
      %v1013 = vadd.f32 0.0, %v1012
      %v1014 = vpop.f32.mrb[0].mxu0
      %v1015 = vpop.f32.mrb[0].mxu0
      %v1016 = vpop.f32.mrb[0].mxu0
      %1017 = vdwg.mxu0
      %1019 = vrot.lane.b32.xlu0 %v576, 32
      %v1020 = vpop.permute.xlu0 %1019
      %1023 = vrot.lane.b32.xlu0 %v649, 64
      %v1024 = vpop.permute.xlu0 %1023
      %1027 = vrot.lane.b32.xlu0 %v722, 96
      %v1028 = vpop.permute.xlu0 %1027
      %1031 = vrot.lane.b32.xlu0 %v867, 32
      %v1032 = vpop.permute.xlu0 %1031
      %1035 = vrot.lane.b32.xlu0 %v940, 64
      %v1036 = vpop.permute.xlu0 %1035
      %1039 = vrot.lane.b32.xlu0 %v1013, 96
      %v1040 = vpop.permute.xlu0 %1039
      %v1042 = vsel %vm280, %v502, %v1020
      %vm1043 = vcmask 523264
      %v1044 = vsel %vm1043, %v1042, %v1024
      %vm1045 = vcmask 785408
      %v1046 = vsel %vm1045, %v1044, %v1028
      %v1047 = vsel %vm280, %v793, %v1032
      %v1048 = vsel %vm1043, %v1047, %v1036
      %v1049 = vsel %vm1045, %v1048, %v1040
      %v1050 = vld [vmem:[%s4] sm:$0x3]
      %v1052 = vlaneseq
      %v1053 = vshrl.u32 %v1052, 7
      %v1054 = vsub.s32 0, %v1053
      %v1055 = vrot.slane %v1050, %v1054
      %v1056 = vlaneseq
      %v1057 = vshrl.u32 %v1056, 7
      %v1058 = vsub.s32 1, %v1057
      %v1059 = vrot.slane %v1050, %v1058
      %v1062 = vadd.f32 %v1046, %v1055
      %v1063 = vadd.f32 %v1049, %v1059
      %vm1064 = vcmp.gt.f32.partialorder %v1062, 0.0
      %vm1065 = vcmp.gt.f32.partialorder %v1063, 0.0
      %v1066 = vmul.f32 %v1062, 1.442695
      %v1067 = vpow.pop %v1066
      %v1068 = vmul.f32 %v1063, 1.442695
      %v1069 = vpow.pop %v1068
      %v1070 = vsub.f32 %v1067, 1.0
      %v1071 = vsub.f32 %v1069, 1.0
      %v1072 = vmul.f32 %v1070, 1.6732632
      %v1073 = vmul.f32 %v1071, 1.6732632
      %v1074 = vsel %vm1064, %v1062, %v1072
      %v1075 = vsel %vm1065, %v1063, %v1073
      %v1076 = vmul.f32 %v1074, 1.050701
      %v1077 = vmul.f32 %v1075, 1.050701
      %1078 = vst [vmem:[%s251] sm:$0xff] %v1076
      %1079 = vst [vmem:[%s251 + $0x8] sm:$0xff] %v1077
      %p1080 = scmp.lt.s32.totalorder %s17, 7
      %s1081 = scalar_select %p1080, %s17, 7
      %s1082 = smul.addr %s1081, 2
      %s1083 = smul.addr %s1082, 8
      %s1084 = scalar_lea.vmem %s6, %s1083
      // Predicated region
      $region45: #{gat_forward.4} parent=43 // pred_check
        %p1085 = pneg %p166
      $region46: #{gat_forward.4} parent=43 // pred_check_branch
        %1087 = sbr.rel (%p1085) target = $region48
      $region47: #{gat_forward.4} parent=43 // pred_region
        _
      $region48: #{gat_forward.4} parent=43 // pred_fallthru
        _
    $region44: #{gat_forward.4} parent=5 // pred_fallthru
      _
    %p1088 = scmp.le.s32.totalorder 2, %s12
    // Predicated region
    $region49: #{gat_forward.4} parent=5 // pred_check
      %p1089 = pneg %p1088
    $region50: #{gat_forward.4} parent=5 // pred_check_branch
      %1091 = sbr.rel (%p1089) target = $region52
    $region51: #{gat_forward.4} parent=5 // pred_region
      %s1092 = ssub.s32 %s12, 2
      // Predicated region
      $region53: #{gat_forward.4} parent=51 // pred_check
        %p1093 = pneg %p172
      $region54: #{gat_forward.4} parent=51 // pred_check_branch
        %1095 = sbr.rel (%p1093) target = $region56
      $region55: #{gat_forward.4} parent=51 // pred_region
        %p1096 = scmp.lt.s32.totalorder %s18, 7
        %s1097 = scalar_select %p1096, %s18, 7
        %s1098 = smul.addr %s1097, 2
        %s1099 = smul.addr %s1098, 8
        %s1100 = scalar_lea.vmem %s6, %s1099
      $region56: #{gat_forward.4} parent=51 // pred_fallthru
        _
    $region52: #{gat_forward.4} parent=5 // pred_fallthru
      _
  $region6: #{gat_forward.4} parent=0 // loop_footer
    %s16 = sadd.s32 1, %s12
  $region7: #{gat_forward.4} parent=0 // loop_footer_branch
    %11 = sbr.rel target = $region3
  $region8: #{gat_forward.4} parent=0 // loop_exit
    _

// kernel: gat_forward.3
$region0: #{gat_forward.3}
  #allocation0 [shape = 'u32[]', space=smem, size = 0x4, offset = 0x4, fixed_abs, tag = 'smem constant byte address 0x4 - core index']
  #allocation1 [shape = 'u32[144,128]{1,0:T(1,128)}', space=vmem, size = 0x12000, scoped, tag = 'internal scratch']
  %s0 = inlined_call_operand.vmem [shape: f32[1,16,16], index: 0, kind: input, shape index: {}]
  %s1 = inlined_call_operand.vmem [shape: bf16[16,256], index: 1, kind: input, shape index: {}]
  %s2 = inlined_call_operand.vmem [shape: bf16[8,16], index: 2, kind: input, shape index: {}]
  %s3 = inlined_call_operand.vmem [shape: bf16[16,8], index: 3, kind: input, shape index: {}]
  %s4 = inlined_call_operand.vmem [shape: f32[1,256], index: 4, kind: input, shape index: {}]
  %s5 = inlined_call_operand.vmem [shape: s8[12,16], index: 5, kind: input, shape index: {}]
  %s6 = inlined_call_operand.vmem [shape: f32[1,12,256], index: 6, kind: output, shape index: {}]
  %s7 = sld [smem:[#allocation0]]
  $region34: #{gat_forward.3} parent=0
    _
  %s9 = ssub.s32 1, %s7
  %s10 = scalar_select 0, %s9, %s7
  // Predicated region
  $region2: #{gat_forward.3} parent=0 // pred_check
    _
  $region3: #{gat_forward.3} parent=0 // pred_check_branch
    %12 = sbr.rel (0) target = $region5
  $region4: #{gat_forward.3} parent=0 // pred_region
    _
  $region5: #{gat_forward.3} parent=0 // pred_fallthru
    _
  // Predicated region
  $region6: #{gat_forward.3} parent=0 // pred_check
    _
  $region7: #{gat_forward.3} parent=0 // pred_check_branch
    %14 = sbr.rel (0) target = $region9
  $region8: #{gat_forward.3} parent=0 // pred_region
    _
  $region9: #{gat_forward.3} parent=0 // pred_fallthru
    _
  // Predicated region
  $region10: #{gat_forward.3} parent=0 // pred_check
    _
  $region11: #{gat_forward.3} parent=0 // pred_check_branch
    %16 = sbr.rel (0) target = $region13
  $region12: #{gat_forward.3} parent=0 // pred_region
    _
  $region13: #{gat_forward.3} parent=0 // pred_fallthru
    _
  // Predicated region
  $region14: #{gat_forward.3} parent=0 // pred_check
    _
  $region15: #{gat_forward.3} parent=0 // pred_check_branch
    %18 = sbr.rel (0) target = $region17
  $region16: #{gat_forward.3} parent=0 // pred_region
    _
  $region17: #{gat_forward.3} parent=0 // pred_fallthru
    _
  // Predicated region
  $region18: #{gat_forward.3} parent=0 // pred_check
    _
  $region19: #{gat_forward.3} parent=0 // pred_check_branch
    %20 = sbr.rel (0) target = $region21
  $region20: #{gat_forward.3} parent=0 // pred_region
    _
  $region21: #{gat_forward.3} parent=0 // pred_fallthru
    _
  // Predicated region
  $region22: #{gat_forward.3} parent=0 // pred_check
    _
  $region23: #{gat_forward.3} parent=0 // pred_check_branch
    %22 = sbr.rel (0) target = $region25
  $region24: #{gat_forward.3} parent=0 // pred_region
    _
  $region25: #{gat_forward.3} parent=0 // pred_fallthru
    _
  %v24 = vld [vmem:[%s0] sm:$0xff]
  %v25 = vld [vmem:[%s0 + $0x8] sm:$0xff]
  %v26 = vpack.c.bf16 %v25, %v24
  %v27 = vld [vmem:[%s1] sm:$0xff]
  %v28 = vld [vmem:[%s1 + $0x8] sm:$0xff]
  %v31 = vunpack.c.l.b16 %v27
  %v32 = vunpack.c.h.b16 %v27
  %v33 = vunpack.c.l.b16 %v28
  %v34 = vunpack.c.h.b16 %v28
  %v35 = vpack.c.b16 %v33, %v31
  %v36 = vpack.c.b16 %v34, %v32
  %vm39 = vcmask 130048
  %v41 = vsel %vm39, %v26, 0
  %43 = vmatprep.subr.bf16.mxu0 %v36
  %44 = vmatpush1.bf16.msra.mxu0 %v35
  %45 = vmatprep.subr.bf16.mxu0 0
  %46 = vmatpush1.bf16.msra.mxu0 0
  %47 = vmatprep.subr.bf16.mxu0 0
  %48 = vmatpush1.bf16.msra.mxu0 0
  %49 = vmatprep.subr.bf16.mxu0 0
  %50 = vmatpush1.bf16.msra.mxu0 0
  %51 = vmatprep.subr.bf16.mxu0 0
  %52 = vmatpush1.bf16.msra.mxu0 0
  %53 = vmatprep.subr.bf16.mxu0 0
  %54 = vmatpush1.bf16.msra.mxu0 0
  %55 = vmatprep.subr.bf16.mxu0 0
  %56 = vmatpush1.bf16.msra.mxu0 0
  %57 = vmatprep.subr.bf16.mxu0 0
  %58 = vmatpush1.bf16.msra.mxu0 0
  %59 = vmatprep.subr.bf16.mxu0 0
  %60 = vmatpush1.bf16.msra.mxu0 0
  %61 = vmatprep.subr.bf16.mxu0 0
  %62 = vmatpush1.bf16.msra.mxu0 0
  %63 = vmatprep.subr.bf16.mxu0 0
  %64 = vmatpush1.bf16.msra.mxu0 0
  %65 = vmatprep.subr.bf16.mxu0 0
  %66 = vmatpush1.bf16.msra.mxu0 0
  %67 = vmatprep.subr.bf16.mxu0 0
  %68 = vmatpush1.bf16.msra.mxu0 0
  %69 = vmatprep.subr.bf16.mxu0 0
  %70 = vmatpush1.bf16.msra.mxu0 0
  %71 = vmatprep.subr.bf16.mxu0 0
  %72 = vmatpush1.bf16.msra.mxu0 0
  %73 = vmatprep.subr.bf16.mxu0 0
  %74 = vmatpush1.bf16.msra.mxu0 0
  %75 = vmatprep.mubr.bf16.mxu0 0
  %76 = vmatmul.mubr.bf16.gmra.mrb[0].mxu0 %v41
  %v77 = vpop.f32.mrb[0].mxu0
  %v78 = vadd.f32 0.0, %v77
  %v79 = vpop.f32.mrb[0].mxu0
  %v80 = vadd.f32 0.0, %v79
  %v81 = vpop.f32.mrb[0].mxu0
  %v82 = vadd.f32 0.0, %v81
  %v83 = vpop.f32.mrb[0].mxu0
  %v84 = vadd.f32 0.0, %v83
  %85 = vdwg.mxu0
  %v86 = vld [vmem:[%s2] sm:$0xf]
  %v88 = vsel %vm39, %v86, 0
  %90 = vmatprep.subr.bf16.mxu0 0
  %91 = vmatpush1.bf16.xpose.msra.mxu0 %v41
  %92 = vmatprep.subr.bf16.mxu0 0
  %93 = vmatpush1.bf16.xpose.msra.mxu0 0
  %94 = vmatprep.subr.bf16.mxu0 0
  %95 = vmatpush1.bf16.xpose.msra.mxu0 0
  %96 = vmatprep.subr.bf16.mxu0 0
  %97 = vmatpush1.bf16.xpose.msra.mxu0 0
  %98 = vmatprep.subr.bf16.mxu0 0
  %99 = vmatpush1.bf16.xpose.msra.mxu0 0
  %100 = vmatprep.subr.bf16.mxu0 0
  %101 = vmatpush1.bf16.xpose.msra.mxu0 0
  %102 = vmatprep.subr.bf16.mxu0 0
  %103 = vmatpush1.bf16.xpose.msra.mxu0 0
  %104 = vmatprep.subr.bf16.mxu0 0
  %105 = vmatpush1.bf16.xpose.msra.mxu0 0
  %106 = vmatprep.subr.bf16.mxu0 0
  %107 = vmatpush1.bf16.xpose.msra.mxu0 0
  %108 = vmatprep.subr.bf16.mxu0 0
  %109 = vmatpush1.bf16.xpose.msra.mxu0 0
  %110 = vmatprep.subr.bf16.mxu0 0
  %111 = vmatpush1.bf16.xpose.msra.mxu0 0
  %112 = vmatprep.subr.bf16.mxu0 0
  %113 = vmatpush1.bf16.xpose.msra.mxu0 0
  %114 = vmatprep.subr.bf16.mxu0 0
  %115 = vmatpush1.bf16.xpose.msra.mxu0 0
  %116 = vmatprep.subr.bf16.mxu0 0
  %117 = vmatpush1.bf16.xpose.msra.mxu0 0
  %118 = vmatprep.subr.bf16.mxu0 0
  %119 = vmatpush1.bf16.xpose.msra.mxu0 0
  %120 = vmatprep.subr.bf16.mxu0 0
  %121 = vmatpush1.bf16.xpose.msra.mxu0 0
  %122 = vmatprep.mubr.bf16.mxu0 0
  %123 = vmatmul.mubr.bf16.gmra.mrb[0].mxu0 %v88
  %v124 = vpop.f32.mrb[0].mxu0
  %v125 = vadd.f32 0.0, %v124
  %v126 = vpop.f32.mrb[0].mxu0
  %v127 = vpop.f32.mrb[0].mxu0
  %v128 = vpop.f32.mrb[0].mxu0
  %129 = vdwg.mxu0
  %v130 = vld [vmem:[%s3] sm:$0xf]
  %v131 = vld [vmem:[%s3 + $0x4] sm:$0xf]
  %v134 = vunpack.c.l.b16 %v130
  %v135 = vunpack.c.l.b16 %v131
  %v136 = vpack.c.b16 %v135, %v134
  %138 = vmatprep.subr.bf16.mxu0 0
  %139 = vmatpush1.bf16.msra.mxu0 %v136
  %140 = vmatprep.subr.bf16.mxu0 0
  %141 = vmatpush1.bf16.msra.mxu0 0
  %142 = vmatprep.subr.bf16.mxu0 0
  %143 = vmatpush1.bf16.msra.mxu0 0
  %144 = vmatprep.subr.bf16.mxu0 0
  %145 = vmatpush1.bf16.msra.mxu0 0
  %146 = vmatprep.subr.bf16.mxu0 0
  %147 = vmatpush1.bf16.msra.mxu0 0
  %148 = vmatprep.subr.bf16.mxu0 0
  %149 = vmatpush1.bf16.msra.mxu0 0
  %150 = vmatprep.subr.bf16.mxu0 0
  %151 = vmatpush1.bf16.msra.mxu0 0
  %152 = vmatprep.subr.bf16.mxu0 0
  %153 = vmatpush1.bf16.msra.mxu0 0
  %154 = vmatprep.subr.bf16.mxu0 0
  %155 = vmatpush1.bf16.msra.mxu0 0
  %156 = vmatprep.subr.bf16.mxu0 0
  %157 = vmatpush1.bf16.msra.mxu0 0
  %158 = vmatprep.subr.bf16.mxu0 0
  %159 = vmatpush1.bf16.msra.mxu0 0
  %160 = vmatprep.subr.bf16.mxu0 0
  %161 = vmatpush1.bf16.msra.mxu0 0
  %162 = vmatprep.subr.bf16.mxu0 0
  %163 = vmatpush1.bf16.msra.mxu0 0
  %164 = vmatprep.subr.bf16.mxu0 0
  %165 = vmatpush1.bf16.msra.mxu0 0
  %166 = vmatprep.subr.bf16.mxu0 0
  %167 = vmatpush1.bf16.msra.mxu0 0
  %168 = vmatprep.subr.bf16.mxu0 0
  %169 = vmatpush1.bf16.msra.mxu0 0
  %170 = vmatprep.mubr.bf16.mxu0 0
  %171 = vmatmul.mubr.bf16.gmra.mrb[0].mxu0 %v41
  %v172 = vpop.f32.mrb[0].mxu0
  %v173 = vadd.f32 0.0, %v172
  %v174 = vpop.f32.mrb[0].mxu0
  %v175 = vpop.f32.mrb[0].mxu0
  %v176 = vadd.f32 0.0, %v175
  %v177 = vpop.f32.mrb[0].mxu0
  %178 = vdwg.mxu0
  %v179 = vld [vmem:[%s5] sm:$0x3]
  %v180 = vld [vmem:[%s5 + $0x2] sm:$0x1]
  %v181 = vunpack.c.0.s8 %v179
  %v182 = vunpack.c.0.s8 %v180
  %v183 = vcvt.s32.f32 %v181
  %v184 = vcvt.s32.f32 %v182
  %vm185 = vcmp.gt.f32.partialorder %v183, 0.0
  %vm186 = vcmp.gt.f32.partialorder %v184, 0.0
  %v187 = vpack.c.bf16 %v82, %v78
  %v188 = vpack.c.bf16 %v84, %v80
  %190 = vset.pattern.permute.xlu0 0
  %191 = vperm.xlu0 %190, %v173
  %v192 = vpop.permute.xlu0 %191
  %195 = vset.pattern.permute.xlu0 0
  %196 = vperm.xlu0 %195, %v176
  %v197 = vpop.permute.xlu0 %196
  %v199 = vlaneseq
  %v200 = vshrl.u32 %v199, 7
  %v201 = vsub.s32 0, %v200
  %v202 = vrot.slane %v125, %v201
  %v203 = vadd.f32 %v192, %v202
  %v204 = vadd.f32 %v197, %v202
  %vm205 = vcmp.gt.f32.partialorder %v203, 0.0
  %vm206 = vcmp.gt.f32.partialorder %v204, 0.0
  %v207 = vmul.f32 %v203, 0.2
  %v208 = vmul.f32 %v204, 0.2
  %v209 = vsel %vm205, %v203, %v207
  %v210 = vsel %vm206, %v204, %v208
  %v211 = vsel %vm185, %v209, -1e+30
  %v212 = vsel %vm186, %v210, -1e+30
  %v213 = vsel %vm39, %v211, -inf
  %214 = vmax.xlane.f32.xlu0 %v213
  %v215 = vpop.xlane.xlu0 %214
  %vm216 = vcmask 125952
  %v217 = vsel %vm216, %v212, -inf
  %218 = vmax.xlane.f32.xlu0 %v217
  %v219 = vpop.xlane.xlu0 %218
  %v220 = vsub.f32 %v211, %v215
  %v221 = vsub.f32 %v212, %v219
  %v222 = vmul.f32 %v220, 1.442695
  %v223 = vpow.pop %v222
  %v224 = vmul.f32 %v221, 1.442695
  %v225 = vpow.pop %v224
  %v226 = vsel %vm39, %v223, 0.0
  %227 = vadd.xlane.f32.xlu0 %v226
  %v228 = vpop.xlane.xlu0 %227
  %v229 = vsel %vm216, %v225, 0.0
  %230 = vadd.xlane.f32.xlu0 %v229
  %v231 = vpop.xlane.xlu0 %230
  %v232 = vrcp.pop %v228
  %v233 = vrcp.pop %v231
  %v234 = vmul.f32 %v223, %v232
  %v235 = vmul.f32 %v225, %v233
  %v236 = vpack.c.bf16 %v235, %v234
  %v238 = vsel %vm39, %v236, 0
  %240 = vmatprep.subr.bf16.mxu0 0
  %241 = vmatpush1.bf16.msra.mxu0 %v187
  %242 = vmatprep.subr.bf16.mxu0 0
  %243 = vmatpush1.bf16.msra.mxu0 0
  %244 = vmatprep.subr.bf16.mxu0 0
  %245 = vmatpush1.bf16.msra.mxu0 0
  %246 = vmatprep.subr.bf16.mxu0 0
  %247 = vmatpush1.bf16.msra.mxu0 0
  %248 = vmatprep.subr.bf16.mxu0 0
  %249 = vmatpush1.bf16.msra.mxu0 0
  %250 = vmatprep.subr.bf16.mxu0 0
  %251 = vmatpush1.bf16.msra.mxu0 0
  %252 = vmatprep.subr.bf16.mxu0 0
  %253 = vmatpush1.bf16.msra.mxu0 0
  %254 = vmatprep.subr.bf16.mxu0 0
  %255 = vmatpush1.bf16.msra.mxu0 0
  %256 = vmatprep.subr.bf16.mxu0 0
  %257 = vmatpush1.bf16.msra.mxu0 0
  %258 = vmatprep.subr.bf16.mxu0 0
  %259 = vmatpush1.bf16.msra.mxu0 0
  %260 = vmatprep.subr.bf16.mxu0 0
  %261 = vmatpush1.bf16.msra.mxu0 0
  %262 = vmatprep.subr.bf16.mxu0 0
  %263 = vmatpush1.bf16.msra.mxu0 0
  %264 = vmatprep.subr.bf16.mxu0 0
  %265 = vmatpush1.bf16.msra.mxu0 0
  %266 = vmatprep.subr.bf16.mxu0 0
  %267 = vmatpush1.bf16.msra.mxu0 0
  %268 = vmatprep.subr.bf16.mxu0 0
  %269 = vmatpush1.bf16.msra.mxu0 0
  %270 = vmatprep.subr.bf16.mxu0 0
  %271 = vmatpush1.bf16.msra.mxu0 0
  %272 = vmatprep.mubr.bf16.mxu0 0
  %273 = vmatmul.mubr.bf16.gmra.mrb[0].mxu0 %v238
  %v274 = vpop.f32.mrb[0].mxu0
  %v275 = vadd.f32 0.0, %v274
  %v276 = vpop.f32.mrb[0].mxu0
  %v277 = vpop.f32.mrb[0].mxu0
  %v278 = vadd.f32 0.0, %v277
  %v279 = vpop.f32.mrb[0].mxu0
  %280 = vdwg.mxu0
  %281 = vset.pattern.permute.xlu0 1
  %282 = vperm.xlu0 %281, %v173
  %v283 = vpop.permute.xlu0 %282
  %285 = vset.pattern.permute.xlu0 1
  %286 = vperm.xlu0 %285, %v176
  %v287 = vpop.permute.xlu0 %286
  %v289 = vlaneseq
  %v290 = vshrl.u32 %v289, 7
  %v291 = vsub.s32 1, %v290
  %v292 = vrot.slane %v125, %v291
  %v293 = vadd.f32 %v283, %v292
  %v294 = vadd.f32 %v287, %v292
  %vm295 = vcmp.gt.f32.partialorder %v293, 0.0
  %vm296 = vcmp.gt.f32.partialorder %v294, 0.0
  %v297 = vmul.f32 %v293, 0.2
  %v298 = vmul.f32 %v294, 0.2
  %v299 = vsel %vm295, %v293, %v297
  %v300 = vsel %vm296, %v294, %v298
  %v301 = vsel %vm185, %v299, -1e+30
  %v302 = vsel %vm186, %v300, -1e+30
  %v303 = vsel %vm39, %v301, -inf
  %304 = vmax.xlane.f32.xlu0 %v303
  %v305 = vpop.xlane.xlu0 %304
  %v306 = vsel %vm216, %v302, -inf
  %307 = vmax.xlane.f32.xlu0 %v306
  %v308 = vpop.xlane.xlu0 %307
  %v309 = vsub.f32 %v301, %v305
  %v310 = vsub.f32 %v302, %v308
  %v311 = vmul.f32 %v309, 1.442695
  %v312 = vpow.pop %v311
  %v313 = vmul.f32 %v310, 1.442695
  %v314 = vpow.pop %v313
  %v315 = vsel %vm39, %v312, 0.0
  %316 = vadd.xlane.f32.xlu0 %v315
  %v317 = vpop.xlane.xlu0 %316
  %v318 = vsel %vm216, %v314, 0.0
  %319 = vadd.xlane.f32.xlu0 %v318
  %v320 = vpop.xlane.xlu0 %319
  %v321 = vrcp.pop %v317
  %v322 = vrcp.pop %v320
  %v323 = vmul.f32 %v312, %v321
  %v324 = vmul.f32 %v314, %v322
  %v325 = vpack.c.bf16 %v324, %v323
  %327 = vrot.lane.b32.xlu0 %v187, 96
  %v328 = vpop.permute.xlu0 %327
  %v331 = vsel %vm39, %v325, 0
  %333 = vmatprep.subr.bf16.mxu0 0
  %334 = vmatpush1.bf16.msra.mxu0 %v328
  %335 = vmatprep.subr.bf16.mxu0 0
  %336 = vmatpush1.bf16.msra.mxu0 0
  %337 = vmatprep.subr.bf16.mxu0 0
  %338 = vmatpush1.bf16.msra.mxu0 0
  %339 = vmatprep.subr.bf16.mxu0 0
  %340 = vmatpush1.bf16.msra.mxu0 0
  %341 = vmatprep.subr.bf16.mxu0 0
  %342 = vmatpush1.bf16.msra.mxu0 0
  %343 = vmatprep.subr.bf16.mxu0 0
  %344 = vmatpush1.bf16.msra.mxu0 0
  %345 = vmatprep.subr.bf16.mxu0 0
  %346 = vmatpush1.bf16.msra.mxu0 0
  %347 = vmatprep.subr.bf16.mxu0 0
  %348 = vmatpush1.bf16.msra.mxu0 0
  %349 = vmatprep.subr.bf16.mxu0 0
  %350 = vmatpush1.bf16.msra.mxu0 0
  %351 = vmatprep.subr.bf16.mxu0 0
  %352 = vmatpush1.bf16.msra.mxu0 0
  %353 = vmatprep.subr.bf16.mxu0 0
  %354 = vmatpush1.bf16.msra.mxu0 0
  %355 = vmatprep.subr.bf16.mxu0 0
  %356 = vmatpush1.bf16.msra.mxu0 0
  %357 = vmatprep.subr.bf16.mxu0 0
  %358 = vmatpush1.bf16.msra.mxu0 0
  %359 = vmatprep.subr.bf16.mxu0 0
  %360 = vmatpush1.bf16.msra.mxu0 0
  %361 = vmatprep.subr.bf16.mxu0 0
  %362 = vmatpush1.bf16.msra.mxu0 0
  %363 = vmatprep.subr.bf16.mxu0 0
  %364 = vmatpush1.bf16.msra.mxu0 0
  %365 = vmatprep.mubr.bf16.mxu0 0
  %366 = vmatmul.mubr.bf16.gmra.mrb[0].mxu0 %v331
  %v367 = vpop.f32.mrb[0].mxu0
  %v368 = vadd.f32 0.0, %v367
  %v369 = vpop.f32.mrb[0].mxu0
  %v370 = vpop.f32.mrb[0].mxu0
  %v371 = vadd.f32 0.0, %v370
  %v372 = vpop.f32.mrb[0].mxu0
  %373 = vdwg.mxu0
  %374 = vset.pattern.permute.xlu0 2
  %375 = vperm.xlu0 %374, %v173
  %v376 = vpop.permute.xlu0 %375
  %378 = vset.pattern.permute.xlu0 2
  %379 = vperm.xlu0 %378, %v176
  %v380 = vpop.permute.xlu0 %379
  %v382 = vlaneseq
  %v383 = vshrl.u32 %v382, 7
  %v384 = vsub.s32 2, %v383
  %v385 = vrot.slane %v125, %v384
  %v386 = vadd.f32 %v376, %v385
  %v387 = vadd.f32 %v380, %v385
  %vm388 = vcmp.gt.f32.partialorder %v386, 0.0
  %vm389 = vcmp.gt.f32.partialorder %v387, 0.0
  %v390 = vmul.f32 %v386, 0.2
  %v391 = vmul.f32 %v387, 0.2
  %v392 = vsel %vm388, %v386, %v390
  %v393 = vsel %vm389, %v387, %v391
  %v394 = vsel %vm185, %v392, -1e+30
  %v395 = vsel %vm186, %v393, -1e+30
  %v396 = vsel %vm39, %v394, -inf
  %397 = vmax.xlane.f32.xlu0 %v396
  %v398 = vpop.xlane.xlu0 %397
  %v399 = vsel %vm216, %v395, -inf
  %400 = vmax.xlane.f32.xlu0 %v399
  %v401 = vpop.xlane.xlu0 %400
  %v402 = vsub.f32 %v394, %v398
  %v403 = vsub.f32 %v395, %v401
  %v404 = vmul.f32 %v402, 1.442695
  %v405 = vpow.pop %v404
  %v406 = vmul.f32 %v403, 1.442695
  %v407 = vpow.pop %v406
  %v408 = vsel %vm39, %v405, 0.0
  %409 = vadd.xlane.f32.xlu0 %v408
  %v410 = vpop.xlane.xlu0 %409
  %v411 = vsel %vm216, %v407, 0.0
  %412 = vadd.xlane.f32.xlu0 %v411
  %v413 = vpop.xlane.xlu0 %412
  %v414 = vrcp.pop %v410
  %v415 = vrcp.pop %v413
  %v416 = vmul.f32 %v405, %v414
  %v417 = vmul.f32 %v407, %v415
  %v418 = vpack.c.bf16 %v417, %v416
  %419 = vrot.lane.b32.xlu0 %v187, 64
  %v420 = vpop.permute.xlu0 %419
  %v423 = vsel %vm39, %v418, 0
  %425 = vmatprep.subr.bf16.mxu0 0
  %426 = vmatpush1.bf16.msra.mxu0 %v420
  %427 = vmatprep.subr.bf16.mxu0 0
  %428 = vmatpush1.bf16.msra.mxu0 0
  %429 = vmatprep.subr.bf16.mxu0 0
  %430 = vmatpush1.bf16.msra.mxu0 0
  %431 = vmatprep.subr.bf16.mxu0 0
  %432 = vmatpush1.bf16.msra.mxu0 0
  %433 = vmatprep.subr.bf16.mxu0 0
  %434 = vmatpush1.bf16.msra.mxu0 0
  %435 = vmatprep.subr.bf16.mxu0 0
  %436 = vmatpush1.bf16.msra.mxu0 0
  %437 = vmatprep.subr.bf16.mxu0 0
  %438 = vmatpush1.bf16.msra.mxu0 0
  %439 = vmatprep.subr.bf16.mxu0 0
  %440 = vmatpush1.bf16.msra.mxu0 0
  %441 = vmatprep.subr.bf16.mxu0 0
  %442 = vmatpush1.bf16.msra.mxu0 0
  %443 = vmatprep.subr.bf16.mxu0 0
  %444 = vmatpush1.bf16.msra.mxu0 0
  %445 = vmatprep.subr.bf16.mxu0 0
  %446 = vmatpush1.bf16.msra.mxu0 0
  %447 = vmatprep.subr.bf16.mxu0 0
  %448 = vmatpush1.bf16.msra.mxu0 0
  %449 = vmatprep.subr.bf16.mxu0 0
  %450 = vmatpush1.bf16.msra.mxu0 0
  %451 = vmatprep.subr.bf16.mxu0 0
  %452 = vmatpush1.bf16.msra.mxu0 0
  %453 = vmatprep.subr.bf16.mxu0 0
  %454 = vmatpush1.bf16.msra.mxu0 0
  %455 = vmatprep.subr.bf16.mxu0 0
  %456 = vmatpush1.bf16.msra.mxu0 0
  %457 = vmatprep.mubr.bf16.mxu0 0
  %458 = vmatmul.mubr.bf16.gmra.mrb[0].mxu0 %v423
  %v459 = vpop.f32.mrb[0].mxu0
  %v460 = vadd.f32 0.0, %v459
  %v461 = vpop.f32.mrb[0].mxu0
  %v462 = vpop.f32.mrb[0].mxu0
  %v463 = vadd.f32 0.0, %v462
  %v464 = vpop.f32.mrb[0].mxu0
  %465 = vdwg.mxu0
  %466 = vset.pattern.permute.xlu0 3
  %467 = vperm.xlu0 %466, %v173
  %v468 = vpop.permute.xlu0 %467
  %470 = vset.pattern.permute.xlu0 3
  %471 = vperm.xlu0 %470, %v176
  %v472 = vpop.permute.xlu0 %471
  %v474 = vlaneseq
  %v475 = vshrl.u32 %v474, 7
  %v476 = vsub.s32 3, %v475
  %v477 = vrot.slane %v125, %v476
  %v478 = vadd.f32 %v468, %v477
  %v479 = vadd.f32 %v472, %v477
  %vm480 = vcmp.gt.f32.partialorder %v478, 0.0
  %vm481 = vcmp.gt.f32.partialorder %v479, 0.0
  %v482 = vmul.f32 %v478, 0.2
  %v483 = vmul.f32 %v479, 0.2
  %v484 = vsel %vm480, %v478, %v482
  %v485 = vsel %vm481, %v479, %v483
  %v486 = vsel %vm185, %v484, -1e+30
  %v487 = vsel %vm186, %v485, -1e+30
  %v488 = vsel %vm39, %v486, -inf
  %489 = vmax.xlane.f32.xlu0 %v488
  %v490 = vpop.xlane.xlu0 %489
  %v491 = vsel %vm216, %v487, -inf
  %492 = vmax.xlane.f32.xlu0 %v491
  %v493 = vpop.xlane.xlu0 %492
  %v494 = vsub.f32 %v486, %v490
  %v495 = vsub.f32 %v487, %v493
  %v496 = vmul.f32 %v494, 1.442695
  %v497 = vpow.pop %v496
  %v498 = vmul.f32 %v495, 1.442695
  %v499 = vpow.pop %v498
  %v500 = vsel %vm39, %v497, 0.0
  %501 = vadd.xlane.f32.xlu0 %v500
  %v502 = vpop.xlane.xlu0 %501
  %v503 = vsel %vm216, %v499, 0.0
  %504 = vadd.xlane.f32.xlu0 %v503
  %v505 = vpop.xlane.xlu0 %504
  %v506 = vrcp.pop %v502
  %v507 = vrcp.pop %v505
  %v508 = vmul.f32 %v497, %v506
  %v509 = vmul.f32 %v499, %v507
  %v510 = vpack.c.bf16 %v509, %v508
  %511 = vrot.lane.b32.xlu0 %v187, 32
  %v512 = vpop.permute.xlu0 %511
  %v515 = vsel %vm39, %v510, 0
  %517 = vmatprep.subr.bf16.mxu0 0
  %518 = vmatpush1.bf16.msra.mxu0 %v512
  %519 = vmatprep.subr.bf16.mxu0 0
  %520 = vmatpush1.bf16.msra.mxu0 0
  %521 = vmatprep.subr.bf16.mxu0 0
  %522 = vmatpush1.bf16.msra.mxu0 0
  %523 = vmatprep.subr.bf16.mxu0 0
  %524 = vmatpush1.bf16.msra.mxu0 0
  %525 = vmatprep.subr.bf16.mxu0 0
  %526 = vmatpush1.bf16.msra.mxu0 0
  %527 = vmatprep.subr.bf16.mxu0 0
  %528 = vmatpush1.bf16.msra.mxu0 0
  %529 = vmatprep.subr.bf16.mxu0 0
  %530 = vmatpush1.bf16.msra.mxu0 0
  %531 = vmatprep.subr.bf16.mxu0 0
  %532 = vmatpush1.bf16.msra.mxu0 0
  %533 = vmatprep.subr.bf16.mxu0 0
  %534 = vmatpush1.bf16.msra.mxu0 0
  %535 = vmatprep.subr.bf16.mxu0 0
  %536 = vmatpush1.bf16.msra.mxu0 0
  %537 = vmatprep.subr.bf16.mxu0 0
  %538 = vmatpush1.bf16.msra.mxu0 0
  %539 = vmatprep.subr.bf16.mxu0 0
  %540 = vmatpush1.bf16.msra.mxu0 0
  %541 = vmatprep.subr.bf16.mxu0 0
  %542 = vmatpush1.bf16.msra.mxu0 0
  %543 = vmatprep.subr.bf16.mxu0 0
  %544 = vmatpush1.bf16.msra.mxu0 0
  %545 = vmatprep.subr.bf16.mxu0 0
  %546 = vmatpush1.bf16.msra.mxu0 0
  %547 = vmatprep.subr.bf16.mxu0 0
  %548 = vmatpush1.bf16.msra.mxu0 0
  %549 = vmatprep.mubr.bf16.mxu0 0
  %550 = vmatmul.mubr.bf16.gmra.mrb[0].mxu0 %v515
  %v551 = vpop.f32.mrb[0].mxu0
  %v552 = vadd.f32 0.0, %v551
  %v553 = vpop.f32.mrb[0].mxu0
  %v554 = vpop.f32.mrb[0].mxu0
  %v555 = vadd.f32 0.0, %v554
  %v556 = vpop.f32.mrb[0].mxu0
  %557 = vdwg.mxu0
  %558 = vset.pattern.permute.xlu0 4
  %559 = vperm.xlu0 %558, %v173
  %v560 = vpop.permute.xlu0 %559
  %562 = vset.pattern.permute.xlu0 4
  %563 = vperm.xlu0 %562, %v176
  %v564 = vpop.permute.xlu0 %563
  %v566 = vlaneseq
  %v567 = vshrl.u32 %v566, 7
  %v568 = vsub.s32 4, %v567
  %v569 = vrot.slane %v125, %v568
  %v570 = vadd.f32 %v560, %v569
  %v571 = vadd.f32 %v564, %v569
  %vm572 = vcmp.gt.f32.partialorder %v570, 0.0
  %vm573 = vcmp.gt.f32.partialorder %v571, 0.0
  %v574 = vmul.f32 %v570, 0.2
  %v575 = vmul.f32 %v571, 0.2
  %v576 = vsel %vm572, %v570, %v574
  %v577 = vsel %vm573, %v571, %v575
  %v578 = vsel %vm185, %v576, -1e+30
  %v579 = vsel %vm186, %v577, -1e+30
  %v580 = vsel %vm39, %v578, -inf
  %581 = vmax.xlane.f32.xlu0 %v580
  %v582 = vpop.xlane.xlu0 %581
  %v583 = vsel %vm216, %v579, -inf
  %584 = vmax.xlane.f32.xlu0 %v583
  %v585 = vpop.xlane.xlu0 %584
  %v586 = vsub.f32 %v578, %v582
  %v587 = vsub.f32 %v579, %v585
  %v588 = vmul.f32 %v586, 1.442695
  %v589 = vpow.pop %v588
  %v590 = vmul.f32 %v587, 1.442695
  %v591 = vpow.pop %v590
  %v592 = vsel %vm39, %v589, 0.0
  %593 = vadd.xlane.f32.xlu0 %v592
  %v594 = vpop.xlane.xlu0 %593
  %v595 = vsel %vm216, %v591, 0.0
  %596 = vadd.xlane.f32.xlu0 %v595
  %v597 = vpop.xlane.xlu0 %596
  %v598 = vrcp.pop %v594
  %v599 = vrcp.pop %v597
  %v600 = vmul.f32 %v589, %v598
  %v601 = vmul.f32 %v591, %v599
  %v602 = vpack.c.bf16 %v601, %v600
  %v604 = vsel %vm39, %v602, 0
  %606 = vmatprep.subr.bf16.mxu0 0
  %607 = vmatpush1.bf16.msra.mxu0 %v188
  %608 = vmatprep.subr.bf16.mxu0 0
  %609 = vmatpush1.bf16.msra.mxu0 0
  %610 = vmatprep.subr.bf16.mxu0 0
  %611 = vmatpush1.bf16.msra.mxu0 0
  %612 = vmatprep.subr.bf16.mxu0 0
  %613 = vmatpush1.bf16.msra.mxu0 0
  %614 = vmatprep.subr.bf16.mxu0 0
  %615 = vmatpush1.bf16.msra.mxu0 0
  %616 = vmatprep.subr.bf16.mxu0 0
  %617 = vmatpush1.bf16.msra.mxu0 0
  %618 = vmatprep.subr.bf16.mxu0 0
  %619 = vmatpush1.bf16.msra.mxu0 0
  %620 = vmatprep.subr.bf16.mxu0 0
  %621 = vmatpush1.bf16.msra.mxu0 0
  %622 = vmatprep.subr.bf16.mxu0 0
  %623 = vmatpush1.bf16.msra.mxu0 0
  %624 = vmatprep.subr.bf16.mxu0 0
  %625 = vmatpush1.bf16.msra.mxu0 0
  %626 = vmatprep.subr.bf16.mxu0 0
  %627 = vmatpush1.bf16.msra.mxu0 0
  %628 = vmatprep.subr.bf16.mxu0 0
  %629 = vmatpush1.bf16.msra.mxu0 0
  %630 = vmatprep.subr.bf16.mxu0 0
  %631 = vmatpush1.bf16.msra.mxu0 0
  %632 = vmatprep.subr.bf16.mxu0 0
  %633 = vmatpush1.bf16.msra.mxu0 0
  %634 = vmatprep.subr.bf16.mxu0 0
  %635 = vmatpush1.bf16.msra.mxu0 0
  %636 = vmatprep.subr.bf16.mxu0 0
  %637 = vmatpush1.bf16.msra.mxu0 0
  %638 = vmatprep.mubr.bf16.mxu0 0
  %639 = vmatmul.mubr.bf16.gmra.mrb[0].mxu0 %v604
  %v640 = vpop.f32.mrb[0].mxu0
  %v641 = vadd.f32 0.0, %v640
  %v642 = vpop.f32.mrb[0].mxu0
  %v643 = vpop.f32.mrb[0].mxu0
  %v644 = vadd.f32 0.0, %v643
  %v645 = vpop.f32.mrb[0].mxu0
  %646 = vdwg.mxu0
  %647 = vset.pattern.permute.xlu0 5
  %648 = vperm.xlu0 %647, %v173
  %v649 = vpop.permute.xlu0 %648
  %651 = vset.pattern.permute.xlu0 5
  %652 = vperm.xlu0 %651, %v176
  %v653 = vpop.permute.xlu0 %652
  %v655 = vlaneseq
  %v656 = vshrl.u32 %v655, 7
  %v657 = vsub.s32 5, %v656
  %v658 = vrot.slane %v125, %v657
  %v659 = vadd.f32 %v649, %v658
  %v660 = vadd.f32 %v653, %v658
  %vm661 = vcmp.gt.f32.partialorder %v659, 0.0
  %vm662 = vcmp.gt.f32.partialorder %v660, 0.0
  %v663 = vmul.f32 %v659, 0.2
  %v664 = vmul.f32 %v660, 0.2
  %v665 = vsel %vm661, %v659, %v663
  %v666 = vsel %vm662, %v660, %v664
  %v667 = vsel %vm185, %v665, -1e+30
  %v668 = vsel %vm186, %v666, -1e+30
  %v669 = vsel %vm39, %v667, -inf
  %670 = vmax.xlane.f32.xlu0 %v669
  %v671 = vpop.xlane.xlu0 %670
  %v672 = vsel %vm216, %v668, -inf
  %673 = vmax.xlane.f32.xlu0 %v672
  %v674 = vpop.xlane.xlu0 %673
  %v675 = vsub.f32 %v667, %v671
  %v676 = vsub.f32 %v668, %v674
  %v677 = vmul.f32 %v675, 1.442695
  %v678 = vpow.pop %v677
  %v679 = vmul.f32 %v676, 1.442695
  %v680 = vpow.pop %v679
  %v681 = vsel %vm39, %v678, 0.0
  %682 = vadd.xlane.f32.xlu0 %v681
  %v683 = vpop.xlane.xlu0 %682
  %v684 = vsel %vm216, %v680, 0.0
  %685 = vadd.xlane.f32.xlu0 %v684
  %v686 = vpop.xlane.xlu0 %685
  %v687 = vrcp.pop %v683
  %v688 = vrcp.pop %v686
  %v689 = vmul.f32 %v678, %v687
  %v690 = vmul.f32 %v680, %v688
  %v691 = vpack.c.bf16 %v690, %v689
  %693 = vrot.lane.b32.xlu0 %v188, 96
  %v694 = vpop.permute.xlu0 %693
  %v697 = vsel %vm39, %v691, 0
  %699 = vmatprep.subr.bf16.mxu0 0
  %700 = vmatpush1.bf16.msra.mxu0 %v694
  %701 = vmatprep.subr.bf16.mxu0 0
  %702 = vmatpush1.bf16.msra.mxu0 0
  %703 = vmatprep.subr.bf16.mxu0 0
  %704 = vmatpush1.bf16.msra.mxu0 0
  %705 = vmatprep.subr.bf16.mxu0 0
  %706 = vmatpush1.bf16.msra.mxu0 0
  %707 = vmatprep.subr.bf16.mxu0 0
  %708 = vmatpush1.bf16.msra.mxu0 0
  %709 = vmatprep.subr.bf16.mxu0 0
  %710 = vmatpush1.bf16.msra.mxu0 0
  %711 = vmatprep.subr.bf16.mxu0 0
  %712 = vmatpush1.bf16.msra.mxu0 0
  %713 = vmatprep.subr.bf16.mxu0 0
  %714 = vmatpush1.bf16.msra.mxu0 0
  %715 = vmatprep.subr.bf16.mxu0 0
  %716 = vmatpush1.bf16.msra.mxu0 0
  %717 = vmatprep.subr.bf16.mxu0 0
  %718 = vmatpush1.bf16.msra.mxu0 0
  %719 = vmatprep.subr.bf16.mxu0 0
  %720 = vmatpush1.bf16.msra.mxu0 0
  %721 = vmatprep.subr.bf16.mxu0 0
  %722 = vmatpush1.bf16.msra.mxu0 0
  %723 = vmatprep.subr.bf16.mxu0 0
  %724 = vmatpush1.bf16.msra.mxu0 0
  %725 = vmatprep.subr.bf16.mxu0 0
  %726 = vmatpush1.bf16.msra.mxu0 0
  %727 = vmatprep.subr.bf16.mxu0 0
  %728 = vmatpush1.bf16.msra.mxu0 0
  %729 = vmatprep.subr.bf16.mxu0 0
  %730 = vmatpush1.bf16.msra.mxu0 0
  %731 = vmatprep.mubr.bf16.mxu0 0
  %732 = vmatmul.mubr.bf16.gmra.mrb[0].mxu0 %v697
  %v733 = vpop.f32.mrb[0].mxu0
  %v734 = vadd.f32 0.0, %v733
  %v735 = vpop.f32.mrb[0].mxu0
  %v736 = vpop.f32.mrb[0].mxu0
  %v737 = vadd.f32 0.0, %v736
  %v738 = vpop.f32.mrb[0].mxu0
  %739 = vdwg.mxu0
  %740 = vset.pattern.permute.xlu0 6
  %741 = vperm.xlu0 %740, %v173
  %v742 = vpop.permute.xlu0 %741
  %744 = vset.pattern.permute.xlu0 6
  %745 = vperm.xlu0 %744, %v176
  %v746 = vpop.permute.xlu0 %745
  %v748 = vlaneseq
  %v749 = vshrl.u32 %v748, 7
  %v750 = vsub.s32 6, %v749
  %v751 = vrot.slane %v125, %v750
  %v752 = vadd.f32 %v742, %v751
  %v753 = vadd.f32 %v746, %v751
  %vm754 = vcmp.gt.f32.partialorder %v752, 0.0
  %vm755 = vcmp.gt.f32.partialorder %v753, 0.0
  %v756 = vmul.f32 %v752, 0.2
  %v757 = vmul.f32 %v753, 0.2
  %v758 = vsel %vm754, %v752, %v756
  %v759 = vsel %vm755, %v753, %v757
  %v760 = vsel %vm185, %v758, -1e+30
  %v761 = vsel %vm186, %v759, -1e+30
  %v762 = vsel %vm39, %v760, -inf
  %763 = vmax.xlane.f32.xlu0 %v762
  %v764 = vpop.xlane.xlu0 %763
  %v765 = vsel %vm216, %v761, -inf
  %766 = vmax.xlane.f32.xlu0 %v765
  %v767 = vpop.xlane.xlu0 %766
  %v768 = vsub.f32 %v760, %v764
  %v769 = vsub.f32 %v761, %v767
  %v770 = vmul.f32 %v768, 1.442695
  %v771 = vpow.pop %v770
  %v772 = vmul.f32 %v769, 1.442695
  %v773 = vpow.pop %v772
  %v774 = vsel %vm39, %v771, 0.0
  %775 = vadd.xlane.f32.xlu0 %v774
  %v776 = vpop.xlane.xlu0 %775
  %v777 = vsel %vm216, %v773, 0.0
  %778 = vadd.xlane.f32.xlu0 %v777
  %v779 = vpop.xlane.xlu0 %778
  %v780 = vrcp.pop %v776
  %v781 = vrcp.pop %v779
  %v782 = vmul.f32 %v771, %v780
  %v783 = vmul.f32 %v773, %v781
  %v784 = vpack.c.bf16 %v783, %v782
  %785 = vrot.lane.b32.xlu0 %v188, 64
  %v786 = vpop.permute.xlu0 %785
  %v789 = vsel %vm39, %v784, 0
  %791 = vmatprep.subr.bf16.mxu0 0
  %792 = vmatpush1.bf16.msra.mxu0 %v786
  %793 = vmatprep.subr.bf16.mxu0 0
  %794 = vmatpush1.bf16.msra.mxu0 0
  %795 = vmatprep.subr.bf16.mxu0 0
  %796 = vmatpush1.bf16.msra.mxu0 0
  %797 = vmatprep.subr.bf16.mxu0 0
  %798 = vmatpush1.bf16.msra.mxu0 0
  %799 = vmatprep.subr.bf16.mxu0 0
  %800 = vmatpush1.bf16.msra.mxu0 0
  %801 = vmatprep.subr.bf16.mxu0 0
  %802 = vmatpush1.bf16.msra.mxu0 0
  %803 = vmatprep.subr.bf16.mxu0 0
  %804 = vmatpush1.bf16.msra.mxu0 0
  %805 = vmatprep.subr.bf16.mxu0 0
  %806 = vmatpush1.bf16.msra.mxu0 0
  %807 = vmatprep.subr.bf16.mxu0 0
  %808 = vmatpush1.bf16.msra.mxu0 0
  %809 = vmatprep.subr.bf16.mxu0 0
  %810 = vmatpush1.bf16.msra.mxu0 0
  %811 = vmatprep.subr.bf16.mxu0 0
  %812 = vmatpush1.bf16.msra.mxu0 0
  %813 = vmatprep.subr.bf16.mxu0 0
  %814 = vmatpush1.bf16.msra.mxu0 0
  %815 = vmatprep.subr.bf16.mxu0 0
  %816 = vmatpush1.bf16.msra.mxu0 0
  %817 = vmatprep.subr.bf16.mxu0 0
  %818 = vmatpush1.bf16.msra.mxu0 0
  %819 = vmatprep.subr.bf16.mxu0 0
  %820 = vmatpush1.bf16.msra.mxu0 0
  %821 = vmatprep.subr.bf16.mxu0 0
  %822 = vmatpush1.bf16.msra.mxu0 0
  %823 = vmatprep.mubr.bf16.mxu0 0
  %824 = vmatmul.mubr.bf16.gmra.mrb[0].mxu0 %v789
  %v825 = vpop.f32.mrb[0].mxu0
  %v826 = vadd.f32 0.0, %v825
  %v827 = vpop.f32.mrb[0].mxu0
  %v828 = vpop.f32.mrb[0].mxu0
  %v829 = vadd.f32 0.0, %v828
  %v830 = vpop.f32.mrb[0].mxu0
  %831 = vdwg.mxu0
  %832 = vset.pattern.permute.xlu0 7
  %833 = vperm.xlu0 %832, %v173
  %v834 = vpop.permute.xlu0 %833
  %836 = vset.pattern.permute.xlu0 7
  %837 = vperm.xlu0 %836, %v176
  %v838 = vpop.permute.xlu0 %837
  %v840 = vlaneseq
  %v841 = vshrl.u32 %v840, 7
  %v842 = vsub.s32 7, %v841
  %v843 = vrot.slane %v125, %v842
  %v844 = vadd.f32 %v834, %v843
  %v845 = vadd.f32 %v838, %v843
  %vm846 = vcmp.gt.f32.partialorder %v844, 0.0
  %vm847 = vcmp.gt.f32.partialorder %v845, 0.0
  %v848 = vmul.f32 %v844, 0.2
  %v849 = vmul.f32 %v845, 0.2
  %v850 = vsel %vm846, %v844, %v848
  %v851 = vsel %vm847, %v845, %v849
  %v852 = vsel %vm185, %v850, -1e+30
  %v853 = vsel %vm186, %v851, -1e+30
  %v854 = vsel %vm39, %v852, -inf
  %855 = vmax.xlane.f32.xlu0 %v854
  %v856 = vpop.xlane.xlu0 %855
  %v857 = vsel %vm216, %v853, -inf
  %858 = vmax.xlane.f32.xlu0 %v857
  %v859 = vpop.xlane.xlu0 %858
  %v860 = vsub.f32 %v852, %v856
  %v861 = vsub.f32 %v853, %v859
  %v862 = vmul.f32 %v860, 1.442695
  %v863 = vpow.pop %v862
  %v864 = vmul.f32 %v861, 1.442695
  %v865 = vpow.pop %v864
  %v866 = vsel %vm39, %v863, 0.0
  %867 = vadd.xlane.f32.xlu0 %v866
  %v868 = vpop.xlane.xlu0 %867
  %v869 = vsel %vm216, %v865, 0.0
  %870 = vadd.xlane.f32.xlu0 %v869
  %v871 = vpop.xlane.xlu0 %870
  %v872 = vrcp.pop %v868
  %v873 = vrcp.pop %v871
  %v874 = vmul.f32 %v863, %v872
  %v875 = vmul.f32 %v865, %v873
  %v876 = vpack.c.bf16 %v875, %v874
  %877 = vrot.lane.b32.xlu0 %v188, 32
  %v878 = vpop.permute.xlu0 %877
  %v881 = vsel %vm39, %v876, 0
  %883 = vmatprep.subr.bf16.mxu0 0
  %884 = vmatpush1.bf16.msra.mxu0 %v878
  %885 = vmatprep.subr.bf16.mxu0 0
  %886 = vmatpush1.bf16.msra.mxu0 0
  %887 = vmatprep.subr.bf16.mxu0 0
  %888 = vmatpush1.bf16.msra.mxu0 0
  %889 = vmatprep.subr.bf16.mxu0 0
  %890 = vmatpush1.bf16.msra.mxu0 0
  %891 = vmatprep.subr.bf16.mxu0 0
  %892 = vmatpush1.bf16.msra.mxu0 0
  %893 = vmatprep.subr.bf16.mxu0 0
  %894 = vmatpush1.bf16.msra.mxu0 0
  %895 = vmatprep.subr.bf16.mxu0 0
  %896 = vmatpush1.bf16.msra.mxu0 0
  %897 = vmatprep.subr.bf16.mxu0 0
  %898 = vmatpush1.bf16.msra.mxu0 0
  %899 = vmatprep.subr.bf16.mxu0 0
  %900 = vmatpush1.bf16.msra.mxu0 0
  %901 = vmatprep.subr.bf16.mxu0 0
  %902 = vmatpush1.bf16.msra.mxu0 0
  %903 = vmatprep.subr.bf16.mxu0 0
  %904 = vmatpush1.bf16.msra.mxu0 0
  %905 = vmatprep.subr.bf16.mxu0 0
  %906 = vmatpush1.bf16.msra.mxu0 0
  %907 = vmatprep.subr.bf16.mxu0 0
  %908 = vmatpush1.bf16.msra.mxu0 0
  %909 = vmatprep.subr.bf16.mxu0 0
  %910 = vmatpush1.bf16.msra.mxu0 0
  %911 = vmatprep.subr.bf16.mxu0 0
  %912 = vmatpush1.bf16.msra.mxu0 0
  %913 = vmatprep.subr.bf16.mxu0 0
  %914 = vmatpush1.bf16.msra.mxu0 0
  %915 = vmatprep.mubr.bf16.mxu0 0
  %916 = vmatmul.mubr.bf16.gmra.mrb[0].mxu0 %v881
  %v917 = vpop.f32.mrb[0].mxu0
  %v918 = vadd.f32 0.0, %v917
  %v919 = vpop.f32.mrb[0].mxu0
  %v920 = vpop.f32.mrb[0].mxu0
  %v921 = vadd.f32 0.0, %v920
  %v922 = vpop.f32.mrb[0].mxu0
  %923 = vdwg.mxu0
  %926 = vrot.lane.b32.xlu0 %v368, 32
  %v927 = vpop.permute.xlu0 %926
  %928 = vrot.lane.b32.xlu0 %v371, 32
  %v929 = vpop.permute.xlu0 %928
  %934 = vrot.lane.b32.xlu0 %v460, 64
  %v935 = vpop.permute.xlu0 %934
  %936 = vrot.lane.b32.xlu0 %v463, 64
  %v937 = vpop.permute.xlu0 %936
  %942 = vrot.lane.b32.xlu0 %v552, 96
  %v943 = vpop.permute.xlu0 %942
  %944 = vrot.lane.b32.xlu0 %v555, 96
  %v945 = vpop.permute.xlu0 %944
  %950 = vrot.lane.b32.xlu0 %v734, 32
  %v951 = vpop.permute.xlu0 %950
  %952 = vrot.lane.b32.xlu0 %v737, 32
  %v953 = vpop.permute.xlu0 %952
  %958 = vrot.lane.b32.xlu0 %v826, 64
  %v959 = vpop.permute.xlu0 %958
  %960 = vrot.lane.b32.xlu0 %v829, 64
  %v961 = vpop.permute.xlu0 %960
  %966 = vrot.lane.b32.xlu0 %v918, 96
  %v967 = vpop.permute.xlu0 %966
  %968 = vrot.lane.b32.xlu0 %v921, 96
  %v969 = vpop.permute.xlu0 %968
  %vm972 = vcmask 261120
  %v973 = vsel %vm972, %v275, %v927
  %v974 = vsel %vm972, %v278, %v929
  %vm975 = vcmask 523264
  %v976 = vsel %vm975, %v973, %v935
  %v977 = vsel %vm975, %v974, %v937
  %vm978 = vcmask 785408
  %v979 = vsel %vm978, %v976, %v943
  %v980 = vsel %vm978, %v977, %v945
  %v981 = vsel %vm972, %v641, %v951
  %v982 = vsel %vm972, %v644, %v953
  %v983 = vsel %vm975, %v981, %v959
  %v984 = vsel %vm975, %v982, %v961
  %v985 = vsel %vm978, %v983, %v967
  %v986 = vsel %vm978, %v984, %v969
  %v987 = vld [vmem:[%s4] sm:$0x3]
  %v989 = vlaneseq
  %v990 = vshrl.u32 %v989, 7
  %v991 = vsub.s32 0, %v990
  %v992 = vrot.slane %v987, %v991
  %v993 = vlaneseq
  %v994 = vshrl.u32 %v993, 7
  %v995 = vsub.s32 1, %v994
  %v996 = vrot.slane %v987, %v995
  %v999 = vadd.f32 %v979, %v992
  %v1000 = vadd.f32 %v985, %v996
  %v1001 = vadd.f32 %v980, %v992
  %v1002 = vadd.f32 %v986, %v996
  %vm1003 = vcmp.gt.f32.partialorder %v999, 0.0
  %vm1004 = vcmp.gt.f32.partialorder %v1000, 0.0
  %vm1005 = vcmp.gt.f32.partialorder %v1001, 0.0
  %vm1006 = vcmp.gt.f32.partialorder %v1002, 0.0
  %v1007 = vmul.f32 %v999, 1.442695
  %v1008 = vpow.pop %v1007
  %v1009 = vmul.f32 %v1000, 1.442695
  %v1010 = vpow.pop %v1009
  %v1011 = vmul.f32 %v1001, 1.442695
  %v1012 = vpow.pop %v1011
  %v1013 = vmul.f32 %v1002, 1.442695
  %v1014 = vpow.pop %v1013
  %v1015 = vsub.f32 %v1008, 1.0
  %v1016 = vsub.f32 %v1010, 1.0
  %v1017 = vsub.f32 %v1012, 1.0
  %v1018 = vsub.f32 %v1014, 1.0
  %v1019 = vmul.f32 %v1015, 1.6732632
  %v1020 = vmul.f32 %v1016, 1.6732632
  %v1021 = vmul.f32 %v1017, 1.6732632
  %v1022 = vmul.f32 %v1018, 1.6732632
  %v1023 = vsel %vm1003, %v999, %v1019
  %v1024 = vsel %vm1004, %v1000, %v1020
  %v1025 = vsel %vm1005, %v1001, %v1021
  %v1026 = vsel %vm1006, %v1002, %v1022
  %v1027 = vmul.f32 %v1023, 1.050701
  %v1028 = vmul.f32 %v1024, 1.050701
  %v1029 = vmul.f32 %v1025, 1.050701
  %v1030 = vmul.f32 %v1026, 1.050701
  %1031 = vst [vmem:[%s6] sm:$0xff] %v1027
  %1032 = vst [vmem:[%s6 + $0x8] sm:$0xff] %v1028
  %1033 = vst [vmem:[%s6 + $0x10] sm:$0xf] %v1029
  %1034 = vst [vmem:[%s6 + $0x18] sm:$0xf] %v1030
  // Predicated region
  $region26: #{gat_forward.3} parent=0 // pred_check
    _
  $region27: #{gat_forward.3} parent=0 // pred_check_branch
    %1036 = sbr.rel (0) target = $region29
  $region28: #{gat_forward.3} parent=0 // pred_region
    _
  $region29: #{gat_forward.3} parent=0 // pred_fallthru
    _
  // Predicated region
  $region30: #{gat_forward.3} parent=0 // pred_check
    _
  $region31: #{gat_forward.3} parent=0 // pred_check_branch
    %1038 = sbr.rel (0) target = $region33
  $region32: #{gat_forward.3} parent=0 // pred_region
    _
  $region33: #{gat_forward.3} parent=0 // pred_fallthru
    _

</llo_original>
